<compile_context>
chip_gen: v5e
topology: v5e:2x2
jax: 0.10.0
libtpu: 0.0.40
codegen_flags: <defaults>
</compile_context>

<pallas_src>
import jax
import jax.numpy as jnp
from jax.experimental import pallas as pl
from jax.experimental.pallas import tpu as pltpu

BN_EPS = 1e-5
CHUNK = 16  # == conv1 stride; conv1 runs on the (L/16, 16) chunk view of the input.

# (cin, cout, kernel, stride) for the five torch Conv1d layers.
CONV_CFG = [
    (1, 16, 128, 16),
    (16, 32, 3, 1),
    (32, 64, 3, 1),
    (64, 64, 3, 1),
    (64, 64, 3, 1),
]

# Equivalent stride-1 "pseudo" configs used inside the kernel:
#   conv1 over the chunked input becomes (k_eff=8, cin_eff=16); the rest are unchanged.
PSEUDO_CFG = [
    (128 // CHUNK, CHUNK, 16),
    (3, 16, 32),
    (3, 32, 64),
    (3, 64, 64),
    (3, 64, 64),
]

FC1_IN, FC1_OUT, NUM_CLASSES = 64, 100, 4

# Packed-parameter geometry (static).
CONV_W_ROWS = sum(k * c for (k, c, _) in PSEUDO_CFG)          # 656
W_ALL_ROWS = CONV_W_ROWS + FC1_IN + FC1_OUT                   # 820 (conv blocks, fc1, fc2)
W_ALL_LANES = 128
SM_ROWS = 2 * len(PSEUDO_CFG) + 2                             # 5x(gamma,beta) + fc1_b + fc2_b
SM_LANES = 128


def _vmem_spec():
    return pl.BlockSpec(memory_space=pltpu.MemorySpace.VMEM)


def _fused_forward_kernel(x_ref, w_ref, sm_ref, logits_ref, features_ref, col_ref, y_ref):
    """x_ref:   (B*L/16, 16)   stacked chunk view of the input
       w_ref:   (820, 128)     packed conv(5) + fc1 + fc2 weights (lane-padded)
       sm_ref:  (12, 128)      packed gamma/beta per conv layer + fc1_b + fc2_b
       col_ref: (B*92, 192)    VMEM scratch: stacked im2col staging
       y_ref:   (B*92, 64)     VMEM scratch: stacked pre-pool activations (pool on next read)"""
    batch = logits_ref.shape[0]
    lin = x_ref.shape[0] // batch          # chunks per sample (L/16)

    w_off = 0
    lprev = 0
    for li, (k_eff, cin, cout) in enumerate(PSEUDO_CFG):
        lout = lin - k_eff + 1             # conv output length per sample
        rows = batch * lout                # stacked rows
        kdim = k_eff * cin

        # ---- stage stacked im2col; for li>0 this also applies the previous layer's
        #      MaxPool1d(2) as a strided even/odd row-pair max read from y_ref ----
        for b in range(batch):
            for kk in range(k_eff):
                if li == 0:
                    col_ref[b * lout:(b + 1) * lout, kk * cin:(kk + 1) * cin] = (
                        x_ref[b * lin + kk: b * lin + kk + lout, :])
                else:
                    ev = y_ref[pl.ds(b * lprev + 2 * kk, lout, stride=2), 0:cin]
                    od = y_ref[pl.ds(b * lprev + 2 * kk + 1, lout, stride=2), 0:cin]
                    col_ref[b * lout:(b + 1) * lout, kk * cin:(kk + 1) * cin] = (
                        jnp.maximum(ev, od))

        # ---- conv layer = ONE matmul over the full K*Cin contraction depth ----
        z = jnp.dot(col_ref[0:rows, 0:kdim],
                    w_ref[w_off:w_off + kdim, 0:cout],
                    preferred_element_type=jnp.float32)            # (rows, cout)
        w_off += kdim
        # (conv bias omitted: it cancels exactly against the BN mean subtraction below)

        # ---- BatchNorm1d, training-mode stats over batch x positions, per channel ----
        inv_n = 1.0 / float(rows)
        mu = jnp.sum(z, axis=0, keepdims=True) * inv_n              # (1, cout)
        c = z - mu
        var = jnp.sum(c * c, axis=0, keepdims=True) * inv_n         # centered two-pass variance
        gamma = sm_ref[2 * li: 2 * li + 1, 0:cout]
        beta = sm_ref[2 * li + 1: 2 * li + 2, 0:cout]
        y = jnp.maximum(c * (jax.lax.rsqrt(var + BN_EPS) * gamma) + beta, 0.0)   # BN + ReLU

        # ---- park pre-pool activation; MaxPool1d(2) is applied on the next strided read ----
        y_ref[0:rows, 0:cout] = y

        lprev = lout
        lin = lout // 2

    # ---- final MaxPool of layer 5 (per-sample length 2 -> 1); Flatten == identity -> (B, 64) ----
    feats = jnp.maximum(y_ref[pl.ds(0, batch, stride=2), 0:FC1_IN],
                        y_ref[pl.ds(1, batch, stride=2), 0:FC1_IN])

    # ---- MLP head ----
    fc1_w = w_ref[CONV_W_ROWS:CONV_W_ROWS + FC1_IN, 0:FC1_OUT]
    fc1_b = sm_ref[SM_ROWS - 2: SM_ROWS - 1, 0:FC1_OUT]
    hidden = jnp.maximum(
        jnp.dot(feats, fc1_w, preferred_element_type=jnp.float32) + fc1_b, 0.0)   # (B, 100)
    features_ref[...] = hidden

    fc2_w = w_ref[CONV_W_ROWS + FC1_IN:CONV_W_ROWS + FC1_IN + FC1_OUT, 0:NUM_CLASSES]
    fc2_b = sm_ref[SM_ROWS - 1: SM_ROWS, 0:NUM_CLASSES]
    logits_ref[...] = jnp.dot(hidden, fc2_w, preferred_element_type=jnp.float32) + fc2_b


def init_params(key):
    """Parameters packed host-side into two slabs:
       w_all (820, 128): conv1..conv5 as (K*Cin, Cout) blocks (position-major), then fc1 (64,100),
                         then fc2 (100, 4); zero-padded to 128 lanes.
       sm    (12, 128):  rows 2i / 2i+1 = gamma / beta of conv layer i; row 10 = fc1_b; row 11 = fc2_b."""
    blocks = []
    for (cin, cout, k, _) in CONV_CFG:
        key, k1 = jax.random.split(key)
        fan_in = cin * k
        w = jax.random.normal(k1, (cout, cin, k), jnp.float32) / jnp.sqrt(fan_in)
        # torch Conv1d weight (Cout, Cin, K) -> (K*Cin, Cout), position-major.
        blocks.append(jnp.transpose(w, (2, 1, 0)).reshape(k * cin, cout))
    key, k1, k2 = jax.random.split(key, 3)
    blocks.append((jax.random.normal(k1, (FC1_OUT, FC1_IN), jnp.float32)
                   / jnp.sqrt(float(FC1_IN))).T)                      # fc1: (64, 100)
    blocks.append((jax.random.normal(k2, (NUM_CLASSES, FC1_OUT), jnp.float32)
                   / jnp.sqrt(float(FC1_OUT))).T)                     # fc2: (100, 4)

    w_all = jnp.zeros((W_ALL_ROWS, W_ALL_LANES), jnp.float32)
    off = 0
    for blk in blocks:
        r, c = blk.shape
        w_all = w_all.at[off:off + r, 0:c].set(blk)
        off += r
    assert off == W_ALL_ROWS

    sm = jnp.zeros((SM_ROWS, SM_LANES), jnp.float32)
    for i, (_, cout, _, _) in enumerate(CONV_CFG):
        key, k3, k4 = jax.random.split(key, 3)
        sm = sm.at[2 * i, 0:cout].set(1.0 + 0.1 * jax.random.normal(k3, (cout,), jnp.float32))
        sm = sm.at[2 * i + 1, 0:cout].set(0.1 * jax.random.normal(k4, (cout,), jnp.float32))
    key, k5, k6 = jax.random.split(key, 3)
    sm = sm.at[SM_ROWS - 2, 0:FC1_OUT].set(0.1 * jax.random.normal(k5, (FC1_OUT,), jnp.float32))
    sm = sm.at[SM_ROWS - 1, 0:NUM_CLASSES].set(
        0.1 * jax.random.normal(k6, (NUM_CLASSES,), jnp.float32))
    return dict(w_all=w_all, sm=sm)


@jax.jit
def my_cnn1d_forward(x, params):
    """x: (B, L) float32 (the torch input before unsqueeze(1)). Returns (logits, features)."""
    b, l = x.shape
    assert l % CHUNK == 0, "L must be a multiple of the conv1 stride (16)"
    # The conv stack must end at spatial length 1, as required by Linear(64, 100) after Flatten.
    ln = l // CHUNK
    for (k_eff, _, _) in PSEUDO_CFG:
        ln = (ln - k_eff + 1) // 2
    assert ln == 1, f"conv stack ends at spatial length {ln} != 1 for L={l}; use e.g. L=1584"

    n_chunks = l // CHUNK
    xc = x.reshape(b * n_chunks, CHUNK)               # stacked chunk view (contiguous, free)

    rows_max = b * (n_chunks - PSEUDO_CFG[0][0] + 1)              # B * 92
    kdim_max = max(k * c for (k, c, _) in PSEUDO_CFG)             # 192
    cmax = max(c for (_, _, c) in PSEUDO_CFG)                     # 64

    logits, features = pl.pallas_call(
        _fused_forward_kernel,
        out_shape=(jax.ShapeDtypeStruct((b, NUM_CLASSES), jnp.float32),
                   jax.ShapeDtypeStruct((b, FC1_OUT), jnp.float32)),
        in_specs=[_vmem_spec(), _vmem_spec(), _vmem_spec()],
        out_specs=(_vmem_spec(), _vmem_spec()),
        scratch_shapes=[pltpu.VMEM((rows_max, kdim_max), jnp.float32),   # im2col staging
                        pltpu.VMEM((rows_max, cmax), jnp.float32)],      # pre-pool activations
    )(xc, params["w_all"], params["sm"])
    return logits, features


if __name__ == "__main__":
    key = jax.random.PRNGKey(0)
    kp, kx = jax.random.split(key)
    params = init_params(kp)

    # L = 1584 is the smallest length for which the conv stack ends at spatial length 1,
    # as required by Linear(64, 100) after Flatten.
    B, L = 2, 1584
    x = jax.random.normal(kx, (B, L), jnp.float32)

    logits, features = my_cnn1d_forward(x, params)
    jax.block_until_ready((logits, features))

    assert logits.shape == (B, NUM_CLASSES), logits.shape
    assert features.shape == (B, FC1_OUT), features.shape
    assert bool(jnp.all(jnp.isfinite(logits))) and bool(jnp.all(jnp.isfinite(features)))
    print("KERNEL_OK")
</pallas_src>

<mosaic_0001>
module attributes {stable_mosaic.version = 11 : i64} {
  func.func @_fused_forward_kernel(%arg0: memref<198x16xf32, #tpu.memory_space<vmem>>, %arg1: memref<820x128xf32, #tpu.memory_space<vmem>>, %arg2: memref<12x128xf32, #tpu.memory_space<vmem>>, %arg3: memref<2x4xf32, #tpu.memory_space<vmem>>, %arg4: memref<2x100xf32, #tpu.memory_space<vmem>>, %arg5: memref<184x192xf32, #tpu.memory_space<vmem>>, %arg6: memref<184x64xf32, #tpu.memory_space<vmem>>) attributes {dimension_semantics = [], scalar_prefetch = 0 : i64, scratch_operands = 2 : i64, tpu.core_type = #tpu.core_type<tc>} {
    %c0 = arith.constant 0 : index
    %c0_0 = arith.constant 0 : index
    %0 = vector.load %arg0[%c0, %c0_0] : memref<198x16xf32, #tpu.memory_space<vmem>>, vector<92x16xf32>
    %c0_1 = arith.constant 0 : index
    %c0_2 = arith.constant 0 : index
    %1 = vector.load %arg5[%c0_1, %c0_2] : memref<184x192xf32, #tpu.memory_space<vmem>>, vector<92x16xf32>
    tpu.vector_store %arg5[%c0_1, %c0_2], %0 {strides = array<i32>} : memref<184x192xf32, #tpu.memory_space<vmem>>, vector<92x16xf32>,
    %c1 = arith.constant 1 : index
    %c0_3 = arith.constant 0 : index
    %2 = vector.load %arg0[%c1, %c0_3] : memref<198x16xf32, #tpu.memory_space<vmem>>, vector<92x16xf32>
    %c0_4 = arith.constant 0 : index
    %c16 = arith.constant 16 : index
    %3 = vector.load %arg5[%c0_4, %c16] : memref<184x192xf32, #tpu.memory_space<vmem>>, vector<92x16xf32>
    tpu.vector_store %arg5[%c0_4, %c16], %2 {strides = array<i32>} : memref<184x192xf32, #tpu.memory_space<vmem>>, vector<92x16xf32>,
    %c2 = arith.constant 2 : index
    %c0_5 = arith.constant 0 : index
    %4 = vector.load %arg0[%c2, %c0_5] : memref<198x16xf32, #tpu.memory_space<vmem>>, vector<92x16xf32>
    %c0_6 = arith.constant 0 : index
    %c32 = arith.constant 32 : index
    %5 = vector.load %arg5[%c0_6, %c32] : memref<184x192xf32, #tpu.memory_space<vmem>>, vector<92x16xf32>
    tpu.vector_store %arg5[%c0_6, %c32], %4 {strides = array<i32>} : memref<184x192xf32, #tpu.memory_space<vmem>>, vector<92x16xf32>,
    %c3 = arith.constant 3 : index
    %c0_7 = arith.constant 0 : index
    %6 = vector.load %arg0[%c3, %c0_7] : memref<198x16xf32, #tpu.memory_space<vmem>>, vector<92x16xf32>
    %c0_8 = arith.constant 0 : index
    %c48 = arith.constant 48 : index
    %7 = vector.load %arg5[%c0_8, %c48] : memref<184x192xf32, #tpu.memory_space<vmem>>, vector<92x16xf32>
    tpu.vector_store %arg5[%c0_8, %c48], %6 {strides = array<i32>} : memref<184x192xf32, #tpu.memory_space<vmem>>, vector<92x16xf32>,
    %c4 = arith.constant 4 : index
    %c0_9 = arith.constant 0 : index
    %8 = vector.load %arg0[%c4, %c0_9] : memref<198x16xf32, #tpu.memory_space<vmem>>, vector<92x16xf32>
    %c0_10 = arith.constant 0 : index
    %c64 = arith.constant 64 : index
    %9 = vector.load %arg5[%c0_10, %c64] : memref<184x192xf32, #tpu.memory_space<vmem>>, vector<92x16xf32>
    tpu.vector_store %arg5[%c0_10, %c64], %8 {strides = array<i32>} : memref<184x192xf32, #tpu.memory_space<vmem>>, vector<92x16xf32>,
    %c5 = arith.constant 5 : index
    %c0_11 = arith.constant 0 : index
    %10 = vector.load %arg0[%c5, %c0_11] : memref<198x16xf32, #tpu.memory_space<vmem>>, vector<92x16xf32>
    %c0_12 = arith.constant 0 : index
    %c80 = arith.constant 80 : index
    %11 = vector.load %arg5[%c0_12, %c80] : memref<184x192xf32, #tpu.memory_space<vmem>>, vector<92x16xf32>
    tpu.vector_store %arg5[%c0_12, %c80], %10 {strides = array<i32>} : memref<184x192xf32, #tpu.memory_space<vmem>>, vector<92x16xf32>,
    %c6 = arith.constant 6 : index
    %c0_13 = arith.constant 0 : index
    %12 = vector.load %arg0[%c6, %c0_13] : memref<198x16xf32, #tpu.memory_space<vmem>>, vector<92x16xf32>
    %c0_14 = arith.constant 0 : index
    %c96 = arith.constant 96 : index
    %13 = vector.load %arg5[%c0_14, %c96] : memref<184x192xf32, #tpu.memory_space<vmem>>, vector<92x16xf32>
    tpu.vector_store %arg5[%c0_14, %c96], %12 {strides = array<i32>} : memref<184x192xf32, #tpu.memory_space<vmem>>, vector<92x16xf32>,
    %c7 = arith.constant 7 : index
    %c0_15 = arith.constant 0 : index
    %14 = vector.load %arg0[%c7, %c0_15] : memref<198x16xf32, #tpu.memory_space<vmem>>, vector<92x16xf32>
    %c0_16 = arith.constant 0 : index
    %c112 = arith.constant 112 : index
    %15 = vector.load %arg5[%c0_16, %c112] : memref<184x192xf32, #tpu.memory_space<vmem>>, vector<92x16xf32>
    tpu.vector_store %arg5[%c0_16, %c112], %14 {strides = array<i32>} : memref<184x192xf32, #tpu.memory_space<vmem>>, vector<92x16xf32>,
    %c99 = arith.constant 99 : index
    %c0_17 = arith.constant 0 : index
    %16 = vector.load %arg0[%c99, %c0_17] : memref<198x16xf32, #tpu.memory_space<vmem>>, vector<92x16xf32>
    %c92 = arith.constant 92 : index
    %c0_18 = arith.constant 0 : index
    %17 = vector.load %arg5[%c92, %c0_18] : memref<184x192xf32, #tpu.memory_space<vmem>>, vector<92x16xf32>
    tpu.vector_store %arg5[%c92, %c0_18], %16 {strides = array<i32>} : memref<184x192xf32, #tpu.memory_space<vmem>>, vector<92x16xf32>,
    %c100 = arith.constant 100 : index
    %c0_19 = arith.constant 0 : index
    %18 = vector.load %arg0[%c100, %c0_19] : memref<198x16xf32, #tpu.memory_space<vmem>>, vector<92x16xf32>
    %c92_20 = arith.constant 92 : index
    %c16_21 = arith.constant 16 : index
    %19 = vector.load %arg5[%c92_20, %c16_21] : memref<184x192xf32, #tpu.memory_space<vmem>>, vector<92x16xf32>
    tpu.vector_store %arg5[%c92_20, %c16_21], %18 {strides = array<i32>} : memref<184x192xf32, #tpu.memory_space<vmem>>, vector<92x16xf32>,
    %c101 = arith.constant 101 : index
    %c0_22 = arith.constant 0 : index
    %20 = vector.load %arg0[%c101, %c0_22] : memref<198x16xf32, #tpu.memory_space<vmem>>, vector<92x16xf32>
    %c92_23 = arith.constant 92 : index
    %c32_24 = arith.constant 32 : index
    %21 = vector.load %arg5[%c92_23, %c32_24] : memref<184x192xf32, #tpu.memory_space<vmem>>, vector<92x16xf32>
    tpu.vector_store %arg5[%c92_23, %c32_24], %20 {strides = array<i32>} : memref<184x192xf32, #tpu.memory_space<vmem>>, vector<92x16xf32>,
    %c102 = arith.constant 102 : index
    %c0_25 = arith.constant 0 : index
    %22 = vector.load %arg0[%c102, %c0_25] : memref<198x16xf32, #tpu.memory_space<vmem>>, vector<92x16xf32>
    %c92_26 = arith.constant 92 : index
    %c48_27 = arith.constant 48 : index
    %23 = vector.load %arg5[%c92_26, %c48_27] : memref<184x192xf32, #tpu.memory_space<vmem>>, vector<92x16xf32>
    tpu.vector_store %arg5[%c92_26, %c48_27], %22 {strides = array<i32>} : memref<184x192xf32, #tpu.memory_space<vmem>>, vector<92x16xf32>,
    %c103 = arith.constant 103 : index
    %c0_28 = arith.constant 0 : index
    %24 = vector.load %arg0[%c103, %c0_28] : memref<198x16xf32, #tpu.memory_space<vmem>>, vector<92x16xf32>
    %c92_29 = arith.constant 92 : index
    %c64_30 = arith.constant 64 : index
    %25 = vector.load %arg5[%c92_29, %c64_30] : memref<184x192xf32, #tpu.memory_space<vmem>>, vector<92x16xf32>
    tpu.vector_store %arg5[%c92_29, %c64_30], %24 {strides = array<i32>} : memref<184x192xf32, #tpu.memory_space<vmem>>, vector<92x16xf32>,
    %c104 = arith.constant 104 : index
    %c0_31 = arith.constant 0 : index
    %26 = vector.load %arg0[%c104, %c0_31] : memref<198x16xf32, #tpu.memory_space<vmem>>, vector<92x16xf32>
    %c92_32 = arith.constant 92 : index
    %c80_33 = arith.constant 80 : index
    %27 = vector.load %arg5[%c92_32, %c80_33] : memref<184x192xf32, #tpu.memory_space<vmem>>, vector<92x16xf32>
    tpu.vector_store %arg5[%c92_32, %c80_33], %26 {strides = array<i32>} : memref<184x192xf32, #tpu.memory_space<vmem>>, vector<92x16xf32>,
    %c105 = arith.constant 105 : index
    %c0_34 = arith.constant 0 : index
    %28 = vector.load %arg0[%c105, %c0_34] : memref<198x16xf32, #tpu.memory_space<vmem>>, vector<92x16xf32>
    %c92_35 = arith.constant 92 : index
    %c96_36 = arith.constant 96 : index
    %29 = vector.load %arg5[%c92_35, %c96_36] : memref<184x192xf32, #tpu.memory_space<vmem>>, vector<92x16xf32>
    tpu.vector_store %arg5[%c92_35, %c96_36], %28 {strides = array<i32>} : memref<184x192xf32, #tpu.memory_space<vmem>>, vector<92x16xf32>,
    %c106 = arith.constant 106 : index
    %c0_37 = arith.constant 0 : index
    %30 = vector.load %arg0[%c106, %c0_37] : memref<198x16xf32, #tpu.memory_space<vmem>>, vector<92x16xf32>
    %c92_38 = arith.constant 92 : index
    %c112_39 = arith.constant 112 : index
    %31 = vector.load %arg5[%c92_38, %c112_39] : memref<184x192xf32, #tpu.memory_space<vmem>>, vector<92x16xf32>
    tpu.vector_store %arg5[%c92_38, %c112_39], %30 {strides = array<i32>} : memref<184x192xf32, #tpu.memory_space<vmem>>, vector<92x16xf32>,
    %c0_40 = arith.constant 0 : index
    %c0_41 = arith.constant 0 : index
    %32 = vector.load %arg5[%c0_40, %c0_41] : memref<184x192xf32, #tpu.memory_space<vmem>>, vector<184x128xf32>
    %c0_42 = arith.constant 0 : index
    %c0_43 = arith.constant 0 : index
    %33 = vector.load %arg1[%c0_42, %c0_43] : memref<820x128xf32, #tpu.memory_space<vmem>>, vector<128x16xf32>
    %cst = arith.constant dense<0.000000e+00> : vector<184x16xf32>
    %34 = tpu.matmul %32, %33, %cst {dimension_numbers = #tpu.dot_dimension_numbers<[1], [0], [0], [1], [0, 0, 1, 1], [], []>} : vector<184x128xf32>, vector<128x16xf32>, vector<184x16xf32> -> vector<184x16xf32>
    %cst_44 = arith.constant dense<0.000000e+00> : vector<16xf32>
    %35 = vector.multi_reduction <add>, %34, %cst_44 [0] : vector<184x16xf32> to vector<16xf32>
    %36 = vector.shape_cast %35 : vector<16xf32> to vector<1x16xf32>
    %cst_45 = arith.constant 0.00543478271 : f32
    %37 = vector.broadcast %cst_45 : f32 to vector<1x16xf32>
    %38 = arith.mulf %36, %37 : vector<1x16xf32>
    %39 = vector.broadcast %38 : vector<1x16xf32> to vector<184x16xf32>
    %40 = arith.subf %34, %39 : vector<184x16xf32>
    %41 = arith.mulf %40, %40 : vector<184x16xf32>
    %cst_46 = arith.constant dense<0.000000e+00> : vector<16xf32>
    %42 = vector.multi_reduction <add>, %41, %cst_46 [0] : vector<184x16xf32> to vector<16xf32>
    %43 = vector.shape_cast %42 : vector<16xf32> to vector<1x16xf32>
    %cst_47 = arith.constant 0.00543478271 : f32
    %44 = vector.broadcast %cst_47 : f32 to vector<1x16xf32>
    %45 = arith.mulf %43, %44 : vector<1x16xf32>
    %c0_48 = arith.constant 0 : index
    %c0_49 = arith.constant 0 : index
    %46 = vector.load %arg2[%c0_48, %c0_49] : memref<12x128xf32, #tpu.memory_space<vmem>>, vector<1x16xf32>
    %c1_50 = arith.constant 1 : index
    %c0_51 = arith.constant 0 : index
    %47 = vector.load %arg2[%c1_50, %c0_51] : memref<12x128xf32, #tpu.memory_space<vmem>>, vector<1x16xf32>
    %cst_52 = arith.constant 9.99999974E-6 : f32
    %48 = vector.broadcast %cst_52 : f32 to vector<1x16xf32>
    %49 = arith.addf %45, %48 : vector<1x16xf32>
    %50 = math.rsqrt %49 : vector<1x16xf32>
    %51 = arith.mulf %50, %46 : vector<1x16xf32>
    %52 = vector.broadcast %51 : vector<1x16xf32> to vector<184x16xf32>
    %53 = arith.mulf %40, %52 : vector<184x16xf32>
    %54 = vector.broadcast %47 : vector<1x16xf32> to vector<184x16xf32>
    %55 = arith.addf %53, %54 : vector<184x16xf32>
    %cst_53 = arith.constant 0.000000e+00 : f32
    %56 = vector.broadcast %cst_53 : f32 to vector<184x16xf32>
    %57 = arith.maximumf %55, %56 : vector<184x16xf32>
    %c0_54 = arith.constant 0 : index
    %c0_55 = arith.constant 0 : index
    %58 = vector.load %arg6[%c0_54, %c0_55] : memref<184x64xf32, #tpu.memory_space<vmem>>, vector<184x16xf32>
    tpu.vector_store %arg6[%c0_54, %c0_55], %57 {strides = array<i32>} : memref<184x64xf32, #tpu.memory_space<vmem>>, vector<184x16xf32>,
    %c0_56 = arith.constant 0 : index
    %c0_57 = arith.constant 0 : index
    %59 = tpu.strided_load %arg6[%c0_56, %c0_57] {strides = array<i32: 2, 1>} : memref<184x64xf32, #tpu.memory_space<vmem>>, vector<44x16xf32>
    %c1_58 = arith.constant 1 : index
    %c0_59 = arith.constant 0 : index
    %60 = tpu.strided_load %arg6[%c1_58, %c0_59] {strides = array<i32: 2, 1>} : memref<184x64xf32, #tpu.memory_space<vmem>>, vector<44x16xf32>
    %61 = arith.maximumf %59, %60 : vector<44x16xf32>
    %c0_60 = arith.constant 0 : index
    %c0_61 = arith.constant 0 : index
    %62 = vector.load %arg5[%c0_60, %c0_61] : memref<184x192xf32, #tpu.memory_space<vmem>>, vector<44x16xf32>
    tpu.vector_store %arg5[%c0_60, %c0_61], %61 {strides = array<i32>} : memref<184x192xf32, #tpu.memory_space<vmem>>, vector<44x16xf32>,
    %c2_62 = arith.constant 2 : index
    %c0_63 = arith.constant 0 : index
    %63 = tpu.strided_load %arg6[%c2_62, %c0_63] {strides = array<i32: 2, 1>} : memref<184x64xf32, #tpu.memory_space<vmem>>, vector<44x16xf32>
    %c3_64 = arith.constant 3 : index
    %c0_65 = arith.constant 0 : index
    %64 = tpu.strided_load %arg6[%c3_64, %c0_65] {strides = array<i32: 2, 1>} : memref<184x64xf32, #tpu.memory_space<vmem>>, vector<44x16xf32>
    %65 = arith.maximumf %63, %64 : vector<44x16xf32>
    %c0_66 = arith.constant 0 : index
    %c16_67 = arith.constant 16 : index
    %66 = vector.load %arg5[%c0_66, %c16_67] : memref<184x192xf32, #tpu.memory_space<vmem>>, vector<44x16xf32>
    tpu.vector_store %arg5[%c0_66, %c16_67], %65 {strides = array<i32>} : memref<184x192xf32, #tpu.memory_space<vmem>>, vector<44x16xf32>,
    %c4_68 = arith.constant 4 : index
    %c0_69 = arith.constant 0 : index
    %67 = tpu.strided_load %arg6[%c4_68, %c0_69] {strides = array<i32: 2, 1>} : memref<184x64xf32, #tpu.memory_space<vmem>>, vector<44x16xf32>
    %c5_70 = arith.constant 5 : index
    %c0_71 = arith.constant 0 : index
    %68 = tpu.strided_load %arg6[%c5_70, %c0_71] {strides = array<i32: 2, 1>} : memref<184x64xf32, #tpu.memory_space<vmem>>, vector<44x16xf32>
    %69 = arith.maximumf %67, %68 : vector<44x16xf32>
    %c0_72 = arith.constant 0 : index
    %c32_73 = arith.constant 32 : index
    %70 = vector.load %arg5[%c0_72, %c32_73] : memref<184x192xf32, #tpu.memory_space<vmem>>, vector<44x16xf32>
    tpu.vector_store %arg5[%c0_72, %c32_73], %69 {strides = array<i32>} : memref<184x192xf32, #tpu.memory_space<vmem>>, vector<44x16xf32>,
    %c92_74 = arith.constant 92 : index
    %c0_75 = arith.constant 0 : index
    %71 = tpu.strided_load %arg6[%c92_74, %c0_75] {strides = array<i32: 2, 1>} : memref<184x64xf32, #tpu.memory_space<vmem>>, vector<44x16xf32>
    %c93 = arith.constant 93 : index
    %c0_76 = arith.constant 0 : index
    %72 = tpu.strided_load %arg6[%c93, %c0_76] {strides = array<i32: 2, 1>} : memref<184x64xf32, #tpu.memory_space<vmem>>, vector<44x16xf32>
    %73 = arith.maximumf %71, %72 : vector<44x16xf32>
    %c44 = arith.constant 44 : index
    %c0_77 = arith.constant 0 : index
    %74 = vector.load %arg5[%c44, %c0_77] : memref<184x192xf32, #tpu.memory_space<vmem>>, vector<44x16xf32>
    tpu.vector_store %arg5[%c44, %c0_77], %73 {strides = array<i32>} : memref<184x192xf32, #tpu.memory_space<vmem>>, vector<44x16xf32>,
    %c94 = arith.constant 94 : index
    %c0_78 = arith.constant 0 : index
    %75 = tpu.strided_load %arg6[%c94, %c0_78] {strides = array<i32: 2, 1>} : memref<184x64xf32, #tpu.memory_space<vmem>>, vector<44x16xf32>
    %c95 = arith.constant 95 : index
    %c0_79 = arith.constant 0 : index
    %76 = tpu.strided_load %arg6[%c95, %c0_79] {strides = array<i32: 2, 1>} : memref<184x64xf32, #tpu.memory_space<vmem>>, vector<44x16xf32>
    %77 = arith.maximumf %75, %76 : vector<44x16xf32>
    %c44_80 = arith.constant 44 : index
    %c16_81 = arith.constant 16 : index
    %78 = vector.load %arg5[%c44_80, %c16_81] : memref<184x192xf32, #tpu.memory_space<vmem>>, vector<44x16xf32>
    tpu.vector_store %arg5[%c44_80, %c16_81], %77 {strides = array<i32>} : memref<184x192xf32, #tpu.memory_space<vmem>>, vector<44x16xf32>,
    %c96_82 = arith.constant 96 : index
    %c0_83 = arith.constant 0 : index
    %79 = tpu.strided_load %arg6[%c96_82, %c0_83] {strides = array<i32: 2, 1>} : memref<184x64xf32, #tpu.memory_space<vmem>>, vector<44x16xf32>
    %c97 = arith.constant 97 : index
    %c0_84 = arith.constant 0 : index
    %80 = tpu.strided_load %arg6[%c97, %c0_84] {strides = array<i32: 2, 1>} : memref<184x64xf32, #tpu.memory_space<vmem>>, vector<44x16xf32>
    %81 = arith.maximumf %79, %80 : vector<44x16xf32>
    %c44_85 = arith.constant 44 : index
    %c32_86 = arith.constant 32 : index
    %82 = vector.load %arg5[%c44_85, %c32_86] : memref<184x192xf32, #tpu.memory_space<vmem>>, vector<44x16xf32>
    tpu.vector_store %arg5[%c44_85, %c32_86], %81 {strides = array<i32>} : memref<184x192xf32, #tpu.memory_space<vmem>>, vector<44x16xf32>,
    %c0_87 = arith.constant 0 : index
    %c0_88 = arith.constant 0 : index
    %83 = vector.load %arg5[%c0_87, %c0_88] : memref<184x192xf32, #tpu.memory_space<vmem>>, vector<88x48xf32>
    %c128 = arith.constant 128 : index
    %c0_89 = arith.constant 0 : index
    %84 = vector.load %arg1[%c128, %c0_89] : memref<820x128xf32, #tpu.memory_space<vmem>>, vector<48x32xf32>
    %cst_90 = arith.constant dense<0.000000e+00> : vector<88x32xf32>
    %85 = tpu.matmul %83, %84, %cst_90 {dimension_numbers = #tpu.dot_dimension_numbers<[1], [0], [0], [1], [0, 0, 1, 1], [], []>} : vector<88x48xf32>, vector<48x32xf32>, vector<88x32xf32> -> vector<88x32xf32>
    %cst_91 = arith.constant dense<0.000000e+00> : vector<32xf32>
    %86 = vector.multi_reduction <add>, %85, %cst_91 [0] : vector<88x32xf32> to vector<32xf32>
    %87 = vector.shape_cast %86 : vector<32xf32> to vector<1x32xf32>
    %cst_92 = arith.constant 0.0113636367 : f32
    %88 = vector.broadcast %cst_92 : f32 to vector<1x32xf32>
    %89 = arith.mulf %87, %88 : vector<1x32xf32>
    %90 = vector.broadcast %89 : vector<1x32xf32> to vector<88x32xf32>
    %91 = arith.subf %85, %90 : vector<88x32xf32>
    %92 = arith.mulf %91, %91 : vector<88x32xf32>
    %cst_93 = arith.constant dense<0.000000e+00> : vector<32xf32>
    %93 = vector.multi_reduction <add>, %92, %cst_93 [0] : vector<88x32xf32> to vector<32xf32>
    %94 = vector.shape_cast %93 : vector<32xf32> to vector<1x32xf32>
    %cst_94 = arith.constant 0.0113636367 : f32
    %95 = vector.broadcast %cst_94 : f32 to vector<1x32xf32>
    %96 = arith.mulf %94, %95 : vector<1x32xf32>
    %c2_95 = arith.constant 2 : index
    %c0_96 = arith.constant 0 : index
    %97 = vector.load %arg2[%c2_95, %c0_96] : memref<12x128xf32, #tpu.memory_space<vmem>>, vector<1x32xf32>
    %c3_97 = arith.constant 3 : index
    %c0_98 = arith.constant 0 : index
    %98 = vector.load %arg2[%c3_97, %c0_98] : memref<12x128xf32, #tpu.memory_space<vmem>>, vector<1x32xf32>
    %cst_99 = arith.constant 9.99999974E-6 : f32
    %99 = vector.broadcast %cst_99 : f32 to vector<1x32xf32>
    %100 = arith.addf %96, %99 : vector<1x32xf32>
    %101 = math.rsqrt %100 : vector<1x32xf32>
    %102 = arith.mulf %101, %97 : vector<1x32xf32>
    %103 = vector.broadcast %102 : vector<1x32xf32> to vector<88x32xf32>
    %104 = arith.mulf %91, %103 : vector<88x32xf32>
    %105 = vector.broadcast %98 : vector<1x32xf32> to vector<88x32xf32>
    %106 = arith.addf %104, %105 : vector<88x32xf32>
    %cst_100 = arith.constant 0.000000e+00 : f32
    %107 = vector.broadcast %cst_100 : f32 to vector<88x32xf32>
    %108 = arith.maximumf %106, %107 : vector<88x32xf32>
    %c0_101 = arith.constant 0 : index
    %c0_102 = arith.constant 0 : index
    %109 = vector.load %arg6[%c0_101, %c0_102] : memref<184x64xf32, #tpu.memory_space<vmem>>, vector<88x32xf32>
    tpu.vector_store %arg6[%c0_101, %c0_102], %108 {strides = array<i32>} : memref<184x64xf32, #tpu.memory_space<vmem>>, vector<88x32xf32>,
    %c0_103 = arith.constant 0 : index
    %c0_104 = arith.constant 0 : index
    %110 = tpu.strided_load %arg6[%c0_103, %c0_104] {strides = array<i32: 2, 1>} : memref<184x64xf32, #tpu.memory_space<vmem>>, vector<20x32xf32>
    %c1_105 = arith.constant 1 : index
    %c0_106 = arith.constant 0 : index
    %111 = tpu.strided_load %arg6[%c1_105, %c0_106] {strides = array<i32: 2, 1>} : memref<184x64xf32, #tpu.memory_space<vmem>>, vector<20x32xf32>
    %112 = arith.maximumf %110, %111 : vector<20x32xf32>
    %c0_107 = arith.constant 0 : index
    %c0_108 = arith.constant 0 : index
    %113 = vector.load %arg5[%c0_107, %c0_108] : memref<184x192xf32, #tpu.memory_space<vmem>>, vector<20x32xf32>
    tpu.vector_store %arg5[%c0_107, %c0_108], %112 {strides = array<i32>} : memref<184x192xf32, #tpu.memory_space<vmem>>, vector<20x32xf32>,
    %c2_109 = arith.constant 2 : index
    %c0_110 = arith.constant 0 : index
    %114 = tpu.strided_load %arg6[%c2_109, %c0_110] {strides = array<i32: 2, 1>} : memref<184x64xf32, #tpu.memory_space<vmem>>, vector<20x32xf32>
    %c3_111 = arith.constant 3 : index
    %c0_112 = arith.constant 0 : index
    %115 = tpu.strided_load %arg6[%c3_111, %c0_112] {strides = array<i32: 2, 1>} : memref<184x64xf32, #tpu.memory_space<vmem>>, vector<20x32xf32>
    %116 = arith.maximumf %114, %115 : vector<20x32xf32>
    %c0_113 = arith.constant 0 : index
    %c32_114 = arith.constant 32 : index
    %117 = vector.load %arg5[%c0_113, %c32_114] : memref<184x192xf32, #tpu.memory_space<vmem>>, vector<20x32xf32>
    tpu.vector_store %arg5[%c0_113, %c32_114], %116 {strides = array<i32>} : memref<184x192xf32, #tpu.memory_space<vmem>>, vector<20x32xf32>,
    %c4_115 = arith.constant 4 : index
    %c0_116 = arith.constant 0 : index
    %118 = tpu.strided_load %arg6[%c4_115, %c0_116] {strides = array<i32: 2, 1>} : memref<184x64xf32, #tpu.memory_space<vmem>>, vector<20x32xf32>
    %c5_117 = arith.constant 5 : index
    %c0_118 = arith.constant 0 : index
    %119 = tpu.strided_load %arg6[%c5_117, %c0_118] {strides = array<i32: 2, 1>} : memref<184x64xf32, #tpu.memory_space<vmem>>, vector<20x32xf32>
    %120 = arith.maximumf %118, %119 : vector<20x32xf32>
    %c0_119 = arith.constant 0 : index
    %c64_120 = arith.constant 64 : index
    %121 = vector.load %arg5[%c0_119, %c64_120] : memref<184x192xf32, #tpu.memory_space<vmem>>, vector<20x32xf32>
    tpu.vector_store %arg5[%c0_119, %c64_120], %120 {strides = array<i32>} : memref<184x192xf32, #tpu.memory_space<vmem>>, vector<20x32xf32>,
    %c44_121 = arith.constant 44 : index
    %c0_122 = arith.constant 0 : index
    %122 = tpu.strided_load %arg6[%c44_121, %c0_122] {strides = array<i32: 2, 1>} : memref<184x64xf32, #tpu.memory_space<vmem>>, vector<20x32xf32>
    %c45 = arith.constant 45 : index
    %c0_123 = arith.constant 0 : index
    %123 = tpu.strided_load %arg6[%c45, %c0_123] {strides = array<i32: 2, 1>} : memref<184x64xf32, #tpu.memory_space<vmem>>, vector<20x32xf32>
    %124 = arith.maximumf %122, %123 : vector<20x32xf32>
    %c20 = arith.constant 20 : index
    %c0_124 = arith.constant 0 : index
    %125 = vector.load %arg5[%c20, %c0_124] : memref<184x192xf32, #tpu.memory_space<vmem>>, vector<20x32xf32>
    tpu.vector_store %arg5[%c20, %c0_124], %124 {strides = array<i32>} : memref<184x192xf32, #tpu.memory_space<vmem>>, vector<20x32xf32>,
    %c46 = arith.constant 46 : index
    %c0_125 = arith.constant 0 : index
    %126 = tpu.strided_load %arg6[%c46, %c0_125] {strides = array<i32: 2, 1>} : memref<184x64xf32, #tpu.memory_space<vmem>>, vector<20x32xf32>
    %c47 = arith.constant 47 : index
    %c0_126 = arith.constant 0 : index
    %127 = tpu.strided_load %arg6[%c47, %c0_126] {strides = array<i32: 2, 1>} : memref<184x64xf32, #tpu.memory_space<vmem>>, vector<20x32xf32>
    %128 = arith.maximumf %126, %127 : vector<20x32xf32>
    %c20_127 = arith.constant 20 : index
    %c32_128 = arith.constant 32 : index
    %129 = vector.load %arg5[%c20_127, %c32_128] : memref<184x192xf32, #tpu.memory_space<vmem>>, vector<20x32xf32>
    tpu.vector_store %arg5[%c20_127, %c32_128], %128 {strides = array<i32>} : memref<184x192xf32, #tpu.memory_space<vmem>>, vector<20x32xf32>,
    %c48_129 = arith.constant 48 : index
    %c0_130 = arith.constant 0 : index
    %130 = tpu.strided_load %arg6[%c48_129, %c0_130] {strides = array<i32: 2, 1>} : memref<184x64xf32, #tpu.memory_space<vmem>>, vector<20x32xf32>
    %c49 = arith.constant 49 : index
    %c0_131 = arith.constant 0 : index
    %131 = tpu.strided_load %arg6[%c49, %c0_131] {strides = array<i32: 2, 1>} : memref<184x64xf32, #tpu.memory_space<vmem>>, vector<20x32xf32>
    %132 = arith.maximumf %130, %131 : vector<20x32xf32>
    %c20_132 = arith.constant 20 : index
    %c64_133 = arith.constant 64 : index
    %133 = vector.load %arg5[%c20_132, %c64_133] : memref<184x192xf32, #tpu.memory_space<vmem>>, vector<20x32xf32>
    tpu.vector_store %arg5[%c20_132, %c64_133], %132 {strides = array<i32>} : memref<184x192xf32, #tpu.memory_space<vmem>>, vector<20x32xf32>,
    %c0_134 = arith.constant 0 : index
    %c0_135 = arith.constant 0 : index
    %134 = vector.load %arg5[%c0_134, %c0_135] : memref<184x192xf32, #tpu.memory_space<vmem>>, vector<40x96xf32>
    %c176 = arith.constant 176 : index
    %c0_136 = arith.constant 0 : index
    %135 = vector.load %arg1[%c176, %c0_136] : memref<820x128xf32, #tpu.memory_space<vmem>>, vector<96x64xf32>
    %cst_137 = arith.constant dense<0.000000e+00> : vector<40x64xf32>
    %136 = tpu.matmul %134, %135, %cst_137 {dimension_numbers = #tpu.dot_dimension_numbers<[1], [0], [0], [1], [0, 0, 1, 1], [], []>} : vector<40x96xf32>, vector<96x64xf32>, vector<40x64xf32> -> vector<40x64xf32>
    %cst_138 = arith.constant dense<0.000000e+00> : vector<64xf32>
    %137 = vector.multi_reduction <add>, %136, %cst_138 [0] : vector<40x64xf32> to vector<64xf32>
    %138 = vector.shape_cast %137 : vector<64xf32> to vector<1x64xf32>
    %cst_139 = arith.constant 2.500000e-02 : f32
    %139 = vector.broadcast %cst_139 : f32 to vector<1x64xf32>
    %140 = arith.mulf %138, %139 : vector<1x64xf32>
    %141 = vector.broadcast %140 : vector<1x64xf32> to vector<40x64xf32>
    %142 = arith.subf %136, %141 : vector<40x64xf32>
    %143 = arith.mulf %142, %142 : vector<40x64xf32>
    %cst_140 = arith.constant dense<0.000000e+00> : vector<64xf32>
    %144 = vector.multi_reduction <add>, %143, %cst_140 [0] : vector<40x64xf32> to vector<64xf32>
    %145 = vector.shape_cast %144 : vector<64xf32> to vector<1x64xf32>
    %cst_141 = arith.constant 2.500000e-02 : f32
    %146 = vector.broadcast %cst_141 : f32 to vector<1x64xf32>
    %147 = arith.mulf %145, %146 : vector<1x64xf32>
    %c4_142 = arith.constant 4 : index
    %c0_143 = arith.constant 0 : index
    %148 = vector.load %arg2[%c4_142, %c0_143] : memref<12x128xf32, #tpu.memory_space<vmem>>, vector<1x64xf32>
    %c5_144 = arith.constant 5 : index
    %c0_145 = arith.constant 0 : index
    %149 = vector.load %arg2[%c5_144, %c0_145] : memref<12x128xf32, #tpu.memory_space<vmem>>, vector<1x64xf32>
    %cst_146 = arith.constant 9.99999974E-6 : f32
    %150 = vector.broadcast %cst_146 : f32 to vector<1x64xf32>
    %151 = arith.addf %147, %150 : vector<1x64xf32>
    %152 = math.rsqrt %151 : vector<1x64xf32>
    %153 = arith.mulf %152, %148 : vector<1x64xf32>
    %154 = vector.broadcast %153 : vector<1x64xf32> to vector<40x64xf32>
    %155 = arith.mulf %142, %154 : vector<40x64xf32>
    %156 = vector.broadcast %149 : vector<1x64xf32> to vector<40x64xf32>
    %157 = arith.addf %155, %156 : vector<40x64xf32>
    %cst_147 = arith.constant 0.000000e+00 : f32
    %158 = vector.broadcast %cst_147 : f32 to vector<40x64xf32>
    %159 = arith.maximumf %157, %158 : vector<40x64xf32>
    %c0_148 = arith.constant 0 : index
    %c0_149 = arith.constant 0 : index
    %160 = vector.load %arg6[%c0_148, %c0_149] : memref<184x64xf32, #tpu.memory_space<vmem>>, vector<40x64xf32>
    tpu.vector_store %arg6[%c0_148, %c0_149], %159 {strides = array<i32>} : memref<184x64xf32, #tpu.memory_space<vmem>>, vector<40x64xf32>,
    %c0_150 = arith.constant 0 : index
    %c0_151 = arith.constant 0 : index
    %161 = tpu.strided_load %arg6[%c0_150, %c0_151] {strides = array<i32: 2, 1>} : memref<184x64xf32, #tpu.memory_space<vmem>>, vector<8x64xf32>
    %c1_152 = arith.constant 1 : index
    %c0_153 = arith.constant 0 : index
    %162 = tpu.strided_load %arg6[%c1_152, %c0_153] {strides = array<i32: 2, 1>} : memref<184x64xf32, #tpu.memory_space<vmem>>, vector<8x64xf32>
    %163 = arith.maximumf %161, %162 : vector<8x64xf32>
    %c0_154 = arith.constant 0 : index
    %c0_155 = arith.constant 0 : index
    %164 = vector.load %arg5[%c0_154, %c0_155] : memref<184x192xf32, #tpu.memory_space<vmem>>, vector<8x64xf32>
    tpu.vector_store %arg5[%c0_154, %c0_155], %163 {strides = array<i32>} : memref<184x192xf32, #tpu.memory_space<vmem>>, vector<8x64xf32>,
    %c2_156 = arith.constant 2 : index
    %c0_157 = arith.constant 0 : index
    %165 = tpu.strided_load %arg6[%c2_156, %c0_157] {strides = array<i32: 2, 1>} : memref<184x64xf32, #tpu.memory_space<vmem>>, vector<8x64xf32>
    %c3_158 = arith.constant 3 : index
    %c0_159 = arith.constant 0 : index
    %166 = tpu.strided_load %arg6[%c3_158, %c0_159] {strides = array<i32: 2, 1>} : memref<184x64xf32, #tpu.memory_space<vmem>>, vector<8x64xf32>
    %167 = arith.maximumf %165, %166 : vector<8x64xf32>
    %c0_160 = arith.constant 0 : index
    %c64_161 = arith.constant 64 : index
    %168 = vector.load %arg5[%c0_160, %c64_161] : memref<184x192xf32, #tpu.memory_space<vmem>>, vector<8x64xf32>
    tpu.vector_store %arg5[%c0_160, %c64_161], %167 {strides = array<i32>} : memref<184x192xf32, #tpu.memory_space<vmem>>, vector<8x64xf32>,
    %c4_162 = arith.constant 4 : index
    %c0_163 = arith.constant 0 : index
    %169 = tpu.strided_load %arg6[%c4_162, %c0_163] {strides = array<i32: 2, 1>} : memref<184x64xf32, #tpu.memory_space<vmem>>, vector<8x64xf32>
    %c5_164 = arith.constant 5 : index
    %c0_165 = arith.constant 0 : index
    %170 = tpu.strided_load %arg6[%c5_164, %c0_165] {strides = array<i32: 2, 1>} : memref<184x64xf32, #tpu.memory_space<vmem>>, vector<8x64xf32>
    %171 = arith.maximumf %169, %170 : vector<8x64xf32>
    %c0_166 = arith.constant 0 : index
    %c128_167 = arith.constant 128 : index
    %172 = vector.load %arg5[%c0_166, %c128_167] : memref<184x192xf32, #tpu.memory_space<vmem>>, vector<8x64xf32>
    tpu.vector_store %arg5[%c0_166, %c128_167], %171 {strides = array<i32>} : memref<184x192xf32, #tpu.memory_space<vmem>>, vector<8x64xf32>,
    %c20_168 = arith.constant 20 : index
    %c0_169 = arith.constant 0 : index
    %173 = tpu.strided_load %arg6[%c20_168, %c0_169] {strides = array<i32: 2, 1>} : memref<184x64xf32, #tpu.memory_space<vmem>>, vector<8x64xf32>
    %c21 = arith.constant 21 : index
    %c0_170 = arith.constant 0 : index
    %174 = tpu.strided_load %arg6[%c21, %c0_170] {strides = array<i32: 2, 1>} : memref<184x64xf32, #tpu.memory_space<vmem>>, vector<8x64xf32>
    %175 = arith.maximumf %173, %174 : vector<8x64xf32>
    %c8 = arith.constant 8 : index
    %c0_171 = arith.constant 0 : index
    %176 = vector.load %arg5[%c8, %c0_171] : memref<184x192xf32, #tpu.memory_space<vmem>>, vector<8x64xf32>
    tpu.vector_store %arg5[%c8, %c0_171], %175 {strides = array<i32>} : memref<184x192xf32, #tpu.memory_space<vmem>>, vector<8x64xf32>,
    %c22 = arith.constant 22 : index
    %c0_172 = arith.constant 0 : index
    %177 = tpu.strided_load %arg6[%c22, %c0_172] {strides = array<i32: 2, 1>} : memref<184x64xf32, #tpu.memory_space<vmem>>, vector<8x64xf32>
    %c23 = arith.constant 23 : index
    %c0_173 = arith.constant 0 : index
    %178 = tpu.strided_load %arg6[%c23, %c0_173] {strides = array<i32: 2, 1>} : memref<184x64xf32, #tpu.memory_space<vmem>>, vector<8x64xf32>
    %179 = arith.maximumf %177, %178 : vector<8x64xf32>
    %c8_174 = arith.constant 8 : index
    %c64_175 = arith.constant 64 : index
    %180 = vector.load %arg5[%c8_174, %c64_175] : memref<184x192xf32, #tpu.memory_space<vmem>>, vector<8x64xf32>
    tpu.vector_store %arg5[%c8_174, %c64_175], %179 {strides = array<i32>} : memref<184x192xf32, #tpu.memory_space<vmem>>, vector<8x64xf32>,
    %c24 = arith.constant 24 : index
    %c0_176 = arith.constant 0 : index
    %181 = tpu.strided_load %arg6[%c24, %c0_176] {strides = array<i32: 2, 1>} : memref<184x64xf32, #tpu.memory_space<vmem>>, vector<8x64xf32>
    %c25 = arith.constant 25 : index
    %c0_177 = arith.constant 0 : index
    %182 = tpu.strided_load %arg6[%c25, %c0_177] {strides = array<i32: 2, 1>} : memref<184x64xf32, #tpu.memory_space<vmem>>, vector<8x64xf32>
    %183 = arith.maximumf %181, %182 : vector<8x64xf32>
    %c8_178 = arith.constant 8 : index
    %c128_179 = arith.constant 128 : index
    %184 = vector.load %arg5[%c8_178, %c128_179] : memref<184x192xf32, #tpu.memory_space<vmem>>, vector<8x64xf32>
    tpu.vector_store %arg5[%c8_178, %c128_179], %183 {strides = array<i32>} : memref<184x192xf32, #tpu.memory_space<vmem>>, vector<8x64xf32>,
    %c0_180 = arith.constant 0 : index
    %c0_181 = arith.constant 0 : index
    %185 = vector.load %arg5[%c0_180, %c0_181] : memref<184x192xf32, #tpu.memory_space<vmem>>, vector<16x192xf32>
    %c272 = arith.constant 272 : index
    %c0_182 = arith.constant 0 : index
    %186 = vector.load %arg1[%c272, %c0_182] : memref<820x128xf32, #tpu.memory_space<vmem>>, vector<192x64xf32>
    %cst_183 = arith.constant dense<0.000000e+00> : vector<16x64xf32>
    %187 = tpu.matmul %185, %186, %cst_183 {dimension_numbers = #tpu.dot_dimension_numbers<[1], [0], [0], [1], [0, 0, 1, 1], [], []>} : vector<16x192xf32>, vector<192x64xf32>, vector<16x64xf32> -> vector<16x64xf32>
    %cst_184 = arith.constant dense<0.000000e+00> : vector<64xf32>
    %188 = vector.multi_reduction <add>, %187, %cst_184 [0] : vector<16x64xf32> to vector<64xf32>
    %189 = vector.shape_cast %188 : vector<64xf32> to vector<1x64xf32>
    %cst_185 = arith.constant 6.250000e-02 : f32
    %190 = vector.broadcast %cst_185 : f32 to vector<1x64xf32>
    %191 = arith.mulf %189, %190 : vector<1x64xf32>
    %192 = vector.broadcast %191 : vector<1x64xf32> to vector<16x64xf32>
    %193 = arith.subf %187, %192 : vector<16x64xf32>
    %194 = arith.mulf %193, %193 : vector<16x64xf32>
    %cst_186 = arith.constant dense<0.000000e+00> : vector<64xf32>
    %195 = vector.multi_reduction <add>, %194, %cst_186 [0] : vector<16x64xf32> to vector<64xf32>
    %196 = vector.shape_cast %195 : vector<64xf32> to vector<1x64xf32>
    %cst_187 = arith.constant 6.250000e-02 : f32
    %197 = vector.broadcast %cst_187 : f32 to vector<1x64xf32>
    %198 = arith.mulf %196, %197 : vector<1x64xf32>
    %c6_188 = arith.constant 6 : index
    %c0_189 = arith.constant 0 : index
    %199 = vector.load %arg2[%c6_188, %c0_189] : memref<12x128xf32, #tpu.memory_space<vmem>>, vector<1x64xf32>
    %c7_190 = arith.constant 7 : index
    %c0_191 = arith.constant 0 : index
    %200 = vector.load %arg2[%c7_190, %c0_191] : memref<12x128xf32, #tpu.memory_space<vmem>>, vector<1x64xf32>
    %cst_192 = arith.constant 9.99999974E-6 : f32
    %201 = vector.broadcast %cst_192 : f32 to vector<1x64xf32>
    %202 = arith.addf %198, %201 : vector<1x64xf32>
    %203 = math.rsqrt %202 : vector<1x64xf32>
    %204 = arith.mulf %203, %199 : vector<1x64xf32>
    %205 = vector.broadcast %204 : vector<1x64xf32> to vector<16x64xf32>
    %206 = arith.mulf %193, %205 : vector<16x64xf32>
    %207 = vector.broadcast %200 : vector<1x64xf32> to vector<16x64xf32>
    %208 = arith.addf %206, %207 : vector<16x64xf32>
    %cst_193 = arith.constant 0.000000e+00 : f32
    %209 = vector.broadcast %cst_193 : f32 to vector<16x64xf32>
    %210 = arith.maximumf %208, %209 : vector<16x64xf32>
    %c0_194 = arith.constant 0 : index
    %c0_195 = arith.constant 0 : index
    %211 = vector.load %arg6[%c0_194, %c0_195] : memref<184x64xf32, #tpu.memory_space<vmem>>, vector<16x64xf32>
    tpu.vector_store %arg6[%c0_194, %c0_195], %210 {strides = array<i32>} : memref<184x64xf32, #tpu.memory_space<vmem>>, vector<16x64xf32>,
    %c0_196 = arith.constant 0 : index
    %c0_197 = arith.constant 0 : index
    %212 = tpu.strided_load %arg6[%c0_196, %c0_197] {strides = array<i32: 2, 1>} : memref<184x64xf32, #tpu.memory_space<vmem>>, vector<2x64xf32>
    %c1_198 = arith.constant 1 : index
    %c0_199 = arith.constant 0 : index
    %213 = tpu.strided_load %arg6[%c1_198, %c0_199] {strides = array<i32: 2, 1>} : memref<184x64xf32, #tpu.memory_space<vmem>>, vector<2x64xf32>
    %214 = arith.maximumf %212, %213 : vector<2x64xf32>
    %c0_200 = arith.constant 0 : index
    %c0_201 = arith.constant 0 : index
    %215 = vector.load %arg5[%c0_200, %c0_201] : memref<184x192xf32, #tpu.memory_space<vmem>>, vector<2x64xf32>
    tpu.vector_store %arg5[%c0_200, %c0_201], %214 {strides = array<i32>} : memref<184x192xf32, #tpu.memory_space<vmem>>, vector<2x64xf32>,
    %c2_202 = arith.constant 2 : index
    %c0_203 = arith.constant 0 : index
    %216 = tpu.strided_load %arg6[%c2_202, %c0_203] {strides = array<i32: 2, 1>} : memref<184x64xf32, #tpu.memory_space<vmem>>, vector<2x64xf32>
    %c3_204 = arith.constant 3 : index
    %c0_205 = arith.constant 0 : index
    %217 = tpu.strided_load %arg6[%c3_204, %c0_205] {strides = array<i32: 2, 1>} : memref<184x64xf32, #tpu.memory_space<vmem>>, vector<2x64xf32>
    %218 = arith.maximumf %216, %217 : vector<2x64xf32>
    %c0_206 = arith.constant 0 : index
    %c64_207 = arith.constant 64 : index
    %219 = vector.load %arg5[%c0_206, %c64_207] : memref<184x192xf32, #tpu.memory_space<vmem>>, vector<2x64xf32>
    tpu.vector_store %arg5[%c0_206, %c64_207], %218 {strides = array<i32>} : memref<184x192xf32, #tpu.memory_space<vmem>>, vector<2x64xf32>,
    %c4_208 = arith.constant 4 : index
    %c0_209 = arith.constant 0 : index
    %220 = tpu.strided_load %arg6[%c4_208, %c0_209] {strides = array<i32: 2, 1>} : memref<184x64xf32, #tpu.memory_space<vmem>>, vector<2x64xf32>
    %c5_210 = arith.constant 5 : index
    %c0_211 = arith.constant 0 : index
    %221 = tpu.strided_load %arg6[%c5_210, %c0_211] {strides = array<i32: 2, 1>} : memref<184x64xf32, #tpu.memory_space<vmem>>, vector<2x64xf32>
    %222 = arith.maximumf %220, %221 : vector<2x64xf32>
    %c0_212 = arith.constant 0 : index
    %c128_213 = arith.constant 128 : index
    %223 = vector.load %arg5[%c0_212, %c128_213] : memref<184x192xf32, #tpu.memory_space<vmem>>, vector<2x64xf32>
    tpu.vector_store %arg5[%c0_212, %c128_213], %222 {strides = array<i32>} : memref<184x192xf32, #tpu.memory_space<vmem>>, vector<2x64xf32>,
    %c8_214 = arith.constant 8 : index
    %c0_215 = arith.constant 0 : index
    %224 = tpu.strided_load %arg6[%c8_214, %c0_215] {strides = array<i32: 2, 1>} : memref<184x64xf32, #tpu.memory_space<vmem>>, vector<2x64xf32>
    %c9 = arith.constant 9 : index
    %c0_216 = arith.constant 0 : index
    %225 = tpu.strided_load %arg6[%c9, %c0_216] {strides = array<i32: 2, 1>} : memref<184x64xf32, #tpu.memory_space<vmem>>, vector<2x64xf32>
    %226 = arith.maximumf %224, %225 : vector<2x64xf32>
    %c2_217 = arith.constant 2 : index
    %c0_218 = arith.constant 0 : index
    %227 = vector.load %arg5[%c2_217, %c0_218] : memref<184x192xf32, #tpu.memory_space<vmem>>, vector<2x64xf32>
    tpu.vector_store %arg5[%c2_217, %c0_218], %226 {strides = array<i32>} : memref<184x192xf32, #tpu.memory_space<vmem>>, vector<2x64xf32>,
    %c10 = arith.constant 10 : index
    %c0_219 = arith.constant 0 : index
    %228 = tpu.strided_load %arg6[%c10, %c0_219] {strides = array<i32: 2, 1>} : memref<184x64xf32, #tpu.memory_space<vmem>>, vector<2x64xf32>
    %c11 = arith.constant 11 : index
    %c0_220 = arith.constant 0 : index
    %229 = tpu.strided_load %arg6[%c11, %c0_220] {strides = array<i32: 2, 1>} : memref<184x64xf32, #tpu.memory_space<vmem>>, vector<2x64xf32>
    %230 = arith.maximumf %228, %229 : vector<2x64xf32>
    %c2_221 = arith.constant 2 : index
    %c64_222 = arith.constant 64 : index
    %231 = vector.load %arg5[%c2_221, %c64_222] : memref<184x192xf32, #tpu.memory_space<vmem>>, vector<2x64xf32>
    tpu.vector_store %arg5[%c2_221, %c64_222], %230 {strides = array<i32>} : memref<184x192xf32, #tpu.memory_space<vmem>>, vector<2x64xf32>,
    %c12 = arith.constant 12 : index
    %c0_223 = arith.constant 0 : index
    %232 = tpu.strided_load %arg6[%c12, %c0_223] {strides = array<i32: 2, 1>} : memref<184x64xf32, #tpu.memory_space<vmem>>, vector<2x64xf32>
    %c13 = arith.constant 13 : index
    %c0_224 = arith.constant 0 : index
    %233 = tpu.strided_load %arg6[%c13, %c0_224] {strides = array<i32: 2, 1>} : memref<184x64xf32, #tpu.memory_space<vmem>>, vector<2x64xf32>
    %234 = arith.maximumf %232, %233 : vector<2x64xf32>
    %c2_225 = arith.constant 2 : index
    %c128_226 = arith.constant 128 : index
    %235 = vector.load %arg5[%c2_225, %c128_226] : memref<184x192xf32, #tpu.memory_space<vmem>>, vector<2x64xf32>
    tpu.vector_store %arg5[%c2_225, %c128_226], %234 {strides = array<i32>} : memref<184x192xf32, #tpu.memory_space<vmem>>, vector<2x64xf32>,
    %c0_227 = arith.constant 0 : index
    %c0_228 = arith.constant 0 : index
    %236 = vector.load %arg5[%c0_227, %c0_228] : memref<184x192xf32, #tpu.memory_space<vmem>>, vector<4x192xf32>
    %c464 = arith.constant 464 : index
    %c0_229 = arith.constant 0 : index
    %237 = vector.load %arg1[%c464, %c0_229] : memref<820x128xf32, #tpu.memory_space<vmem>>, vector<192x64xf32>
    %cst_230 = arith.constant dense<0.000000e+00> : vector<4x64xf32>
    %238 = tpu.matmul %236, %237, %cst_230 {dimension_numbers = #tpu.dot_dimension_numbers<[1], [0], [0], [1], [0, 0, 1, 1], [], []>} : vector<4x192xf32>, vector<192x64xf32>, vector<4x64xf32> -> vector<4x64xf32>
    %cst_231 = arith.constant dense<0.000000e+00> : vector<64xf32>
    %239 = vector.multi_reduction <add>, %238, %cst_231 [0] : vector<4x64xf32> to vector<64xf32>
    %240 = vector.shape_cast %239 : vector<64xf32> to vector<1x64xf32>
    %cst_232 = arith.constant 2.500000e-01 : f32
    %241 = vector.broadcast %cst_232 : f32 to vector<1x64xf32>
    %242 = arith.mulf %240, %241 : vector<1x64xf32>
    %243 = vector.broadcast %242 : vector<1x64xf32> to vector<4x64xf32>
    %244 = arith.subf %238, %243 : vector<4x64xf32>
    %245 = arith.mulf %244, %244 : vector<4x64xf32>
    %cst_233 = arith.constant dense<0.000000e+00> : vector<64xf32>
    %246 = vector.multi_reduction <add>, %245, %cst_233 [0] : vector<4x64xf32> to vector<64xf32>
    %247 = vector.shape_cast %246 : vector<64xf32> to vector<1x64xf32>
    %cst_234 = arith.constant 2.500000e-01 : f32
    %248 = vector.broadcast %cst_234 : f32 to vector<1x64xf32>
    %249 = arith.mulf %247, %248 : vector<1x64xf32>
    %c8_235 = arith.constant 8 : index
    %c0_236 = arith.constant 0 : index
    %250 = vector.load %arg2[%c8_235, %c0_236] : memref<12x128xf32, #tpu.memory_space<vmem>>, vector<1x64xf32>
    %c9_237 = arith.constant 9 : index
    %c0_238 = arith.constant 0 : index
    %251 = vector.load %arg2[%c9_237, %c0_238] : memref<12x128xf32, #tpu.memory_space<vmem>>, vector<1x64xf32>
    %cst_239 = arith.constant 9.99999974E-6 : f32
    %252 = vector.broadcast %cst_239 : f32 to vector<1x64xf32>
    %253 = arith.addf %249, %252 : vector<1x64xf32>
    %254 = math.rsqrt %253 : vector<1x64xf32>
    %255 = arith.mulf %254, %250 : vector<1x64xf32>
    %256 = vector.broadcast %255 : vector<1x64xf32> to vector<4x64xf32>
    %257 = arith.mulf %244, %256 : vector<4x64xf32>
    %258 = vector.broadcast %251 : vector<1x64xf32> to vector<4x64xf32>
    %259 = arith.addf %257, %258 : vector<4x64xf32>
    %cst_240 = arith.constant 0.000000e+00 : f32
    %260 = vector.broadcast %cst_240 : f32 to vector<4x64xf32>
    %261 = arith.maximumf %259, %260 : vector<4x64xf32>
    %c0_241 = arith.constant 0 : index
    %c0_242 = arith.constant 0 : index
    %262 = vector.load %arg6[%c0_241, %c0_242] : memref<184x64xf32, #tpu.memory_space<vmem>>, vector<4x64xf32>
    tpu.vector_store %arg6[%c0_241, %c0_242], %261 {strides = array<i32>} : memref<184x64xf32, #tpu.memory_space<vmem>>, vector<4x64xf32>,
    %c0_243 = arith.constant 0 : index
    %c0_244 = arith.constant 0 : index
    %263 = tpu.strided_load %arg6[%c0_243, %c0_244] {strides = array<i32: 2, 1>} : memref<184x64xf32, #tpu.memory_space<vmem>>, vector<2x64xf32>
    %c1_245 = arith.constant 1 : index
    %c0_246 = arith.constant 0 : index
    %264 = tpu.strided_load %arg6[%c1_245, %c0_246] {strides = array<i32: 2, 1>} : memref<184x64xf32, #tpu.memory_space<vmem>>, vector<2x64xf32>
    %265 = arith.maximumf %263, %264 : vector<2x64xf32>
    %c656 = arith.constant 656 : index
    %c0_247 = arith.constant 0 : index
    %266 = vector.load %arg1[%c656, %c0_247] : memref<820x128xf32, #tpu.memory_space<vmem>>, vector<64x100xf32>
    %c10_248 = arith.constant 10 : index
    %c0_249 = arith.constant 0 : index
    %267 = vector.load %arg2[%c10_248, %c0_249] : memref<12x128xf32, #tpu.memory_space<vmem>>, vector<1x100xf32>
    %cst_250 = arith.constant dense<0.000000e+00> : vector<2x100xf32>
    %268 = tpu.matmul %265, %266, %cst_250 {dimension_numbers = #tpu.dot_dimension_numbers<[1], [0], [0], [1], [0, 0, 1, 1], [], []>} : vector<2x64xf32>, vector<64x100xf32>, vector<2x100xf32> -> vector<2x100xf32>
    %269 = vector.broadcast %267 : vector<1x100xf32> to vector<2x100xf32>
    %270 = arith.addf %268, %269 : vector<2x100xf32>
    %cst_251 = arith.constant 0.000000e+00 : f32
    %271 = vector.broadcast %cst_251 : f32 to vector<2x100xf32>
    %272 = arith.maximumf %270, %271 : vector<2x100xf32>
    %c0_252 = arith.constant 0 : index
    %c0_253 = arith.constant 0 : index
    %273 = vector.load %arg4[%c0_252, %c0_253] : memref<2x100xf32, #tpu.memory_space<vmem>>, vector<2x100xf32>
    tpu.vector_store %arg4[%c0_252, %c0_253], %272 {strides = array<i32>} : memref<2x100xf32, #tpu.memory_space<vmem>>, vector<2x100xf32>,
    %c720 = arith.constant 720 : index
    %c0_254 = arith.constant 0 : index
    %274 = vector.load %arg1[%c720, %c0_254] : memref<820x128xf32, #tpu.memory_space<vmem>>, vector<100x4xf32>
    %c11_255 = arith.constant 11 : index
    %c0_256 = arith.constant 0 : index
    %275 = vector.load %arg2[%c11_255, %c0_256] : memref<12x128xf32, #tpu.memory_space<vmem>>, vector<1x4xf32>
    %cst_257 = arith.constant dense<0.000000e+00> : vector<2x4xf32>
    %276 = tpu.matmul %272, %274, %cst_257 {dimension_numbers = #tpu.dot_dimension_numbers<[1], [0], [0], [1], [0, 0, 1, 1], [], []>} : vector<2x100xf32>, vector<100x4xf32>, vector<2x4xf32> -> vector<2x4xf32>
    %277 = vector.broadcast %275 : vector<1x4xf32> to vector<2x4xf32>
    %278 = arith.addf %276, %277 : vector<2x4xf32>
    %c0_258 = arith.constant 0 : index
    %c0_259 = arith.constant 0 : index
    %279 = vector.load %arg3[%c0_258, %c0_259] : memref<2x4xf32, #tpu.memory_space<vmem>>, vector<2x4xf32>
    tpu.vector_store %arg3[%c0_258, %c0_259], %278 {strides = array<i32>} : memref<2x4xf32, #tpu.memory_space<vmem>>, vector<2x4xf32>,
    return
  }
}

</mosaic_0001>

<llo_original>
// kernel: my_cnn1d_forward.1
$region0: #{my_cnn1d_forward.1}
  #allocation0 [shape = 'u32[]', space=smem, size = 0x4, offset = 0x4, fixed_abs, tag = 'smem constant byte address 0x4 - core index']
  #allocation1 [shape = 'u32[72,128]{1,0:T(1,128)}', space=vmem, size = 0x9000, scoped, tag = 'internal scratch']
  #allocation2 [shape = 'f32[184,192]{1,0:T(8,128)}', space=vmem, size = 0x2e000, scoped, tag = 'scratch operand']
  #allocation3 [shape = 'f32[184,64]{1,0:T(8,128)}', space=vmem, size = 0x17000, scoped, tag = 'scratch operand']
  %s0 = inlined_call_operand.vmem [shape: f32[198,16], index: 0, kind: input, shape index: {}]
  %s1 = inlined_call_operand.hbm [shape: f32[820,128], index: 1, kind: input, shape index: {}]
  %s2 = inlined_call_operand.vmem [shape: f32[12,128], index: 2, kind: input, shape index: {}]
  %s3 = inlined_call_operand.hbm [shape: f32[2,4], index: 3, kind: output, shape index: {0}]
  %s4 = inlined_call_operand.hbm [shape: f32[2,100], index: 4, kind: output, shape index: {1}]
  %5 = xla_tuple %s3, %s4
  %s6 = sld [smem:[#allocation0]]
  $region34: #{my_cnn1d_forward.1} parent=0
    _
  %s8 = ssub.s32 1, %s6
  %s9 = scalar_select 0, %s8, %s6
  $region1: #{my_cnn1d_forward.1} parent=0
    #allocation4 [shape = 'u8[421888]{0}', space=vmem, size = 0x67000, scoped, tag = 'input window, operand 1, single buffered']
    #allocation5 [shape = 's32[1]{0}', space=sflag, size = 0x4, scoped, tag = 'scoped memory for my_cnn1d_forward.1']
    #allocation6 [shape = 's32[1]{0}', space=sflag, size = 0x4, scoped, tag = 'scoped memory for my_cnn1d_forward.1']
    #allocation7 [shape = 'u8[1024]{0}', space=vmem, size = 0x400, scoped, tag = 'output window, operand 0, single buffered']
    #allocation8 [shape = 'u8[1024]{0}', space=vmem, size = 0x400, scoped, tag = 'output window, operand 1, single buffered']
    #allocation9 [shape = 's32[1]{0}', space=sflag, size = 0x4, scoped, tag = 'scoped memory for my_cnn1d_forward.1']
    %10 = vsyncpa [#allocation5], 0
    %11 = vsyncpa [#allocation6], 0
    %12 = vsyncpa [#allocation9], 0
    // Predicated region
    $region2: #{my_cnn1d_forward.1} parent=1 // pred_check
      _
    $region3: #{my_cnn1d_forward.1} parent=1 // pred_check_branch
      %14 = sbr.rel (0) target = $region5
    $region4: #{my_cnn1d_forward.1} parent=1 // pred_region
      _
    $region5: #{my_cnn1d_forward.1} parent=1 // pred_fallthru
      _
    // Predicated region
    $region6: #{my_cnn1d_forward.1} parent=1 // pred_check
      _
    $region7: #{my_cnn1d_forward.1} parent=1 // pred_check_branch
      %16 = sbr.rel (0) target = $region9
    $region8: #{my_cnn1d_forward.1} parent=1 // pred_region
      %18 = vsyncadd [#allocation5], 0
      %s19 = sshll.u32 %s1, 4
      %s20 = int_to_ptr.hbm [resolvable:$true] %s19
      %s21 = sshll.u32 [#allocation4], 4
      %s22 = int_to_ptr.vmem [resolvable:$true] %s21
      %27 = dma.hbm_to_vmem [thread:$0]  %s20, 13184, %s22, [#allocation5], 128, 128, 8
    $region9: #{my_cnn1d_forward.1} parent=1 // pred_fallthru
      _
    // Predicated region
    $region10: #{my_cnn1d_forward.1} parent=1 // pred_check
      _
    $region11: #{my_cnn1d_forward.1} parent=1 // pred_check_branch
      %29 = sbr.rel (0) target = $region13
    $region12: #{my_cnn1d_forward.1} parent=1 // pred_region
      _
    $region13: #{my_cnn1d_forward.1} parent=1 // pred_fallthru
      _
    // Predicated region
    $region14: #{my_cnn1d_forward.1} parent=1 // pred_check
      _
    $region15: #{my_cnn1d_forward.1} parent=1 // pred_check_branch
      %31 = sbr.rel (0) target = $region17
    $region16: #{my_cnn1d_forward.1} parent=1 // pred_region
      %33 = dma.done [#allocation5], 13184
    $region17: #{my_cnn1d_forward.1} parent=1 // pred_fallthru
      _
    %v34 = vld [vmem:[%s0] sm:$0xff]
    %v35 = vld [vmem:[%s0 + $0x8] sm:$0xff]
    %v36 = vld [vmem:[%s0 + $0x10] sm:$0xff]
    %v37 = vld [vmem:[%s0 + $0x18] sm:$0xff]
    %v38 = vld [vmem:[%s0 + $0x20] sm:$0xff]
    %v39 = vld [vmem:[%s0 + $0x28] sm:$0xff]
    %v40 = vld [vmem:[%s0 + $0x30] sm:$0xff]
    %v41 = vld [vmem:[%s0 + $0x38] sm:$0xff]
    %v42 = vld [vmem:[%s0 + $0x40] sm:$0xff]
    %v43 = vld [vmem:[%s0 + $0x48] sm:$0xff]
    %v44 = vld [vmem:[%s0 + $0x50] sm:$0xff]
    %v45 = vld [vmem:[%s0 + $0x58] sm:$0xf]
    %vm46 = vcmask 130048
    %47 = vst.msk [vmem:[#allocation2] sm:$0xff] %vm46, %v34
    %48 = vst.msk [vmem:[#allocation2 + $0x10] sm:$0xff] %vm46, %v35
    %49 = vst.msk [vmem:[#allocation2 + $0x20] sm:$0xff] %vm46, %v36
    %50 = vst.msk [vmem:[#allocation2 + $0x30] sm:$0xff] %vm46, %v37
    %51 = vst.msk [vmem:[#allocation2 + $0x40] sm:$0xff] %vm46, %v38
    %52 = vst.msk [vmem:[#allocation2 + $0x50] sm:$0xff] %vm46, %v39
    %53 = vst.msk [vmem:[#allocation2 + $0x60] sm:$0xff] %vm46, %v40
    %54 = vst.msk [vmem:[#allocation2 + $0x70] sm:$0xff] %vm46, %v41
    %55 = vst.msk [vmem:[#allocation2 + $0x80] sm:$0xff] %vm46, %v42
    %56 = vst.msk [vmem:[#allocation2 + $0x90] sm:$0xff] %vm46, %v43
    %57 = vst.msk [vmem:[#allocation2 + $0xa0] sm:$0xff] %vm46, %v44
    %vm58 = vcmask 125952
    %59 = vst.msk [vmem:[#allocation2 + $0xb0] sm:$0xf] %vm58, %v45
    %v60 = vld [vmem:[%s0 + $0x1] sm:$0xff]
    %v61 = vld [vmem:[%s0 + $0x9] sm:$0xff]
    %v62 = vld [vmem:[%s0 + $0x11] sm:$0xff]
    %v63 = vld [vmem:[%s0 + $0x19] sm:$0xff]
    %v64 = vld [vmem:[%s0 + $0x21] sm:$0xff]
    %v65 = vld [vmem:[%s0 + $0x29] sm:$0xff]
    %v66 = vld [vmem:[%s0 + $0x31] sm:$0xff]
    %v67 = vld [vmem:[%s0 + $0x39] sm:$0xff]
    %v68 = vld [vmem:[%s0 + $0x41] sm:$0xff]
    %v69 = vld [vmem:[%s0 + $0x49] sm:$0xff]
    %v70 = vld [vmem:[%s0 + $0x51] sm:$0xff]
    %v71 = vld [vmem:[%s0 + $0x59] sm:$0xf]
    %84 = vrot.lane.b32.xlu0 %v60, 16
    %v85 = vpop.permute.xlu0 %84
    %86 = vrot.lane.b32.xlu0 %v61, 16
    %v87 = vpop.permute.xlu0 %86
    %88 = vrot.lane.b32.xlu0 %v62, 16
    %v89 = vpop.permute.xlu0 %88
    %90 = vrot.lane.b32.xlu0 %v63, 16
    %v91 = vpop.permute.xlu0 %90
    %92 = vrot.lane.b32.xlu0 %v64, 16
    %v93 = vpop.permute.xlu0 %92
    %94 = vrot.lane.b32.xlu0 %v65, 16
    %v95 = vpop.permute.xlu0 %94
    %96 = vrot.lane.b32.xlu0 %v66, 16
    %v97 = vpop.permute.xlu0 %96
    %98 = vrot.lane.b32.xlu0 %v67, 16
    %v99 = vpop.permute.xlu0 %98
    %100 = vrot.lane.b32.xlu0 %v68, 16
    %v101 = vpop.permute.xlu0 %100
    %102 = vrot.lane.b32.xlu0 %v69, 16
    %v103 = vpop.permute.xlu0 %102
    %104 = vrot.lane.b32.xlu0 %v70, 16
    %v105 = vpop.permute.xlu0 %104
    %106 = vrot.lane.b32.xlu0 %v71, 16
    %v107 = vpop.permute.xlu0 %106
    %vm120 = vcmask 261248
    %121 = vst.msk [vmem:[#allocation2] sm:$0xff] %vm120, %v85
    %122 = vst.msk [vmem:[#allocation2 + $0x10] sm:$0xff] %vm120, %v87
    %123 = vst.msk [vmem:[#allocation2 + $0x20] sm:$0xff] %vm120, %v89
    %124 = vst.msk [vmem:[#allocation2 + $0x30] sm:$0xff] %vm120, %v91
    %125 = vst.msk [vmem:[#allocation2 + $0x40] sm:$0xff] %vm120, %v93
    %126 = vst.msk [vmem:[#allocation2 + $0x50] sm:$0xff] %vm120, %v95
    %127 = vst.msk [vmem:[#allocation2 + $0x60] sm:$0xff] %vm120, %v97
    %128 = vst.msk [vmem:[#allocation2 + $0x70] sm:$0xff] %vm120, %v99
    %129 = vst.msk [vmem:[#allocation2 + $0x80] sm:$0xff] %vm120, %v101
    %130 = vst.msk [vmem:[#allocation2 + $0x90] sm:$0xff] %vm120, %v103
    %131 = vst.msk [vmem:[#allocation2 + $0xa0] sm:$0xff] %vm120, %v105
    %vm132 = vcmask 257152
    %133 = vst.msk [vmem:[#allocation2 + $0xb0] sm:$0xf] %vm132, %v107
    %v134 = vld [vmem:[%s0 + $0x2] sm:$0xff]
    %v135 = vld [vmem:[%s0 + $0xa] sm:$0xff]
    %v136 = vld [vmem:[%s0 + $0x12] sm:$0xff]
    %v137 = vld [vmem:[%s0 + $0x1a] sm:$0xff]
    %v138 = vld [vmem:[%s0 + $0x22] sm:$0xff]
    %v139 = vld [vmem:[%s0 + $0x2a] sm:$0xff]
    %v140 = vld [vmem:[%s0 + $0x32] sm:$0xff]
    %v141 = vld [vmem:[%s0 + $0x3a] sm:$0xff]
    %v142 = vld [vmem:[%s0 + $0x42] sm:$0xff]
    %v143 = vld [vmem:[%s0 + $0x4a] sm:$0xff]
    %v144 = vld [vmem:[%s0 + $0x52] sm:$0xff]
    %v145 = vld [vmem:[%s0 + $0x5a] sm:$0xf]
    %158 = vrot.lane.b32.xlu0 %v134, 32
    %v159 = vpop.permute.xlu0 %158
    %160 = vrot.lane.b32.xlu0 %v135, 32
    %v161 = vpop.permute.xlu0 %160
    %162 = vrot.lane.b32.xlu0 %v136, 32
    %v163 = vpop.permute.xlu0 %162
    %164 = vrot.lane.b32.xlu0 %v137, 32
    %v165 = vpop.permute.xlu0 %164
    %166 = vrot.lane.b32.xlu0 %v138, 32
    %v167 = vpop.permute.xlu0 %166
    %168 = vrot.lane.b32.xlu0 %v139, 32
    %v169 = vpop.permute.xlu0 %168
    %170 = vrot.lane.b32.xlu0 %v140, 32
    %v171 = vpop.permute.xlu0 %170
    %172 = vrot.lane.b32.xlu0 %v141, 32
    %v173 = vpop.permute.xlu0 %172
    %174 = vrot.lane.b32.xlu0 %v142, 32
    %v175 = vpop.permute.xlu0 %174
    %176 = vrot.lane.b32.xlu0 %v143, 32
    %v177 = vpop.permute.xlu0 %176
    %178 = vrot.lane.b32.xlu0 %v144, 32
    %v179 = vpop.permute.xlu0 %178
    %180 = vrot.lane.b32.xlu0 %v145, 32
    %v181 = vpop.permute.xlu0 %180
    %vm194 = vcmask 392448
    %195 = vst.msk [vmem:[#allocation2] sm:$0xff] %vm194, %v159
    %196 = vst.msk [vmem:[#allocation2 + $0x10] sm:$0xff] %vm194, %v161
    %197 = vst.msk [vmem:[#allocation2 + $0x20] sm:$0xff] %vm194, %v163
    %198 = vst.msk [vmem:[#allocation2 + $0x30] sm:$0xff] %vm194, %v165
    %199 = vst.msk [vmem:[#allocation2 + $0x40] sm:$0xff] %vm194, %v167
    %200 = vst.msk [vmem:[#allocation2 + $0x50] sm:$0xff] %vm194, %v169
    %201 = vst.msk [vmem:[#allocation2 + $0x60] sm:$0xff] %vm194, %v171
    %202 = vst.msk [vmem:[#allocation2 + $0x70] sm:$0xff] %vm194, %v173
    %203 = vst.msk [vmem:[#allocation2 + $0x80] sm:$0xff] %vm194, %v175
    %204 = vst.msk [vmem:[#allocation2 + $0x90] sm:$0xff] %vm194, %v177
    %205 = vst.msk [vmem:[#allocation2 + $0xa0] sm:$0xff] %vm194, %v179
    %vm206 = vcmask 388352
    %207 = vst.msk [vmem:[#allocation2 + $0xb0] sm:$0xf] %vm206, %v181
    %v208 = vld [vmem:[%s0 + $0x3] sm:$0xff]
    %v209 = vld [vmem:[%s0 + $0xb] sm:$0xff]
    %v210 = vld [vmem:[%s0 + $0x13] sm:$0xff]
    %v211 = vld [vmem:[%s0 + $0x1b] sm:$0xff]
    %v212 = vld [vmem:[%s0 + $0x23] sm:$0xff]
    %v213 = vld [vmem:[%s0 + $0x2b] sm:$0xff]
    %v214 = vld [vmem:[%s0 + $0x33] sm:$0xff]
    %v215 = vld [vmem:[%s0 + $0x3b] sm:$0xff]
    %v216 = vld [vmem:[%s0 + $0x43] sm:$0xff]
    %v217 = vld [vmem:[%s0 + $0x4b] sm:$0xff]
    %v218 = vld [vmem:[%s0 + $0x53] sm:$0xff]
    %v219 = vld [vmem:[%s0 + $0x5b] sm:$0xf]
    %232 = vrot.lane.b32.xlu0 %v208, 48
    %v233 = vpop.permute.xlu0 %232
    %234 = vrot.lane.b32.xlu0 %v209, 48
    %v235 = vpop.permute.xlu0 %234
    %236 = vrot.lane.b32.xlu0 %v210, 48
    %v237 = vpop.permute.xlu0 %236
    %238 = vrot.lane.b32.xlu0 %v211, 48
    %v239 = vpop.permute.xlu0 %238
    %240 = vrot.lane.b32.xlu0 %v212, 48
    %v241 = vpop.permute.xlu0 %240
    %242 = vrot.lane.b32.xlu0 %v213, 48
    %v243 = vpop.permute.xlu0 %242
    %244 = vrot.lane.b32.xlu0 %v214, 48
    %v245 = vpop.permute.xlu0 %244
    %246 = vrot.lane.b32.xlu0 %v215, 48
    %v247 = vpop.permute.xlu0 %246
    %248 = vrot.lane.b32.xlu0 %v216, 48
    %v249 = vpop.permute.xlu0 %248
    %250 = vrot.lane.b32.xlu0 %v217, 48
    %v251 = vpop.permute.xlu0 %250
    %252 = vrot.lane.b32.xlu0 %v218, 48
    %v253 = vpop.permute.xlu0 %252
    %254 = vrot.lane.b32.xlu0 %v219, 48
    %v255 = vpop.permute.xlu0 %254
    %vm268 = vcmask 523648
    %269 = vst.msk [vmem:[#allocation2] sm:$0xff] %vm268, %v233
    %270 = vst.msk [vmem:[#allocation2 + $0x10] sm:$0xff] %vm268, %v235
    %271 = vst.msk [vmem:[#allocation2 + $0x20] sm:$0xff] %vm268, %v237
    %272 = vst.msk [vmem:[#allocation2 + $0x30] sm:$0xff] %vm268, %v239
    %273 = vst.msk [vmem:[#allocation2 + $0x40] sm:$0xff] %vm268, %v241
    %274 = vst.msk [vmem:[#allocation2 + $0x50] sm:$0xff] %vm268, %v243
    %275 = vst.msk [vmem:[#allocation2 + $0x60] sm:$0xff] %vm268, %v245
    %276 = vst.msk [vmem:[#allocation2 + $0x70] sm:$0xff] %vm268, %v247
    %277 = vst.msk [vmem:[#allocation2 + $0x80] sm:$0xff] %vm268, %v249
    %278 = vst.msk [vmem:[#allocation2 + $0x90] sm:$0xff] %vm268, %v251
    %279 = vst.msk [vmem:[#allocation2 + $0xa0] sm:$0xff] %vm268, %v253
    %vm280 = vcmask 519552
    %281 = vst.msk [vmem:[#allocation2 + $0xb0] sm:$0xf] %vm280, %v255
    %v282 = vld [vmem:[%s0 + $0x4] sm:$0xff]
    %v283 = vld [vmem:[%s0 + $0xc] sm:$0xff]
    %v284 = vld [vmem:[%s0 + $0x14] sm:$0xff]
    %v285 = vld [vmem:[%s0 + $0x1c] sm:$0xff]
    %v286 = vld [vmem:[%s0 + $0x24] sm:$0xff]
    %v287 = vld [vmem:[%s0 + $0x2c] sm:$0xff]
    %v288 = vld [vmem:[%s0 + $0x34] sm:$0xff]
    %v289 = vld [vmem:[%s0 + $0x3c] sm:$0xff]
    %v290 = vld [vmem:[%s0 + $0x44] sm:$0xff]
    %v291 = vld [vmem:[%s0 + $0x4c] sm:$0xff]
    %v292 = vld [vmem:[%s0 + $0x54] sm:$0xff]
    %v293 = vld [vmem:[%s0 + $0x5c] sm:$0xf]
    %306 = vrot.lane.b32.xlu0 %v282, 64
    %v307 = vpop.permute.xlu0 %306
    %308 = vrot.lane.b32.xlu0 %v283, 64
    %v309 = vpop.permute.xlu0 %308
    %310 = vrot.lane.b32.xlu0 %v284, 64
    %v311 = vpop.permute.xlu0 %310
    %312 = vrot.lane.b32.xlu0 %v285, 64
    %v313 = vpop.permute.xlu0 %312
    %314 = vrot.lane.b32.xlu0 %v286, 64
    %v315 = vpop.permute.xlu0 %314
    %316 = vrot.lane.b32.xlu0 %v287, 64
    %v317 = vpop.permute.xlu0 %316
    %318 = vrot.lane.b32.xlu0 %v288, 64
    %v319 = vpop.permute.xlu0 %318
    %320 = vrot.lane.b32.xlu0 %v289, 64
    %v321 = vpop.permute.xlu0 %320
    %322 = vrot.lane.b32.xlu0 %v290, 64
    %v323 = vpop.permute.xlu0 %322
    %324 = vrot.lane.b32.xlu0 %v291, 64
    %v325 = vpop.permute.xlu0 %324
    %326 = vrot.lane.b32.xlu0 %v292, 64
    %v327 = vpop.permute.xlu0 %326
    %328 = vrot.lane.b32.xlu0 %v293, 64
    %v329 = vpop.permute.xlu0 %328
    %vm342 = vcmask 654848
    %343 = vst.msk [vmem:[#allocation2] sm:$0xff] %vm342, %v307
    %344 = vst.msk [vmem:[#allocation2 + $0x10] sm:$0xff] %vm342, %v309
    %345 = vst.msk [vmem:[#allocation2 + $0x20] sm:$0xff] %vm342, %v311
    %346 = vst.msk [vmem:[#allocation2 + $0x30] sm:$0xff] %vm342, %v313
    %347 = vst.msk [vmem:[#allocation2 + $0x40] sm:$0xff] %vm342, %v315
    %348 = vst.msk [vmem:[#allocation2 + $0x50] sm:$0xff] %vm342, %v317
    %349 = vst.msk [vmem:[#allocation2 + $0x60] sm:$0xff] %vm342, %v319
    %350 = vst.msk [vmem:[#allocation2 + $0x70] sm:$0xff] %vm342, %v321
    %351 = vst.msk [vmem:[#allocation2 + $0x80] sm:$0xff] %vm342, %v323
    %352 = vst.msk [vmem:[#allocation2 + $0x90] sm:$0xff] %vm342, %v325
    %353 = vst.msk [vmem:[#allocation2 + $0xa0] sm:$0xff] %vm342, %v327
    %vm354 = vcmask 650752
    %355 = vst.msk [vmem:[#allocation2 + $0xb0] sm:$0xf] %vm354, %v329
    %v356 = vld [vmem:[%s0 + $0x5] sm:$0xff]
    %v357 = vld [vmem:[%s0 + $0xd] sm:$0xff]
    %v358 = vld [vmem:[%s0 + $0x15] sm:$0xff]
    %v359 = vld [vmem:[%s0 + $0x1d] sm:$0xff]
    %v360 = vld [vmem:[%s0 + $0x25] sm:$0xff]
    %v361 = vld [vmem:[%s0 + $0x2d] sm:$0xff]
    %v362 = vld [vmem:[%s0 + $0x35] sm:$0xff]
    %v363 = vld [vmem:[%s0 + $0x3d] sm:$0xff]
    %v364 = vld [vmem:[%s0 + $0x45] sm:$0xff]
    %v365 = vld [vmem:[%s0 + $0x4d] sm:$0xff]
    %v366 = vld [vmem:[%s0 + $0x55] sm:$0xff]
    %v367 = vld [vmem:[%s0 + $0x5d] sm:$0xf]
    %380 = vrot.lane.b32.xlu0 %v356, 80
    %v381 = vpop.permute.xlu0 %380
    %382 = vrot.lane.b32.xlu0 %v357, 80
    %v383 = vpop.permute.xlu0 %382
    %384 = vrot.lane.b32.xlu0 %v358, 80
    %v385 = vpop.permute.xlu0 %384
    %386 = vrot.lane.b32.xlu0 %v359, 80
    %v387 = vpop.permute.xlu0 %386
    %388 = vrot.lane.b32.xlu0 %v360, 80
    %v389 = vpop.permute.xlu0 %388
    %390 = vrot.lane.b32.xlu0 %v361, 80
    %v391 = vpop.permute.xlu0 %390
    %392 = vrot.lane.b32.xlu0 %v362, 80
    %v393 = vpop.permute.xlu0 %392
    %394 = vrot.lane.b32.xlu0 %v363, 80
    %v395 = vpop.permute.xlu0 %394
    %396 = vrot.lane.b32.xlu0 %v364, 80
    %v397 = vpop.permute.xlu0 %396
    %398 = vrot.lane.b32.xlu0 %v365, 80
    %v399 = vpop.permute.xlu0 %398
    %400 = vrot.lane.b32.xlu0 %v366, 80
    %v401 = vpop.permute.xlu0 %400
    %402 = vrot.lane.b32.xlu0 %v367, 80
    %v403 = vpop.permute.xlu0 %402
    %vm416 = vcmask 786048
    %417 = vst.msk [vmem:[#allocation2] sm:$0xff] %vm416, %v381
    %418 = vst.msk [vmem:[#allocation2 + $0x10] sm:$0xff] %vm416, %v383
    %419 = vst.msk [vmem:[#allocation2 + $0x20] sm:$0xff] %vm416, %v385
    %420 = vst.msk [vmem:[#allocation2 + $0x30] sm:$0xff] %vm416, %v387
    %421 = vst.msk [vmem:[#allocation2 + $0x40] sm:$0xff] %vm416, %v389
    %422 = vst.msk [vmem:[#allocation2 + $0x50] sm:$0xff] %vm416, %v391
    %423 = vst.msk [vmem:[#allocation2 + $0x60] sm:$0xff] %vm416, %v393
    %424 = vst.msk [vmem:[#allocation2 + $0x70] sm:$0xff] %vm416, %v395
    %425 = vst.msk [vmem:[#allocation2 + $0x80] sm:$0xff] %vm416, %v397
    %426 = vst.msk [vmem:[#allocation2 + $0x90] sm:$0xff] %vm416, %v399
    %427 = vst.msk [vmem:[#allocation2 + $0xa0] sm:$0xff] %vm416, %v401
    %vm428 = vcmask 781952
    %429 = vst.msk [vmem:[#allocation2 + $0xb0] sm:$0xf] %vm428, %v403
    %v430 = vld [vmem:[%s0 + $0x6] sm:$0xff]
    %v431 = vld [vmem:[%s0 + $0xe] sm:$0xff]
    %v432 = vld [vmem:[%s0 + $0x16] sm:$0xff]
    %v433 = vld [vmem:[%s0 + $0x1e] sm:$0xff]
    %v434 = vld [vmem:[%s0 + $0x26] sm:$0xff]
    %v435 = vld [vmem:[%s0 + $0x2e] sm:$0xff]
    %v436 = vld [vmem:[%s0 + $0x36] sm:$0xff]
    %v437 = vld [vmem:[%s0 + $0x3e] sm:$0xff]
    %v438 = vld [vmem:[%s0 + $0x46] sm:$0xff]
    %v439 = vld [vmem:[%s0 + $0x4e] sm:$0xff]
    %v440 = vld [vmem:[%s0 + $0x56] sm:$0xff]
    %v441 = vld [vmem:[%s0 + $0x5e] sm:$0xf]
    %454 = vrot.lane.b32.xlu0 %v430, 96
    %v455 = vpop.permute.xlu0 %454
    %456 = vrot.lane.b32.xlu0 %v431, 96
    %v457 = vpop.permute.xlu0 %456
    %458 = vrot.lane.b32.xlu0 %v432, 96
    %v459 = vpop.permute.xlu0 %458
    %460 = vrot.lane.b32.xlu0 %v433, 96
    %v461 = vpop.permute.xlu0 %460
    %462 = vrot.lane.b32.xlu0 %v434, 96
    %v463 = vpop.permute.xlu0 %462
    %464 = vrot.lane.b32.xlu0 %v435, 96
    %v465 = vpop.permute.xlu0 %464
    %466 = vrot.lane.b32.xlu0 %v436, 96
    %v467 = vpop.permute.xlu0 %466
    %468 = vrot.lane.b32.xlu0 %v437, 96
    %v469 = vpop.permute.xlu0 %468
    %470 = vrot.lane.b32.xlu0 %v438, 96
    %v471 = vpop.permute.xlu0 %470
    %472 = vrot.lane.b32.xlu0 %v439, 96
    %v473 = vpop.permute.xlu0 %472
    %474 = vrot.lane.b32.xlu0 %v440, 96
    %v475 = vpop.permute.xlu0 %474
    %476 = vrot.lane.b32.xlu0 %v441, 96
    %v477 = vpop.permute.xlu0 %476
    %vm490 = vcmask 917248
    %491 = vst.msk [vmem:[#allocation2] sm:$0xff] %vm490, %v455
    %492 = vst.msk [vmem:[#allocation2 + $0x10] sm:$0xff] %vm490, %v457
    %493 = vst.msk [vmem:[#allocation2 + $0x20] sm:$0xff] %vm490, %v459
    %494 = vst.msk [vmem:[#allocation2 + $0x30] sm:$0xff] %vm490, %v461
    %495 = vst.msk [vmem:[#allocation2 + $0x40] sm:$0xff] %vm490, %v463
    %496 = vst.msk [vmem:[#allocation2 + $0x50] sm:$0xff] %vm490, %v465
    %497 = vst.msk [vmem:[#allocation2 + $0x60] sm:$0xff] %vm490, %v467
    %498 = vst.msk [vmem:[#allocation2 + $0x70] sm:$0xff] %vm490, %v469
    %499 = vst.msk [vmem:[#allocation2 + $0x80] sm:$0xff] %vm490, %v471
    %500 = vst.msk [vmem:[#allocation2 + $0x90] sm:$0xff] %vm490, %v473
    %501 = vst.msk [vmem:[#allocation2 + $0xa0] sm:$0xff] %vm490, %v475
    %vm502 = vcmask 913152
    %503 = vst.msk [vmem:[#allocation2 + $0xb0] sm:$0xf] %vm502, %v477
    %v504 = vld [vmem:[%s0 + $0x7] sm:$0xff]
    %v505 = vld [vmem:[%s0 + $0xf] sm:$0xff]
    %v506 = vld [vmem:[%s0 + $0x17] sm:$0xff]
    %v507 = vld [vmem:[%s0 + $0x1f] sm:$0xff]
    %v508 = vld [vmem:[%s0 + $0x27] sm:$0xff]
    %v509 = vld [vmem:[%s0 + $0x2f] sm:$0xff]
    %v510 = vld [vmem:[%s0 + $0x37] sm:$0xff]
    %v511 = vld [vmem:[%s0 + $0x3f] sm:$0xff]
    %v512 = vld [vmem:[%s0 + $0x47] sm:$0xff]
    %v513 = vld [vmem:[%s0 + $0x4f] sm:$0xff]
    %v514 = vld [vmem:[%s0 + $0x57] sm:$0xff]
    %v515 = vld [vmem:[%s0 + $0x5f] sm:$0xf]
    %528 = vrot.lane.b32.xlu0 %v504, 112
    %v529 = vpop.permute.xlu0 %528
    %530 = vrot.lane.b32.xlu0 %v505, 112
    %v531 = vpop.permute.xlu0 %530
    %532 = vrot.lane.b32.xlu0 %v506, 112
    %v533 = vpop.permute.xlu0 %532
    %534 = vrot.lane.b32.xlu0 %v507, 112
    %v535 = vpop.permute.xlu0 %534
    %536 = vrot.lane.b32.xlu0 %v508, 112
    %v537 = vpop.permute.xlu0 %536
    %538 = vrot.lane.b32.xlu0 %v509, 112
    %v539 = vpop.permute.xlu0 %538
    %540 = vrot.lane.b32.xlu0 %v510, 112
    %v541 = vpop.permute.xlu0 %540
    %542 = vrot.lane.b32.xlu0 %v511, 112
    %v543 = vpop.permute.xlu0 %542
    %544 = vrot.lane.b32.xlu0 %v512, 112
    %v545 = vpop.permute.xlu0 %544
    %546 = vrot.lane.b32.xlu0 %v513, 112
    %v547 = vpop.permute.xlu0 %546
    %548 = vrot.lane.b32.xlu0 %v514, 112
    %v549 = vpop.permute.xlu0 %548
    %550 = vrot.lane.b32.xlu0 %v515, 112
    %v551 = vpop.permute.xlu0 %550
    %vm564 = vcmask 1048448
    %565 = vst.msk [vmem:[#allocation2] sm:$0xff] %vm564, %v529
    %566 = vst.msk [vmem:[#allocation2 + $0x10] sm:$0xff] %vm564, %v531
    %567 = vst.msk [vmem:[#allocation2 + $0x20] sm:$0xff] %vm564, %v533
    %568 = vst.msk [vmem:[#allocation2 + $0x30] sm:$0xff] %vm564, %v535
    %569 = vst.msk [vmem:[#allocation2 + $0x40] sm:$0xff] %vm564, %v537
    %570 = vst.msk [vmem:[#allocation2 + $0x50] sm:$0xff] %vm564, %v539
    %571 = vst.msk [vmem:[#allocation2 + $0x60] sm:$0xff] %vm564, %v541
    %572 = vst.msk [vmem:[#allocation2 + $0x70] sm:$0xff] %vm564, %v543
    %573 = vst.msk [vmem:[#allocation2 + $0x80] sm:$0xff] %vm564, %v545
    %574 = vst.msk [vmem:[#allocation2 + $0x90] sm:$0xff] %vm564, %v547
    %575 = vst.msk [vmem:[#allocation2 + $0xa0] sm:$0xff] %vm564, %v549
    %vm576 = vcmask 1044352
    %577 = vst.msk [vmem:[#allocation2 + $0xb0] sm:$0xf] %vm576, %v551
    %v578 = vld [vmem:[%s0 + $0x63] sm:$0xff]
    %v579 = vld [vmem:[%s0 + $0x6b] sm:$0xff]
    %v580 = vld [vmem:[%s0 + $0x73] sm:$0xff]
    %v581 = vld [vmem:[%s0 + $0x7b] sm:$0xff]
    %v582 = vld [vmem:[%s0 + $0x83] sm:$0xff]
    %v583 = vld [vmem:[%s0 + $0x8b] sm:$0xff]
    %v584 = vld [vmem:[%s0 + $0x93] sm:$0xff]
    %v585 = vld [vmem:[%s0 + $0x9b] sm:$0xff]
    %v586 = vld [vmem:[%s0 + $0xa3] sm:$0xff]
    %v587 = vld [vmem:[%s0 + $0xab] sm:$0xff]
    %v588 = vld [vmem:[%s0 + $0xb3] sm:$0xff]
    %v589 = vld [vmem:[%s0 + $0xbb] sm:$0xf]
    %vm602 = vcmask 1043456
    %v603 = vrot.slane %v578, 4
    %v604 = vrot.slane %v579, 4
    %v605 = vsel %vm602, %v603, %v604
    %v606 = vrot.slane %v580, 4
    %v607 = vsel %vm602, %v604, %v606
    %v608 = vrot.slane %v581, 4
    %v609 = vsel %vm602, %v606, %v608
    %v610 = vrot.slane %v582, 4
    %v611 = vsel %vm602, %v608, %v610
    %v612 = vrot.slane %v583, 4
    %v613 = vsel %vm602, %v610, %v612
    %v614 = vrot.slane %v584, 4
    %v615 = vsel %vm602, %v612, %v614
    %v616 = vrot.slane %v585, 4
    %v617 = vsel %vm602, %v614, %v616
    %v618 = vrot.slane %v586, 4
    %v619 = vsel %vm602, %v616, %v618
    %v620 = vrot.slane %v587, 4
    %v621 = vsel %vm602, %v618, %v620
    %v622 = vrot.slane %v588, 4
    %v623 = vsel %vm602, %v620, %v622
    %v624 = vrot.slane %v589, 4
    %v625 = vsel %vm602, %v622, %v624
    %vm638 = vcmask 130052
    %639 = vst.msk [vmem:[#allocation2 + $0xb0] sm:$0xf0] %vm638, %v603
    %640 = vst.msk [vmem:[#allocation2 + $0xc0] sm:$0xff] %vm46, %v605
    %641 = vst.msk [vmem:[#allocation2 + $0xd0] sm:$0xff] %vm46, %v607
    %642 = vst.msk [vmem:[#allocation2 + $0xe0] sm:$0xff] %vm46, %v609
    %643 = vst.msk [vmem:[#allocation2 + $0xf0] sm:$0xff] %vm46, %v611
    %644 = vst.msk [vmem:[#allocation2 + $0x100] sm:$0xff] %vm46, %v613
    %645 = vst.msk [vmem:[#allocation2 + $0x110] sm:$0xff] %vm46, %v615
    %646 = vst.msk [vmem:[#allocation2 + $0x120] sm:$0xff] %vm46, %v617
    %647 = vst.msk [vmem:[#allocation2 + $0x130] sm:$0xff] %vm46, %v619
    %648 = vst.msk [vmem:[#allocation2 + $0x140] sm:$0xff] %vm46, %v621
    %649 = vst.msk [vmem:[#allocation2 + $0x150] sm:$0xff] %vm46, %v623
    %650 = vst.msk [vmem:[#allocation2 + $0x160] sm:$0xff] %vm46, %v625
    %v651 = vld [vmem:[%s0 + $0x64] sm:$0xff]
    %v652 = vld [vmem:[%s0 + $0x6c] sm:$0xff]
    %v653 = vld [vmem:[%s0 + $0x74] sm:$0xff]
    %v654 = vld [vmem:[%s0 + $0x7c] sm:$0xff]
    %v655 = vld [vmem:[%s0 + $0x84] sm:$0xff]
    %v656 = vld [vmem:[%s0 + $0x8c] sm:$0xff]
    %v657 = vld [vmem:[%s0 + $0x94] sm:$0xff]
    %v658 = vld [vmem:[%s0 + $0x9c] sm:$0xff]
    %v659 = vld [vmem:[%s0 + $0xa4] sm:$0xff]
    %v660 = vld [vmem:[%s0 + $0xac] sm:$0xff]
    %v661 = vld [vmem:[%s0 + $0xb4] sm:$0xff]
    %v662 = vld [vmem:[%s0 + $0xbc] sm:$0xf]
    %v675 = vrot.slane %v651, 4
    %v676 = vrot.slane %v652, 4
    %v677 = vsel %vm602, %v675, %v676
    %v678 = vrot.slane %v653, 4
    %v679 = vsel %vm602, %v676, %v678
    %v680 = vrot.slane %v654, 4
    %v681 = vsel %vm602, %v678, %v680
    %v682 = vrot.slane %v655, 4
    %v683 = vsel %vm602, %v680, %v682
    %v684 = vrot.slane %v656, 4
    %v685 = vsel %vm602, %v682, %v684
    %v686 = vrot.slane %v657, 4
    %v687 = vsel %vm602, %v684, %v686
    %v688 = vrot.slane %v658, 4
    %v689 = vsel %vm602, %v686, %v688
    %v690 = vrot.slane %v659, 4
    %v691 = vsel %vm602, %v688, %v690
    %v692 = vrot.slane %v660, 4
    %v693 = vsel %vm602, %v690, %v692
    %v694 = vrot.slane %v661, 4
    %v695 = vsel %vm602, %v692, %v694
    %v696 = vrot.slane %v662, 4
    %v697 = vsel %vm602, %v694, %v696
    %698 = vrot.lane.b32.xlu0 %v675, 16
    %v699 = vpop.permute.xlu0 %698
    %700 = vrot.lane.b32.xlu0 %v677, 16
    %v701 = vpop.permute.xlu0 %700
    %702 = vrot.lane.b32.xlu0 %v679, 16
    %v703 = vpop.permute.xlu0 %702
    %704 = vrot.lane.b32.xlu0 %v681, 16
    %v705 = vpop.permute.xlu0 %704
    %706 = vrot.lane.b32.xlu0 %v683, 16
    %v707 = vpop.permute.xlu0 %706
    %708 = vrot.lane.b32.xlu0 %v685, 16
    %v709 = vpop.permute.xlu0 %708
    %710 = vrot.lane.b32.xlu0 %v687, 16
    %v711 = vpop.permute.xlu0 %710
    %712 = vrot.lane.b32.xlu0 %v689, 16
    %v713 = vpop.permute.xlu0 %712
    %714 = vrot.lane.b32.xlu0 %v691, 16
    %v715 = vpop.permute.xlu0 %714
    %716 = vrot.lane.b32.xlu0 %v693, 16
    %v717 = vpop.permute.xlu0 %716
    %718 = vrot.lane.b32.xlu0 %v695, 16
    %v719 = vpop.permute.xlu0 %718
    %720 = vrot.lane.b32.xlu0 %v697, 16
    %v721 = vpop.permute.xlu0 %720
    %vm734 = vcmask 261252
    %735 = vst.msk [vmem:[#allocation2 + $0xb0] sm:$0xf0] %vm734, %v699
    %736 = vst.msk [vmem:[#allocation2 + $0xc0] sm:$0xff] %vm120, %v701
    %737 = vst.msk [vmem:[#allocation2 + $0xd0] sm:$0xff] %vm120, %v703
    %738 = vst.msk [vmem:[#allocation2 + $0xe0] sm:$0xff] %vm120, %v705
    %739 = vst.msk [vmem:[#allocation2 + $0xf0] sm:$0xff] %vm120, %v707
    %740 = vst.msk [vmem:[#allocation2 + $0x100] sm:$0xff] %vm120, %v709
    %741 = vst.msk [vmem:[#allocation2 + $0x110] sm:$0xff] %vm120, %v711
    %742 = vst.msk [vmem:[#allocation2 + $0x120] sm:$0xff] %vm120, %v713
    %743 = vst.msk [vmem:[#allocation2 + $0x130] sm:$0xff] %vm120, %v715
    %744 = vst.msk [vmem:[#allocation2 + $0x140] sm:$0xff] %vm120, %v717
    %745 = vst.msk [vmem:[#allocation2 + $0x150] sm:$0xff] %vm120, %v719
    %746 = vst.msk [vmem:[#allocation2 + $0x160] sm:$0xff] %vm120, %v721
    %v747 = vld [vmem:[%s0 + $0x65] sm:$0xff]
    %v748 = vld [vmem:[%s0 + $0x6d] sm:$0xff]
    %v749 = vld [vmem:[%s0 + $0x75] sm:$0xff]
    %v750 = vld [vmem:[%s0 + $0x7d] sm:$0xff]
    %v751 = vld [vmem:[%s0 + $0x85] sm:$0xff]
    %v752 = vld [vmem:[%s0 + $0x8d] sm:$0xff]
    %v753 = vld [vmem:[%s0 + $0x95] sm:$0xff]
    %v754 = vld [vmem:[%s0 + $0x9d] sm:$0xff]
    %v755 = vld [vmem:[%s0 + $0xa5] sm:$0xff]
    %v756 = vld [vmem:[%s0 + $0xad] sm:$0xff]
    %v757 = vld [vmem:[%s0 + $0xb5] sm:$0xff]
    %v758 = vld [vmem:[%s0 + $0xbd] sm:$0xf]
    %v771 = vrot.slane %v747, 4
    %v772 = vrot.slane %v748, 4
    %v773 = vsel %vm602, %v771, %v772
    %v774 = vrot.slane %v749, 4
    %v775 = vsel %vm602, %v772, %v774
    %v776 = vrot.slane %v750, 4
    %v777 = vsel %vm602, %v774, %v776
    %v778 = vrot.slane %v751, 4
    %v779 = vsel %vm602, %v776, %v778
    %v780 = vrot.slane %v752, 4
    %v781 = vsel %vm602, %v778, %v780
    %v782 = vrot.slane %v753, 4
    %v783 = vsel %vm602, %v780, %v782
    %v784 = vrot.slane %v754, 4
    %v785 = vsel %vm602, %v782, %v784
    %v786 = vrot.slane %v755, 4
    %v787 = vsel %vm602, %v784, %v786
    %v788 = vrot.slane %v756, 4
    %v789 = vsel %vm602, %v786, %v788
    %v790 = vrot.slane %v757, 4
    %v791 = vsel %vm602, %v788, %v790
    %v792 = vrot.slane %v758, 4
    %v793 = vsel %vm602, %v790, %v792
    %794 = vrot.lane.b32.xlu0 %v771, 32
    %v795 = vpop.permute.xlu0 %794
    %796 = vrot.lane.b32.xlu0 %v773, 32
    %v797 = vpop.permute.xlu0 %796
    %798 = vrot.lane.b32.xlu0 %v775, 32
    %v799 = vpop.permute.xlu0 %798
    %800 = vrot.lane.b32.xlu0 %v777, 32
    %v801 = vpop.permute.xlu0 %800
    %802 = vrot.lane.b32.xlu0 %v779, 32
    %v803 = vpop.permute.xlu0 %802
    %804 = vrot.lane.b32.xlu0 %v781, 32
    %v805 = vpop.permute.xlu0 %804
    %806 = vrot.lane.b32.xlu0 %v783, 32
    %v807 = vpop.permute.xlu0 %806
    %808 = vrot.lane.b32.xlu0 %v785, 32
    %v809 = vpop.permute.xlu0 %808
    %810 = vrot.lane.b32.xlu0 %v787, 32
    %v811 = vpop.permute.xlu0 %810
    %812 = vrot.lane.b32.xlu0 %v789, 32
    %v813 = vpop.permute.xlu0 %812
    %814 = vrot.lane.b32.xlu0 %v791, 32
    %v815 = vpop.permute.xlu0 %814
    %816 = vrot.lane.b32.xlu0 %v793, 32
    %v817 = vpop.permute.xlu0 %816
    %vm830 = vcmask 392452
    %831 = vst.msk [vmem:[#allocation2 + $0xb0] sm:$0xf0] %vm830, %v795
    %832 = vst.msk [vmem:[#allocation2 + $0xc0] sm:$0xff] %vm194, %v797
    %833 = vst.msk [vmem:[#allocation2 + $0xd0] sm:$0xff] %vm194, %v799
    %834 = vst.msk [vmem:[#allocation2 + $0xe0] sm:$0xff] %vm194, %v801
    %835 = vst.msk [vmem:[#allocation2 + $0xf0] sm:$0xff] %vm194, %v803
    %836 = vst.msk [vmem:[#allocation2 + $0x100] sm:$0xff] %vm194, %v805
    %837 = vst.msk [vmem:[#allocation2 + $0x110] sm:$0xff] %vm194, %v807
    %838 = vst.msk [vmem:[#allocation2 + $0x120] sm:$0xff] %vm194, %v809
    %839 = vst.msk [vmem:[#allocation2 + $0x130] sm:$0xff] %vm194, %v811
    %840 = vst.msk [vmem:[#allocation2 + $0x140] sm:$0xff] %vm194, %v813
    %841 = vst.msk [vmem:[#allocation2 + $0x150] sm:$0xff] %vm194, %v815
    %842 = vst.msk [vmem:[#allocation2 + $0x160] sm:$0xff] %vm194, %v817
    %v843 = vld [vmem:[%s0 + $0x66] sm:$0xff]
    %v844 = vld [vmem:[%s0 + $0x6e] sm:$0xff]
    %v845 = vld [vmem:[%s0 + $0x76] sm:$0xff]
    %v846 = vld [vmem:[%s0 + $0x7e] sm:$0xff]
    %v847 = vld [vmem:[%s0 + $0x86] sm:$0xff]
    %v848 = vld [vmem:[%s0 + $0x8e] sm:$0xff]
    %v849 = vld [vmem:[%s0 + $0x96] sm:$0xff]
    %v850 = vld [vmem:[%s0 + $0x9e] sm:$0xff]
    %v851 = vld [vmem:[%s0 + $0xa6] sm:$0xff]
    %v852 = vld [vmem:[%s0 + $0xae] sm:$0xff]
    %v853 = vld [vmem:[%s0 + $0xb6] sm:$0xff]
    %v854 = vld [vmem:[%s0 + $0xbe] sm:$0xf]
    %v867 = vrot.slane %v843, 4
    %v868 = vrot.slane %v844, 4
    %v869 = vsel %vm602, %v867, %v868
    %v870 = vrot.slane %v845, 4
    %v871 = vsel %vm602, %v868, %v870
    %v872 = vrot.slane %v846, 4
    %v873 = vsel %vm602, %v870, %v872
    %v874 = vrot.slane %v847, 4
    %v875 = vsel %vm602, %v872, %v874
    %v876 = vrot.slane %v848, 4
    %v877 = vsel %vm602, %v874, %v876
    %v878 = vrot.slane %v849, 4
    %v879 = vsel %vm602, %v876, %v878
    %v880 = vrot.slane %v850, 4
    %v881 = vsel %vm602, %v878, %v880
    %v882 = vrot.slane %v851, 4
    %v883 = vsel %vm602, %v880, %v882
    %v884 = vrot.slane %v852, 4
    %v885 = vsel %vm602, %v882, %v884
    %v886 = vrot.slane %v853, 4
    %v887 = vsel %vm602, %v884, %v886
    %v888 = vrot.slane %v854, 4
    %v889 = vsel %vm602, %v886, %v888
    %890 = vrot.lane.b32.xlu0 %v867, 48
    %v891 = vpop.permute.xlu0 %890
    %892 = vrot.lane.b32.xlu0 %v869, 48
    %v893 = vpop.permute.xlu0 %892
    %894 = vrot.lane.b32.xlu0 %v871, 48
    %v895 = vpop.permute.xlu0 %894
    %896 = vrot.lane.b32.xlu0 %v873, 48
    %v897 = vpop.permute.xlu0 %896
    %898 = vrot.lane.b32.xlu0 %v875, 48
    %v899 = vpop.permute.xlu0 %898
    %900 = vrot.lane.b32.xlu0 %v877, 48
    %v901 = vpop.permute.xlu0 %900
    %902 = vrot.lane.b32.xlu0 %v879, 48
    %v903 = vpop.permute.xlu0 %902
    %904 = vrot.lane.b32.xlu0 %v881, 48
    %v905 = vpop.permute.xlu0 %904
    %906 = vrot.lane.b32.xlu0 %v883, 48
    %v907 = vpop.permute.xlu0 %906
    %908 = vrot.lane.b32.xlu0 %v885, 48
    %v909 = vpop.permute.xlu0 %908
    %910 = vrot.lane.b32.xlu0 %v887, 48
    %v911 = vpop.permute.xlu0 %910
    %912 = vrot.lane.b32.xlu0 %v889, 48
    %v913 = vpop.permute.xlu0 %912
    %vm926 = vcmask 523652
    %927 = vst.msk [vmem:[#allocation2 + $0xb0] sm:$0xf0] %vm926, %v891
    %928 = vst.msk [vmem:[#allocation2 + $0xc0] sm:$0xff] %vm268, %v893
    %929 = vst.msk [vmem:[#allocation2 + $0xd0] sm:$0xff] %vm268, %v895
    %930 = vst.msk [vmem:[#allocation2 + $0xe0] sm:$0xff] %vm268, %v897
    %931 = vst.msk [vmem:[#allocation2 + $0xf0] sm:$0xff] %vm268, %v899
    %932 = vst.msk [vmem:[#allocation2 + $0x100] sm:$0xff] %vm268, %v901
    %933 = vst.msk [vmem:[#allocation2 + $0x110] sm:$0xff] %vm268, %v903
    %934 = vst.msk [vmem:[#allocation2 + $0x120] sm:$0xff] %vm268, %v905
    %935 = vst.msk [vmem:[#allocation2 + $0x130] sm:$0xff] %vm268, %v907
    %936 = vst.msk [vmem:[#allocation2 + $0x140] sm:$0xff] %vm268, %v909
    %937 = vst.msk [vmem:[#allocation2 + $0x150] sm:$0xff] %vm268, %v911
    %938 = vst.msk [vmem:[#allocation2 + $0x160] sm:$0xff] %vm268, %v913
    %v939 = vld [vmem:[%s0 + $0x67] sm:$0xff]
    %v940 = vld [vmem:[%s0 + $0x6f] sm:$0xff]
    %v941 = vld [vmem:[%s0 + $0x77] sm:$0xff]
    %v942 = vld [vmem:[%s0 + $0x7f] sm:$0xff]
    %v943 = vld [vmem:[%s0 + $0x87] sm:$0xff]
    %v944 = vld [vmem:[%s0 + $0x8f] sm:$0xff]
    %v945 = vld [vmem:[%s0 + $0x97] sm:$0xff]
    %v946 = vld [vmem:[%s0 + $0x9f] sm:$0xff]
    %v947 = vld [vmem:[%s0 + $0xa7] sm:$0xff]
    %v948 = vld [vmem:[%s0 + $0xaf] sm:$0xff]
    %v949 = vld [vmem:[%s0 + $0xb7] sm:$0xff]
    %v950 = vld [vmem:[%s0 + $0xbf] sm:$0xf]
    %v963 = vrot.slane %v939, 4
    %v964 = vrot.slane %v940, 4
    %v965 = vsel %vm602, %v963, %v964
    %v966 = vrot.slane %v941, 4
    %v967 = vsel %vm602, %v964, %v966
    %v968 = vrot.slane %v942, 4
    %v969 = vsel %vm602, %v966, %v968
    %v970 = vrot.slane %v943, 4
    %v971 = vsel %vm602, %v968, %v970
    %v972 = vrot.slane %v944, 4
    %v973 = vsel %vm602, %v970, %v972
    %v974 = vrot.slane %v945, 4
    %v975 = vsel %vm602, %v972, %v974
    %v976 = vrot.slane %v946, 4
    %v977 = vsel %vm602, %v974, %v976
    %v978 = vrot.slane %v947, 4
    %v979 = vsel %vm602, %v976, %v978
    %v980 = vrot.slane %v948, 4
    %v981 = vsel %vm602, %v978, %v980
    %v982 = vrot.slane %v949, 4
    %v983 = vsel %vm602, %v980, %v982
    %v984 = vrot.slane %v950, 4
    %v985 = vsel %vm602, %v982, %v984
    %986 = vrot.lane.b32.xlu0 %v963, 64
    %v987 = vpop.permute.xlu0 %986
    %988 = vrot.lane.b32.xlu0 %v965, 64
    %v989 = vpop.permute.xlu0 %988
    %990 = vrot.lane.b32.xlu0 %v967, 64
    %v991 = vpop.permute.xlu0 %990
    %992 = vrot.lane.b32.xlu0 %v969, 64
    %v993 = vpop.permute.xlu0 %992
    %994 = vrot.lane.b32.xlu0 %v971, 64
    %v995 = vpop.permute.xlu0 %994
    %996 = vrot.lane.b32.xlu0 %v973, 64
    %v997 = vpop.permute.xlu0 %996
    %998 = vrot.lane.b32.xlu0 %v975, 64
    %v999 = vpop.permute.xlu0 %998
    %1000 = vrot.lane.b32.xlu0 %v977, 64
    %v1001 = vpop.permute.xlu0 %1000
    %1002 = vrot.lane.b32.xlu0 %v979, 64
    %v1003 = vpop.permute.xlu0 %1002
    %1004 = vrot.lane.b32.xlu0 %v981, 64
    %v1005 = vpop.permute.xlu0 %1004
    %1006 = vrot.lane.b32.xlu0 %v983, 64
    %v1007 = vpop.permute.xlu0 %1006
    %1008 = vrot.lane.b32.xlu0 %v985, 64
    %v1009 = vpop.permute.xlu0 %1008
    %vm1022 = vcmask 654852
    %1023 = vst.msk [vmem:[#allocation2 + $0xb0] sm:$0xf0] %vm1022, %v987
    %1024 = vst.msk [vmem:[#allocation2 + $0xc0] sm:$0xff] %vm342, %v989
    %1025 = vst.msk [vmem:[#allocation2 + $0xd0] sm:$0xff] %vm342, %v991
    %1026 = vst.msk [vmem:[#allocation2 + $0xe0] sm:$0xff] %vm342, %v993
    %1027 = vst.msk [vmem:[#allocation2 + $0xf0] sm:$0xff] %vm342, %v995
    %1028 = vst.msk [vmem:[#allocation2 + $0x100] sm:$0xff] %vm342, %v997
    %1029 = vst.msk [vmem:[#allocation2 + $0x110] sm:$0xff] %vm342, %v999
    %1030 = vst.msk [vmem:[#allocation2 + $0x120] sm:$0xff] %vm342, %v1001
    %1031 = vst.msk [vmem:[#allocation2 + $0x130] sm:$0xff] %vm342, %v1003
    %1032 = vst.msk [vmem:[#allocation2 + $0x140] sm:$0xff] %vm342, %v1005
    %1033 = vst.msk [vmem:[#allocation2 + $0x150] sm:$0xff] %vm342, %v1007
    %1034 = vst.msk [vmem:[#allocation2 + $0x160] sm:$0xff] %vm342, %v1009
    %v1035 = vld [vmem:[%s0 + $0x68] sm:$0xff]
    %v1036 = vld [vmem:[%s0 + $0x70] sm:$0xff]
    %v1037 = vld [vmem:[%s0 + $0x78] sm:$0xff]
    %v1038 = vld [vmem:[%s0 + $0x80] sm:$0xff]
    %v1039 = vld [vmem:[%s0 + $0x88] sm:$0xff]
    %v1040 = vld [vmem:[%s0 + $0x90] sm:$0xff]
    %v1041 = vld [vmem:[%s0 + $0x98] sm:$0xff]
    %v1042 = vld [vmem:[%s0 + $0xa0] sm:$0xff]
    %v1043 = vld [vmem:[%s0 + $0xa8] sm:$0xff]
    %v1044 = vld [vmem:[%s0 + $0xb0] sm:$0xff]
    %v1045 = vld [vmem:[%s0 + $0xb8] sm:$0xff]
    %v1046 = vld [vmem:[%s0 + $0xc0] sm:$0xf]
    %v1059 = vrot.slane %v1035, 4
    %v1060 = vrot.slane %v1036, 4
    %v1061 = vsel %vm602, %v1059, %v1060
    %v1062 = vrot.slane %v1037, 4
    %v1063 = vsel %vm602, %v1060, %v1062
    %v1064 = vrot.slane %v1038, 4
    %v1065 = vsel %vm602, %v1062, %v1064
    %v1066 = vrot.slane %v1039, 4
    %v1067 = vsel %vm602, %v1064, %v1066
    %v1068 = vrot.slane %v1040, 4
    %v1069 = vsel %vm602, %v1066, %v1068
    %v1070 = vrot.slane %v1041, 4
    %v1071 = vsel %vm602, %v1068, %v1070
    %v1072 = vrot.slane %v1042, 4
    %v1073 = vsel %vm602, %v1070, %v1072
    %v1074 = vrot.slane %v1043, 4
    %v1075 = vsel %vm602, %v1072, %v1074
    %v1076 = vrot.slane %v1044, 4
    %v1077 = vsel %vm602, %v1074, %v1076
    %v1078 = vrot.slane %v1045, 4
    %v1079 = vsel %vm602, %v1076, %v1078
    %v1080 = vrot.slane %v1046, 4
    %v1081 = vsel %vm602, %v1078, %v1080
    %1082 = vrot.lane.b32.xlu0 %v1059, 80
    %v1083 = vpop.permute.xlu0 %1082
    %1084 = vrot.lane.b32.xlu0 %v1061, 80
    %v1085 = vpop.permute.xlu0 %1084
    %1086 = vrot.lane.b32.xlu0 %v1063, 80
    %v1087 = vpop.permute.xlu0 %1086
    %1088 = vrot.lane.b32.xlu0 %v1065, 80
    %v1089 = vpop.permute.xlu0 %1088
    %1090 = vrot.lane.b32.xlu0 %v1067, 80
    %v1091 = vpop.permute.xlu0 %1090
    %1092 = vrot.lane.b32.xlu0 %v1069, 80
    %v1093 = vpop.permute.xlu0 %1092
    %1094 = vrot.lane.b32.xlu0 %v1071, 80
    %v1095 = vpop.permute.xlu0 %1094
    %1096 = vrot.lane.b32.xlu0 %v1073, 80
    %v1097 = vpop.permute.xlu0 %1096
    %1098 = vrot.lane.b32.xlu0 %v1075, 80
    %v1099 = vpop.permute.xlu0 %1098
    %1100 = vrot.lane.b32.xlu0 %v1077, 80
    %v1101 = vpop.permute.xlu0 %1100
    %1102 = vrot.lane.b32.xlu0 %v1079, 80
    %v1103 = vpop.permute.xlu0 %1102
    %1104 = vrot.lane.b32.xlu0 %v1081, 80
    %v1105 = vpop.permute.xlu0 %1104
    %vm1118 = vcmask 786052
    %1119 = vst.msk [vmem:[#allocation2 + $0xb0] sm:$0xf0] %vm1118, %v1083
    %1120 = vst.msk [vmem:[#allocation2 + $0xc0] sm:$0xff] %vm416, %v1085
    %1121 = vst.msk [vmem:[#allocation2 + $0xd0] sm:$0xff] %vm416, %v1087
    %1122 = vst.msk [vmem:[#allocation2 + $0xe0] sm:$0xff] %vm416, %v1089
    %1123 = vst.msk [vmem:[#allocation2 + $0xf0] sm:$0xff] %vm416, %v1091
    %1124 = vst.msk [vmem:[#allocation2 + $0x100] sm:$0xff] %vm416, %v1093
    %1125 = vst.msk [vmem:[#allocation2 + $0x110] sm:$0xff] %vm416, %v1095
    %1126 = vst.msk [vmem:[#allocation2 + $0x120] sm:$0xff] %vm416, %v1097
    %1127 = vst.msk [vmem:[#allocation2 + $0x130] sm:$0xff] %vm416, %v1099
    %1128 = vst.msk [vmem:[#allocation2 + $0x140] sm:$0xff] %vm416, %v1101
    %1129 = vst.msk [vmem:[#allocation2 + $0x150] sm:$0xff] %vm416, %v1103
    %1130 = vst.msk [vmem:[#allocation2 + $0x160] sm:$0xff] %vm416, %v1105
    %v1131 = vld [vmem:[%s0 + $0x69] sm:$0xff]
    %v1132 = vld [vmem:[%s0 + $0x71] sm:$0xff]
    %v1133 = vld [vmem:[%s0 + $0x79] sm:$0xff]
    %v1134 = vld [vmem:[%s0 + $0x81] sm:$0xff]
    %v1135 = vld [vmem:[%s0 + $0x89] sm:$0xff]
    %v1136 = vld [vmem:[%s0 + $0x91] sm:$0xff]
    %v1137 = vld [vmem:[%s0 + $0x99] sm:$0xff]
    %v1138 = vld [vmem:[%s0 + $0xa1] sm:$0xff]
    %v1139 = vld [vmem:[%s0 + $0xa9] sm:$0xff]
    %v1140 = vld [vmem:[%s0 + $0xb1] sm:$0xff]
    %v1141 = vld [vmem:[%s0 + $0xb9] sm:$0xff]
    %v1142 = vld [vmem:[%s0 + $0xc1] sm:$0xf]
    %v1155 = vrot.slane %v1131, 4
    %v1156 = vrot.slane %v1132, 4
    %v1157 = vsel %vm602, %v1155, %v1156
    %v1158 = vrot.slane %v1133, 4
    %v1159 = vsel %vm602, %v1156, %v1158
    %v1160 = vrot.slane %v1134, 4
    %v1161 = vsel %vm602, %v1158, %v1160
    %v1162 = vrot.slane %v1135, 4
    %v1163 = vsel %vm602, %v1160, %v1162
    %v1164 = vrot.slane %v1136, 4
    %v1165 = vsel %vm602, %v1162, %v1164
    %v1166 = vrot.slane %v1137, 4
    %v1167 = vsel %vm602, %v1164, %v1166
    %v1168 = vrot.slane %v1138, 4
    %v1169 = vsel %vm602, %v1166, %v1168
    %v1170 = vrot.slane %v1139, 4
    %v1171 = vsel %vm602, %v1168, %v1170
    %v1172 = vrot.slane %v1140, 4
    %v1173 = vsel %vm602, %v1170, %v1172
    %v1174 = vrot.slane %v1141, 4
    %v1175 = vsel %vm602, %v1172, %v1174
    %v1176 = vrot.slane %v1142, 4
    %v1177 = vsel %vm602, %v1174, %v1176
    %1178 = vrot.lane.b32.xlu0 %v1155, 96
    %v1179 = vpop.permute.xlu0 %1178
    %1180 = vrot.lane.b32.xlu0 %v1157, 96
    %v1181 = vpop.permute.xlu0 %1180
    %1182 = vrot.lane.b32.xlu0 %v1159, 96
    %v1183 = vpop.permute.xlu0 %1182
    %1184 = vrot.lane.b32.xlu0 %v1161, 96
    %v1185 = vpop.permute.xlu0 %1184
    %1186 = vrot.lane.b32.xlu0 %v1163, 96
    %v1187 = vpop.permute.xlu0 %1186
    %1188 = vrot.lane.b32.xlu0 %v1165, 96
    %v1189 = vpop.permute.xlu0 %1188
    %1190 = vrot.lane.b32.xlu0 %v1167, 96
    %v1191 = vpop.permute.xlu0 %1190
    %1192 = vrot.lane.b32.xlu0 %v1169, 96
    %v1193 = vpop.permute.xlu0 %1192
    %1194 = vrot.lane.b32.xlu0 %v1171, 96
    %v1195 = vpop.permute.xlu0 %1194
    %1196 = vrot.lane.b32.xlu0 %v1173, 96
    %v1197 = vpop.permute.xlu0 %1196
    %1198 = vrot.lane.b32.xlu0 %v1175, 96
    %v1199 = vpop.permute.xlu0 %1198
    %1200 = vrot.lane.b32.xlu0 %v1177, 96
    %v1201 = vpop.permute.xlu0 %1200
    %vm1214 = vcmask 917252
    %1215 = vst.msk [vmem:[#allocation2 + $0xb0] sm:$0xf0] %vm1214, %v1179
    %1216 = vst.msk [vmem:[#allocation2 + $0xc0] sm:$0xff] %vm490, %v1181
    %1217 = vst.msk [vmem:[#allocation2 + $0xd0] sm:$0xff] %vm490, %v1183
    %1218 = vst.msk [vmem:[#allocation2 + $0xe0] sm:$0xff] %vm490, %v1185
    %1219 = vst.msk [vmem:[#allocation2 + $0xf0] sm:$0xff] %vm490, %v1187
    %1220 = vst.msk [vmem:[#allocation2 + $0x100] sm:$0xff] %vm490, %v1189
    %1221 = vst.msk [vmem:[#allocation2 + $0x110] sm:$0xff] %vm490, %v1191
    %1222 = vst.msk [vmem:[#allocation2 + $0x120] sm:$0xff] %vm490, %v1193
    %1223 = vst.msk [vmem:[#allocation2 + $0x130] sm:$0xff] %vm490, %v1195
    %1224 = vst.msk [vmem:[#allocation2 + $0x140] sm:$0xff] %vm490, %v1197
    %1225 = vst.msk [vmem:[#allocation2 + $0x150] sm:$0xff] %vm490, %v1199
    %1226 = vst.msk [vmem:[#allocation2 + $0x160] sm:$0xff] %vm490, %v1201
    %v1227 = vld [vmem:[%s0 + $0x6a] sm:$0xff]
    %v1228 = vld [vmem:[%s0 + $0x72] sm:$0xff]
    %v1229 = vld [vmem:[%s0 + $0x7a] sm:$0xff]
    %v1230 = vld [vmem:[%s0 + $0x82] sm:$0xff]
    %v1231 = vld [vmem:[%s0 + $0x8a] sm:$0xff]
    %v1232 = vld [vmem:[%s0 + $0x92] sm:$0xff]
    %v1233 = vld [vmem:[%s0 + $0x9a] sm:$0xff]
    %v1234 = vld [vmem:[%s0 + $0xa2] sm:$0xff]
    %v1235 = vld [vmem:[%s0 + $0xaa] sm:$0xff]
    %v1236 = vld [vmem:[%s0 + $0xb2] sm:$0xff]
    %v1237 = vld [vmem:[%s0 + $0xba] sm:$0xff]
    %v1238 = vld [vmem:[%s0 + $0xc2] sm:$0xf]
    %v1251 = vrot.slane %v1227, 4
    %v1252 = vrot.slane %v1228, 4
    %v1253 = vsel %vm602, %v1251, %v1252
    %v1254 = vrot.slane %v1229, 4
    %v1255 = vsel %vm602, %v1252, %v1254
    %v1256 = vrot.slane %v1230, 4
    %v1257 = vsel %vm602, %v1254, %v1256
    %v1258 = vrot.slane %v1231, 4
    %v1259 = vsel %vm602, %v1256, %v1258
    %v1260 = vrot.slane %v1232, 4
    %v1261 = vsel %vm602, %v1258, %v1260
    %v1262 = vrot.slane %v1233, 4
    %v1263 = vsel %vm602, %v1260, %v1262
    %v1264 = vrot.slane %v1234, 4
    %v1265 = vsel %vm602, %v1262, %v1264
    %v1266 = vrot.slane %v1235, 4
    %v1267 = vsel %vm602, %v1264, %v1266
    %v1268 = vrot.slane %v1236, 4
    %v1269 = vsel %vm602, %v1266, %v1268
    %v1270 = vrot.slane %v1237, 4
    %v1271 = vsel %vm602, %v1268, %v1270
    %v1272 = vrot.slane %v1238, 4
    %v1273 = vsel %vm602, %v1270, %v1272
    %1274 = vrot.lane.b32.xlu0 %v1251, 112
    %v1275 = vpop.permute.xlu0 %1274
    %1276 = vrot.lane.b32.xlu0 %v1253, 112
    %v1277 = vpop.permute.xlu0 %1276
    %1278 = vrot.lane.b32.xlu0 %v1255, 112
    %v1279 = vpop.permute.xlu0 %1278
    %1280 = vrot.lane.b32.xlu0 %v1257, 112
    %v1281 = vpop.permute.xlu0 %1280
    %1282 = vrot.lane.b32.xlu0 %v1259, 112
    %v1283 = vpop.permute.xlu0 %1282
    %1284 = vrot.lane.b32.xlu0 %v1261, 112
    %v1285 = vpop.permute.xlu0 %1284
    %1286 = vrot.lane.b32.xlu0 %v1263, 112
    %v1287 = vpop.permute.xlu0 %1286
    %1288 = vrot.lane.b32.xlu0 %v1265, 112
    %v1289 = vpop.permute.xlu0 %1288
    %1290 = vrot.lane.b32.xlu0 %v1267, 112
    %v1291 = vpop.permute.xlu0 %1290
    %1292 = vrot.lane.b32.xlu0 %v1269, 112
    %v1293 = vpop.permute.xlu0 %1292
    %1294 = vrot.lane.b32.xlu0 %v1271, 112
    %v1295 = vpop.permute.xlu0 %1294
    %1296 = vrot.lane.b32.xlu0 %v1273, 112
    %v1297 = vpop.permute.xlu0 %1296
    %vm1310 = vcmask 1048452
    %1311 = vst.msk [vmem:[#allocation2 + $0xb0] sm:$0xf0] %vm1310, %v1275
    %1312 = vst.msk [vmem:[#allocation2 + $0xc0] sm:$0xff] %vm564, %v1277
    %1313 = vst.msk [vmem:[#allocation2 + $0xd0] sm:$0xff] %vm564, %v1279
    %1314 = vst.msk [vmem:[#allocation2 + $0xe0] sm:$0xff] %vm564, %v1281
    %1315 = vst.msk [vmem:[#allocation2 + $0xf0] sm:$0xff] %vm564, %v1283
    %1316 = vst.msk [vmem:[#allocation2 + $0x100] sm:$0xff] %vm564, %v1285
    %1317 = vst.msk [vmem:[#allocation2 + $0x110] sm:$0xff] %vm564, %v1287
    %1318 = vst.msk [vmem:[#allocation2 + $0x120] sm:$0xff] %vm564, %v1289
    %1319 = vst.msk [vmem:[#allocation2 + $0x130] sm:$0xff] %vm564, %v1291
    %1320 = vst.msk [vmem:[#allocation2 + $0x140] sm:$0xff] %vm564, %v1293
    %1321 = vst.msk [vmem:[#allocation2 + $0x150] sm:$0xff] %vm564, %v1295
    %1322 = vst.msk [vmem:[#allocation2 + $0x160] sm:$0xff] %vm564, %v1297
    %v1323 = vld [vmem:[#allocation2] sm:$0xff]
    %v1324 = vld [vmem:[#allocation2 + $0x10] sm:$0xff]
    %v1325 = vld [vmem:[#allocation2 + $0x20] sm:$0xff]
    %v1326 = vld [vmem:[#allocation2 + $0x30] sm:$0xff]
    %v1327 = vld [vmem:[#allocation2 + $0x40] sm:$0xff]
    %v1328 = vld [vmem:[#allocation2 + $0x50] sm:$0xff]
    %v1329 = vld [vmem:[#allocation2 + $0x60] sm:$0xff]
    %v1330 = vld [vmem:[#allocation2 + $0x70] sm:$0xff]
    %v1331 = vld [vmem:[#allocation2 + $0x80] sm:$0xff]
    %v1332 = vld [vmem:[#allocation2 + $0x90] sm:$0xff]
    %v1333 = vld [vmem:[#allocation2 + $0xa0] sm:$0xff]
    %v1334 = vld [vmem:[#allocation2 + $0xb0] sm:$0xff]
    %v1335 = vld [vmem:[#allocation2 + $0xc0] sm:$0xff]
    %v1336 = vld [vmem:[#allocation2 + $0xd0] sm:$0xff]
    %v1337 = vld [vmem:[#allocation2 + $0xe0] sm:$0xff]
    %v1338 = vld [vmem:[#allocation2 + $0xf0] sm:$0xff]
    %v1339 = vld [vmem:[#allocation2 + $0x100] sm:$0xff]
    %v1340 = vld [vmem:[#allocation2 + $0x110] sm:$0xff]
    %v1341 = vld [vmem:[#allocation2 + $0x120] sm:$0xff]
    %v1342 = vld [vmem:[#allocation2 + $0x130] sm:$0xff]
    %v1343 = vld [vmem:[#allocation2 + $0x140] sm:$0xff]
    %v1344 = vld [vmem:[#allocation2 + $0x150] sm:$0xff]
    %v1345 = vld [vmem:[#allocation2 + $0x160] sm:$0xff]
    %v1346 = vld [vmem:[#allocation4] sm:$0xff]
    %v1347 = vld [vmem:[#allocation4 + $0x8] sm:$0xff]
    %v1348 = vld [vmem:[#allocation4 + $0x10] sm:$0xff]
    %v1349 = vld [vmem:[#allocation4 + $0x18] sm:$0xff]
    %v1350 = vld [vmem:[#allocation4 + $0x20] sm:$0xff]
    %v1351 = vld [vmem:[#allocation4 + $0x28] sm:$0xff]
    %v1352 = vld [vmem:[#allocation4 + $0x30] sm:$0xff]
    %v1353 = vld [vmem:[#allocation4 + $0x38] sm:$0xff]
    %v1354 = vld [vmem:[#allocation4 + $0x40] sm:$0xff]
    %v1355 = vld [vmem:[#allocation4 + $0x48] sm:$0xff]
    %v1356 = vld [vmem:[#allocation4 + $0x50] sm:$0xff]
    %v1357 = vld [vmem:[#allocation4 + $0x58] sm:$0xff]
    %v1358 = vld [vmem:[#allocation4 + $0x60] sm:$0xff]
    %v1359 = vld [vmem:[#allocation4 + $0x68] sm:$0xff]
    %v1360 = vld [vmem:[#allocation4 + $0x70] sm:$0xff]
    %v1361 = vld [vmem:[#allocation4 + $0x78] sm:$0xff]
    %1362 = vmatpush.msra.mxu0 %v1361
    %1363 = vmatpush.msra.mxu0 %v1360
    %1364 = vmatpush.msra.mxu0 %v1359
    %1365 = vmatpush.msra.mxu0 %v1358
    %1366 = vmatpush.msra.mxu0 %v1357
    %1367 = vmatpush.msra.mxu0 %v1356
    %1368 = vmatpush.msra.mxu0 %v1355
    %1369 = vmatpush.msra.mxu0 %v1354
    %1370 = vmatpush.msra.mxu0 %v1353
    %1371 = vmatpush.msra.mxu0 %v1352
    %1372 = vmatpush.msra.mxu0 %v1351
    %1373 = vmatpush.msra.mxu0 %v1350
    %1374 = vmatpush.msra.mxu0 %v1349
    %1375 = vmatpush.msra.mxu0 %v1348
    %1376 = vmatpush.msra.mxu0 %v1347
    %1377 = vmatpush.msra.mxu0 %v1346
    %1378 = vmatmul.f32.gmra.mxu0 %v1323
    %v1379 = vpop.f32.mrf.mxu0
    %v1380 = vadd.f32 0.0, %v1379
    %1381 = vmatmul.f32.gmra.mxu0 %v1324
    %v1382 = vpop.f32.mrf.mxu0
    %v1383 = vadd.f32 0.0, %v1382
    %1384 = vmatmul.f32.gmra.mxu0 %v1325
    %v1385 = vpop.f32.mrf.mxu0
    %v1386 = vadd.f32 0.0, %v1385
    %1387 = vmatmul.f32.gmra.mxu0 %v1326
    %v1388 = vpop.f32.mrf.mxu0
    %v1389 = vadd.f32 0.0, %v1388
    %1390 = vmatmul.f32.gmra.mxu0 %v1327
    %v1391 = vpop.f32.mrf.mxu0
    %v1392 = vadd.f32 0.0, %v1391
    %1393 = vmatmul.f32.gmra.mxu0 %v1328
    %v1394 = vpop.f32.mrf.mxu0
    %v1395 = vadd.f32 0.0, %v1394
    %1396 = vmatmul.f32.gmra.mxu0 %v1329
    %v1397 = vpop.f32.mrf.mxu0
    %v1398 = vadd.f32 0.0, %v1397
    %1399 = vmatmul.f32.gmra.mxu0 %v1330
    %v1400 = vpop.f32.mrf.mxu0
    %v1401 = vadd.f32 0.0, %v1400
    %1402 = vmatmul.f32.gmra.mxu0 %v1331
    %v1403 = vpop.f32.mrf.mxu0
    %v1404 = vadd.f32 0.0, %v1403
    %1405 = vmatmul.f32.gmra.mxu0 %v1332
    %v1406 = vpop.f32.mrf.mxu0
    %v1407 = vadd.f32 0.0, %v1406
    %1408 = vmatmul.f32.gmra.mxu0 %v1333
    %v1409 = vpop.f32.mrf.mxu0
    %v1410 = vadd.f32 0.0, %v1409
    %1411 = vmatmul.f32.gmra.mxu0 %v1334
    %v1412 = vpop.f32.mrf.mxu0
    %v1413 = vadd.f32 0.0, %v1412
    %1414 = vmatmul.f32.gmra.mxu0 %v1335
    %v1415 = vpop.f32.mrf.mxu0
    %v1416 = vadd.f32 0.0, %v1415
    %1417 = vmatmul.f32.gmra.mxu0 %v1336
    %v1418 = vpop.f32.mrf.mxu0
    %v1419 = vadd.f32 0.0, %v1418
    %1420 = vmatmul.f32.gmra.mxu0 %v1337
    %v1421 = vpop.f32.mrf.mxu0
    %v1422 = vadd.f32 0.0, %v1421
    %1423 = vmatmul.f32.gmra.mxu0 %v1338
    %v1424 = vpop.f32.mrf.mxu0
    %v1425 = vadd.f32 0.0, %v1424
    %1426 = vmatmul.f32.gmra.mxu0 %v1339
    %v1427 = vpop.f32.mrf.mxu0
    %v1428 = vadd.f32 0.0, %v1427
    %1429 = vmatmul.f32.gmra.mxu0 %v1340
    %v1430 = vpop.f32.mrf.mxu0
    %v1431 = vadd.f32 0.0, %v1430
    %1432 = vmatmul.f32.gmra.mxu0 %v1341
    %v1433 = vpop.f32.mrf.mxu0
    %v1434 = vadd.f32 0.0, %v1433
    %1435 = vmatmul.f32.gmra.mxu0 %v1342
    %v1436 = vpop.f32.mrf.mxu0
    %v1437 = vadd.f32 0.0, %v1436
    %1438 = vmatmul.f32.gmra.mxu0 %v1343
    %v1439 = vpop.f32.mrf.mxu0
    %v1440 = vadd.f32 0.0, %v1439
    %1441 = vmatmul.f32.gmra.mxu0 %v1344
    %v1442 = vpop.f32.mrf.mxu0
    %v1443 = vadd.f32 0.0, %v1442
    %1444 = vmatmul.f32.gmra.mxu0 %v1345
    %v1445 = vpop.f32.mrf.mxu0
    %v1446 = vadd.f32 0.0, %v1445
    %1447 = vdwg.mxu0
    %v1448 = vsel %vm46, %v1380, 0.0
    %v1449 = vsel %vm46, %v1383, 0.0
    %v1450 = vadd.f32 %v1448, %v1449
    %v1451 = vsel %vm46, %v1386, 0.0
    %v1452 = vadd.f32 %v1450, %v1451
    %v1453 = vsel %vm46, %v1389, 0.0
    %v1454 = vadd.f32 %v1452, %v1453
    %v1455 = vsel %vm46, %v1392, 0.0
    %v1456 = vadd.f32 %v1454, %v1455
    %v1457 = vsel %vm46, %v1395, 0.0
    %v1458 = vadd.f32 %v1456, %v1457
    %v1459 = vsel %vm46, %v1398, 0.0
    %v1460 = vadd.f32 %v1458, %v1459
    %v1461 = vsel %vm46, %v1401, 0.0
    %v1462 = vadd.f32 %v1460, %v1461
    %v1463 = vsel %vm46, %v1404, 0.0
    %v1464 = vadd.f32 %v1462, %v1463
    %v1465 = vsel %vm46, %v1407, 0.0
    %v1466 = vadd.f32 %v1464, %v1465
    %v1467 = vsel %vm46, %v1410, 0.0
    %v1468 = vadd.f32 %v1466, %v1467
    %v1469 = vsel %vm46, %v1413, 0.0
    %v1470 = vadd.f32 %v1468, %v1469
    %v1471 = vsel %vm46, %v1416, 0.0
    %v1472 = vadd.f32 %v1470, %v1471
    %v1473 = vsel %vm46, %v1419, 0.0
    %v1474 = vadd.f32 %v1472, %v1473
    %v1475 = vsel %vm46, %v1422, 0.0
    %v1476 = vadd.f32 %v1474, %v1475
    %v1477 = vsel %vm46, %v1425, 0.0
    %v1478 = vadd.f32 %v1476, %v1477
    %v1479 = vsel %vm46, %v1428, 0.0
    %v1480 = vadd.f32 %v1478, %v1479
    %v1481 = vsel %vm46, %v1431, 0.0
    %v1482 = vadd.f32 %v1480, %v1481
    %v1483 = vsel %vm46, %v1434, 0.0
    %v1484 = vadd.f32 %v1482, %v1483
    %v1485 = vsel %vm46, %v1437, 0.0
    %v1486 = vadd.f32 %v1484, %v1485
    %v1487 = vsel %vm46, %v1440, 0.0
    %v1488 = vadd.f32 %v1486, %v1487
    %v1489 = vsel %vm46, %v1443, 0.0
    %v1490 = vadd.f32 %v1488, %v1489
    %v1491 = vsel %vm46, %v1446, 0.0
    %v1492 = vadd.f32 %v1490, %v1491
    %v1493 = vrot.slane %v1492, 4
    %v1494 = vadd.f32 %v1492, %v1493
    %v1495 = vrot.slane %v1494, 2
    %v1496 = vadd.f32 %v1494, %v1495
    %v1497 = vrot.slane %v1496, 1
    %v1498 = vadd.f32 %v1496, %v1497
    %v1499 = vmul.f32 %v1498, 0.0054347827
    %v1500 = vsub.f32 %v1380, %v1499
    %v1501 = vsub.f32 %v1383, %v1499
    %v1502 = vsub.f32 %v1386, %v1499
    %v1503 = vsub.f32 %v1389, %v1499
    %v1504 = vsub.f32 %v1392, %v1499
    %v1505 = vsub.f32 %v1395, %v1499
    %v1506 = vsub.f32 %v1398, %v1499
    %v1507 = vsub.f32 %v1401, %v1499
    %v1508 = vsub.f32 %v1404, %v1499
    %v1509 = vsub.f32 %v1407, %v1499
    %v1510 = vsub.f32 %v1410, %v1499
    %v1511 = vsub.f32 %v1413, %v1499
    %v1512 = vsub.f32 %v1416, %v1499
    %v1513 = vsub.f32 %v1419, %v1499
    %v1514 = vsub.f32 %v1422, %v1499
    %v1515 = vsub.f32 %v1425, %v1499
    %v1516 = vsub.f32 %v1428, %v1499
    %v1517 = vsub.f32 %v1431, %v1499
    %v1518 = vsub.f32 %v1434, %v1499
    %v1519 = vsub.f32 %v1437, %v1499
    %v1520 = vsub.f32 %v1440, %v1499
    %v1521 = vsub.f32 %v1443, %v1499
    %v1522 = vsub.f32 %v1446, %v1499
    %v1523 = vmul.f32 %v1500, %v1500
    %v1524 = vmul.f32 %v1501, %v1501
    %v1525 = vmul.f32 %v1502, %v1502
    %v1526 = vmul.f32 %v1503, %v1503
    %v1527 = vmul.f32 %v1504, %v1504
    %v1528 = vmul.f32 %v1505, %v1505
    %v1529 = vmul.f32 %v1506, %v1506
    %v1530 = vmul.f32 %v1507, %v1507
    %v1531 = vmul.f32 %v1508, %v1508
    %v1532 = vmul.f32 %v1509, %v1509
    %v1533 = vmul.f32 %v1510, %v1510
    %v1534 = vmul.f32 %v1511, %v1511
    %v1535 = vmul.f32 %v1512, %v1512
    %v1536 = vmul.f32 %v1513, %v1513
    %v1537 = vmul.f32 %v1514, %v1514
    %v1538 = vmul.f32 %v1515, %v1515
    %v1539 = vmul.f32 %v1516, %v1516
    %v1540 = vmul.f32 %v1517, %v1517
    %v1541 = vmul.f32 %v1518, %v1518
    %v1542 = vmul.f32 %v1519, %v1519
    %v1543 = vmul.f32 %v1520, %v1520
    %v1544 = vmul.f32 %v1521, %v1521
    %v1545 = vmul.f32 %v1522, %v1522
    %v1546 = vsel %vm46, %v1523, 0.0
    %v1547 = vsel %vm46, %v1524, 0.0
    %v1548 = vadd.f32 %v1546, %v1547
    %v1549 = vsel %vm46, %v1525, 0.0
    %v1550 = vadd.f32 %v1548, %v1549
    %v1551 = vsel %vm46, %v1526, 0.0
    %v1552 = vadd.f32 %v1550, %v1551
    %v1553 = vsel %vm46, %v1527, 0.0
    %v1554 = vadd.f32 %v1552, %v1553
    %v1555 = vsel %vm46, %v1528, 0.0
    %v1556 = vadd.f32 %v1554, %v1555
    %v1557 = vsel %vm46, %v1529, 0.0
    %v1558 = vadd.f32 %v1556, %v1557
    %v1559 = vsel %vm46, %v1530, 0.0
    %v1560 = vadd.f32 %v1558, %v1559
    %v1561 = vsel %vm46, %v1531, 0.0
    %v1562 = vadd.f32 %v1560, %v1561
    %v1563 = vsel %vm46, %v1532, 0.0
    %v1564 = vadd.f32 %v1562, %v1563
    %v1565 = vsel %vm46, %v1533, 0.0
    %v1566 = vadd.f32 %v1564, %v1565
    %v1567 = vsel %vm46, %v1534, 0.0
    %v1568 = vadd.f32 %v1566, %v1567
    %v1569 = vsel %vm46, %v1535, 0.0
    %v1570 = vadd.f32 %v1568, %v1569
    %v1571 = vsel %vm46, %v1536, 0.0
    %v1572 = vadd.f32 %v1570, %v1571
    %v1573 = vsel %vm46, %v1537, 0.0
    %v1574 = vadd.f32 %v1572, %v1573
    %v1575 = vsel %vm46, %v1538, 0.0
    %v1576 = vadd.f32 %v1574, %v1575
    %v1577 = vsel %vm46, %v1539, 0.0
    %v1578 = vadd.f32 %v1576, %v1577
    %v1579 = vsel %vm46, %v1540, 0.0
    %v1580 = vadd.f32 %v1578, %v1579
    %v1581 = vsel %vm46, %v1541, 0.0
    %v1582 = vadd.f32 %v1580, %v1581
    %v1583 = vsel %vm46, %v1542, 0.0
    %v1584 = vadd.f32 %v1582, %v1583
    %v1585 = vsel %vm46, %v1543, 0.0
    %v1586 = vadd.f32 %v1584, %v1585
    %v1587 = vsel %vm46, %v1544, 0.0
    %v1588 = vadd.f32 %v1586, %v1587
    %v1589 = vsel %vm46, %v1545, 0.0
    %v1590 = vadd.f32 %v1588, %v1589
    %v1591 = vrot.slane %v1590, 4
    %v1592 = vadd.f32 %v1590, %v1591
    %v1593 = vrot.slane %v1592, 2
    %v1594 = vadd.f32 %v1592, %v1593
    %v1595 = vrot.slane %v1594, 1
    %v1596 = vadd.f32 %v1594, %v1595
    %v1597 = vmul.f32 %v1596, 0.0054347827
    %v1598 = vld [vmem:[%s2] sm:$0x1]
    %v1599 = vld [vmem:[%s2 + $0x1] sm:$0x1]
    %v1600 = vadd.f32 %v1597, 1e-05
    %v1601 = vrsqrt.pop %v1600
    %v1602 = vmul.f32 %v1601, %v1600
    %v1603 = vmul.f32 %v1602, %v1601
    %v1604 = vmul.f32 0.5, %v1603
    %v1605 = vsub.f32 1.5, %v1604
    %v1606 = vmul.f32 %v1601, %v1605
    %vm1607 = vweird.f32 %v1600
    %vm1608 = vweird.f32 %v1601
    %vm1609 = vmor %vm1607, %vm1608
    %v1610 = vsel %vm1609, %v1601, %v1606
    %v1611 = vmul.f32 %v1610, %v1598
    %v1612 = vperm.slane %v1611, 0
    %v1613 = vmul.f32 %v1500, %v1612
    %v1614 = vmul.f32 %v1501, %v1612
    %v1615 = vmul.f32 %v1502, %v1612
    %v1616 = vmul.f32 %v1503, %v1612
    %v1617 = vmul.f32 %v1504, %v1612
    %v1618 = vmul.f32 %v1505, %v1612
    %v1619 = vmul.f32 %v1506, %v1612
    %v1620 = vmul.f32 %v1507, %v1612
    %v1621 = vmul.f32 %v1508, %v1612
    %v1622 = vmul.f32 %v1509, %v1612
    %v1623 = vmul.f32 %v1510, %v1612
    %v1624 = vmul.f32 %v1511, %v1612
    %v1625 = vmul.f32 %v1512, %v1612
    %v1626 = vmul.f32 %v1513, %v1612
    %v1627 = vmul.f32 %v1514, %v1612
    %v1628 = vmul.f32 %v1515, %v1612
    %v1629 = vmul.f32 %v1516, %v1612
    %v1630 = vmul.f32 %v1517, %v1612
    %v1631 = vmul.f32 %v1518, %v1612
    %v1632 = vmul.f32 %v1519, %v1612
    %v1633 = vmul.f32 %v1520, %v1612
    %v1634 = vmul.f32 %v1521, %v1612
    %v1635 = vmul.f32 %v1522, %v1612
    %v1636 = vperm.slane %v1599, 0
    %v1637 = vadd.f32 %v1613, %v1636
    %v1638 = vadd.f32 %v1614, %v1636
    %v1639 = vadd.f32 %v1615, %v1636
    %v1640 = vadd.f32 %v1616, %v1636
    %v1641 = vadd.f32 %v1617, %v1636
    %v1642 = vadd.f32 %v1618, %v1636
    %v1643 = vadd.f32 %v1619, %v1636
    %v1644 = vadd.f32 %v1620, %v1636
    %v1645 = vadd.f32 %v1621, %v1636
    %v1646 = vadd.f32 %v1622, %v1636
    %v1647 = vadd.f32 %v1623, %v1636
    %v1648 = vadd.f32 %v1624, %v1636
    %v1649 = vadd.f32 %v1625, %v1636
    %v1650 = vadd.f32 %v1626, %v1636
    %v1651 = vadd.f32 %v1627, %v1636
    %v1652 = vadd.f32 %v1628, %v1636
    %v1653 = vadd.f32 %v1629, %v1636
    %v1654 = vadd.f32 %v1630, %v1636
    %v1655 = vadd.f32 %v1631, %v1636
    %v1656 = vadd.f32 %v1632, %v1636
    %v1657 = vadd.f32 %v1633, %v1636
    %v1658 = vadd.f32 %v1634, %v1636
    %v1659 = vadd.f32 %v1635, %v1636
    %v1660 = vmax.f32 %v1637, 0.0
    %v1661 = vmax.f32 %v1638, 0.0
    %v1662 = vmax.f32 %v1639, 0.0
    %v1663 = vmax.f32 %v1640, 0.0
    %v1664 = vmax.f32 %v1641, 0.0
    %v1665 = vmax.f32 %v1642, 0.0
    %v1666 = vmax.f32 %v1643, 0.0
    %v1667 = vmax.f32 %v1644, 0.0
    %v1668 = vmax.f32 %v1645, 0.0
    %v1669 = vmax.f32 %v1646, 0.0
    %v1670 = vmax.f32 %v1647, 0.0
    %v1671 = vmax.f32 %v1648, 0.0
    %v1672 = vmax.f32 %v1649, 0.0
    %v1673 = vmax.f32 %v1650, 0.0
    %v1674 = vmax.f32 %v1651, 0.0
    %v1675 = vmax.f32 %v1652, 0.0
    %v1676 = vmax.f32 %v1653, 0.0
    %v1677 = vmax.f32 %v1654, 0.0
    %v1678 = vmax.f32 %v1655, 0.0
    %v1679 = vmax.f32 %v1656, 0.0
    %v1680 = vmax.f32 %v1657, 0.0
    %v1681 = vmax.f32 %v1658, 0.0
    %v1682 = vmax.f32 %v1659, 0.0
    %1683 = vst.msk [vmem:[#allocation3] sm:$0xff] %vm46, %v1660
    %1684 = vst.msk [vmem:[#allocation3 + $0x8] sm:$0xff] %vm46, %v1661
    %1685 = vst.msk [vmem:[#allocation3 + $0x10] sm:$0xff] %vm46, %v1662
    %1686 = vst.msk [vmem:[#allocation3 + $0x18] sm:$0xff] %vm46, %v1663
    %1687 = vst.msk [vmem:[#allocation3 + $0x20] sm:$0xff] %vm46, %v1664
    %1688 = vst.msk [vmem:[#allocation3 + $0x28] sm:$0xff] %vm46, %v1665
    %1689 = vst.msk [vmem:[#allocation3 + $0x30] sm:$0xff] %vm46, %v1666
    %1690 = vst.msk [vmem:[#allocation3 + $0x38] sm:$0xff] %vm46, %v1667
    %1691 = vst.msk [vmem:[#allocation3 + $0x40] sm:$0xff] %vm46, %v1668
    %1692 = vst.msk [vmem:[#allocation3 + $0x48] sm:$0xff] %vm46, %v1669
    %1693 = vst.msk [vmem:[#allocation3 + $0x50] sm:$0xff] %vm46, %v1670
    %1694 = vst.msk [vmem:[#allocation3 + $0x58] sm:$0xff] %vm46, %v1671
    %1695 = vst.msk [vmem:[#allocation3 + $0x60] sm:$0xff] %vm46, %v1672
    %1696 = vst.msk [vmem:[#allocation3 + $0x68] sm:$0xff] %vm46, %v1673
    %1697 = vst.msk [vmem:[#allocation3 + $0x70] sm:$0xff] %vm46, %v1674
    %1698 = vst.msk [vmem:[#allocation3 + $0x78] sm:$0xff] %vm46, %v1675
    %1699 = vst.msk [vmem:[#allocation3 + $0x80] sm:$0xff] %vm46, %v1676
    %1700 = vst.msk [vmem:[#allocation3 + $0x88] sm:$0xff] %vm46, %v1677
    %1701 = vst.msk [vmem:[#allocation3 + $0x90] sm:$0xff] %vm46, %v1678
    %1702 = vst.msk [vmem:[#allocation3 + $0x98] sm:$0xff] %vm46, %v1679
    %1703 = vst.msk [vmem:[#allocation3 + $0xa0] sm:$0xff] %vm46, %v1680
    %1704 = vst.msk [vmem:[#allocation3 + $0xa8] sm:$0xff] %vm46, %v1681
    %1705 = vst.msk [vmem:[#allocation3 + $0xb0] sm:$0xff] %vm46, %v1682
    %v1706 = vld [vmem:[#allocation3] ss:$2 sm:$0xff]
    %s1707 = scalar_lea.vmem [#allocation3], 16
    %v1708 = vld [vmem:[%s1707] ss:$2 sm:$0xff]
    %s1709 = scalar_lea.vmem [#allocation3], 32
    %v1710 = vld [vmem:[%s1709] ss:$2 sm:$0xff]
    %s1711 = scalar_lea.vmem [#allocation3], 48
    %v1712 = vld [vmem:[%s1711] ss:$2 sm:$0xff]
    %s1713 = scalar_lea.vmem [#allocation3], 64
    %v1714 = vld [vmem:[%s1713] ss:$2 sm:$0xff]
    %s1715 = scalar_lea.vmem [#allocation3], 80
    %v1716 = vld [vmem:[%s1715] ss:$2 sm:$0xf]
    %s1717 = scalar_lea.vmem [#allocation3], 1
    %v1718 = vld [vmem:[%s1717] ss:$2 sm:$0xff]
    %s1719 = scalar_lea.vmem [#allocation3], 17
    %v1720 = vld [vmem:[%s1719] ss:$2 sm:$0xff]
    %s1721 = scalar_lea.vmem [#allocation3], 33
    %v1722 = vld [vmem:[%s1721] ss:$2 sm:$0xff]
    %s1723 = scalar_lea.vmem [#allocation3], 49
    %v1724 = vld [vmem:[%s1723] ss:$2 sm:$0xff]
    %s1725 = scalar_lea.vmem [#allocation3], 65
    %v1726 = vld [vmem:[%s1725] ss:$2 sm:$0xff]
    %s1727 = scalar_lea.vmem [#allocation3], 81
    %v1728 = vld [vmem:[%s1727] ss:$2 sm:$0xf]
    %v1729 = vmax.f32 %v1706, %v1718
    %v1730 = vmax.f32 %v1708, %v1720
    %v1731 = vmax.f32 %v1710, %v1722
    %v1732 = vmax.f32 %v1712, %v1724
    %v1733 = vmax.f32 %v1714, %v1726
    %v1734 = vmax.f32 %v1716, %v1728
    %1735 = vst.msk [vmem:[#allocation2] sm:$0xff] %vm46, %v1729
    %1736 = vst.msk [vmem:[#allocation2 + $0x10] sm:$0xff] %vm46, %v1730
    %1737 = vst.msk [vmem:[#allocation2 + $0x20] sm:$0xff] %vm46, %v1731
    %1738 = vst.msk [vmem:[#allocation2 + $0x30] sm:$0xff] %vm46, %v1732
    %1739 = vst.msk [vmem:[#allocation2 + $0x40] sm:$0xff] %vm46, %v1733
    %1740 = vst.msk [vmem:[#allocation2 + $0x50] sm:$0xf] %vm58, %v1734
    %s1741 = scalar_lea.vmem [#allocation3], 2
    %v1742 = vld [vmem:[%s1741] ss:$2 sm:$0xff]
    %s1743 = scalar_lea.vmem [#allocation3], 18
    %v1744 = vld [vmem:[%s1743] ss:$2 sm:$0xff]
    %s1745 = scalar_lea.vmem [#allocation3], 34
    %v1746 = vld [vmem:[%s1745] ss:$2 sm:$0xff]
    %s1747 = scalar_lea.vmem [#allocation3], 50
    %v1748 = vld [vmem:[%s1747] ss:$2 sm:$0xff]
    %s1749 = scalar_lea.vmem [#allocation3], 66
    %v1750 = vld [vmem:[%s1749] ss:$2 sm:$0xff]
    %s1751 = scalar_lea.vmem [#allocation3], 82
    %v1752 = vld [vmem:[%s1751] ss:$2 sm:$0xf]
    %s1753 = scalar_lea.vmem [#allocation3], 3
    %v1754 = vld [vmem:[%s1753] ss:$2 sm:$0xff]
    %s1755 = scalar_lea.vmem [#allocation3], 19
    %v1756 = vld [vmem:[%s1755] ss:$2 sm:$0xff]
    %s1757 = scalar_lea.vmem [#allocation3], 35
    %v1758 = vld [vmem:[%s1757] ss:$2 sm:$0xff]
    %s1759 = scalar_lea.vmem [#allocation3], 51
    %v1760 = vld [vmem:[%s1759] ss:$2 sm:$0xff]
    %s1761 = scalar_lea.vmem [#allocation3], 67
    %v1762 = vld [vmem:[%s1761] ss:$2 sm:$0xff]
    %s1763 = scalar_lea.vmem [#allocation3], 83
    %v1764 = vld [vmem:[%s1763] ss:$2 sm:$0xf]
    %v1765 = vmax.f32 %v1742, %v1754
    %v1766 = vmax.f32 %v1744, %v1756
    %v1767 = vmax.f32 %v1746, %v1758
    %v1768 = vmax.f32 %v1748, %v1760
    %v1769 = vmax.f32 %v1750, %v1762
    %v1770 = vmax.f32 %v1752, %v1764
    %1777 = vrot.lane.b32.xlu0 %v1765, 16
    %v1778 = vpop.permute.xlu0 %1777
    %1779 = vrot.lane.b32.xlu0 %v1766, 16
    %v1780 = vpop.permute.xlu0 %1779
    %1781 = vrot.lane.b32.xlu0 %v1767, 16
    %v1782 = vpop.permute.xlu0 %1781
    %1783 = vrot.lane.b32.xlu0 %v1768, 16
    %v1784 = vpop.permute.xlu0 %1783
    %1785 = vrot.lane.b32.xlu0 %v1769, 16
    %v1786 = vpop.permute.xlu0 %1785
    %1787 = vrot.lane.b32.xlu0 %v1770, 16
    %v1788 = vpop.permute.xlu0 %1787
    %1795 = vst.msk [vmem:[#allocation2] sm:$0xff] %vm120, %v1778
    %1796 = vst.msk [vmem:[#allocation2 + $0x10] sm:$0xff] %vm120, %v1780
    %1797 = vst.msk [vmem:[#allocation2 + $0x20] sm:$0xff] %vm120, %v1782
    %1798 = vst.msk [vmem:[#allocation2 + $0x30] sm:$0xff] %vm120, %v1784
    %1799 = vst.msk [vmem:[#allocation2 + $0x40] sm:$0xff] %vm120, %v1786
    %1800 = vst.msk [vmem:[#allocation2 + $0x50] sm:$0xf] %vm132, %v1788
    %s1801 = scalar_lea.vmem [#allocation3], 4
    %v1802 = vld [vmem:[%s1801] ss:$2 sm:$0xff]
    %s1803 = scalar_lea.vmem [#allocation3], 20
    %v1804 = vld [vmem:[%s1803] ss:$2 sm:$0xff]
    %s1805 = scalar_lea.vmem [#allocation3], 36
    %v1806 = vld [vmem:[%s1805] ss:$2 sm:$0xff]
    %s1807 = scalar_lea.vmem [#allocation3], 52
    %v1808 = vld [vmem:[%s1807] ss:$2 sm:$0xff]
    %s1809 = scalar_lea.vmem [#allocation3], 68
    %v1810 = vld [vmem:[%s1809] ss:$2 sm:$0xff]
    %s1811 = scalar_lea.vmem [#allocation3], 84
    %v1812 = vld [vmem:[%s1811] ss:$2 sm:$0xf]
    %s1813 = scalar_lea.vmem [#allocation3], 5
    %v1814 = vld [vmem:[%s1813] ss:$2 sm:$0xff]
    %s1815 = scalar_lea.vmem [#allocation3], 21
    %v1816 = vld [vmem:[%s1815] ss:$2 sm:$0xff]
    %s1817 = scalar_lea.vmem [#allocation3], 37
    %v1818 = vld [vmem:[%s1817] ss:$2 sm:$0xff]
    %s1819 = scalar_lea.vmem [#allocation3], 53
    %v1820 = vld [vmem:[%s1819] ss:$2 sm:$0xff]
    %s1821 = scalar_lea.vmem [#allocation3], 69
    %v1822 = vld [vmem:[%s1821] ss:$2 sm:$0xff]
    %s1823 = scalar_lea.vmem [#allocation3], 85
    %v1824 = vld [vmem:[%s1823] ss:$2 sm:$0xf]
    %v1825 = vmax.f32 %v1802, %v1814
    %v1826 = vmax.f32 %v1804, %v1816
    %v1827 = vmax.f32 %v1806, %v1818
    %v1828 = vmax.f32 %v1808, %v1820
    %v1829 = vmax.f32 %v1810, %v1822
    %v1830 = vmax.f32 %v1812, %v1824
    %1837 = vrot.lane.b32.xlu0 %v1825, 32
    %v1838 = vpop.permute.xlu0 %1837
    %1839 = vrot.lane.b32.xlu0 %v1826, 32
    %v1840 = vpop.permute.xlu0 %1839
    %1841 = vrot.lane.b32.xlu0 %v1827, 32
    %v1842 = vpop.permute.xlu0 %1841
    %1843 = vrot.lane.b32.xlu0 %v1828, 32
    %v1844 = vpop.permute.xlu0 %1843
    %1845 = vrot.lane.b32.xlu0 %v1829, 32
    %v1846 = vpop.permute.xlu0 %1845
    %1847 = vrot.lane.b32.xlu0 %v1830, 32
    %v1848 = vpop.permute.xlu0 %1847
    %1855 = vst.msk [vmem:[#allocation2] sm:$0xff] %vm194, %v1838
    %1856 = vst.msk [vmem:[#allocation2 + $0x10] sm:$0xff] %vm194, %v1840
    %1857 = vst.msk [vmem:[#allocation2 + $0x20] sm:$0xff] %vm194, %v1842
    %1858 = vst.msk [vmem:[#allocation2 + $0x30] sm:$0xff] %vm194, %v1844
    %1859 = vst.msk [vmem:[#allocation2 + $0x40] sm:$0xff] %vm194, %v1846
    %1860 = vst.msk [vmem:[#allocation2 + $0x50] sm:$0xf] %vm206, %v1848
    %s1861 = scalar_lea.vmem [#allocation3], 92
    %v1862 = vld [vmem:[%s1861] ss:$2 sm:$0xff]
    %s1863 = scalar_lea.vmem [#allocation3], 108
    %v1864 = vld [vmem:[%s1863] ss:$2 sm:$0xff]
    %s1865 = scalar_lea.vmem [#allocation3], 124
    %v1866 = vld [vmem:[%s1865] ss:$2 sm:$0xff]
    %s1867 = scalar_lea.vmem [#allocation3], 140
    %v1868 = vld [vmem:[%s1867] ss:$2 sm:$0xff]
    %s1869 = scalar_lea.vmem [#allocation3], 156
    %v1870 = vld [vmem:[%s1869] ss:$2 sm:$0xff]
    %s1871 = scalar_lea.vmem [#allocation3], 172
    %v1872 = vld [vmem:[%s1871] ss:$2 sm:$0xf]
    %s1873 = scalar_lea.vmem [#allocation3], 93
    %v1874 = vld [vmem:[%s1873] ss:$2 sm:$0xff]
    %s1875 = scalar_lea.vmem [#allocation3], 109
    %v1876 = vld [vmem:[%s1875] ss:$2 sm:$0xff]
    %s1877 = scalar_lea.vmem [#allocation3], 125
    %v1878 = vld [vmem:[%s1877] ss:$2 sm:$0xff]
    %s1879 = scalar_lea.vmem [#allocation3], 141
    %v1880 = vld [vmem:[%s1879] ss:$2 sm:$0xff]
    %s1881 = scalar_lea.vmem [#allocation3], 157
    %v1882 = vld [vmem:[%s1881] ss:$2 sm:$0xff]
    %s1883 = scalar_lea.vmem [#allocation3], 173
    %v1884 = vld [vmem:[%s1883] ss:$2 sm:$0xf]
    %v1885 = vmax.f32 %v1862, %v1874
    %v1886 = vmax.f32 %v1864, %v1876
    %v1887 = vmax.f32 %v1866, %v1878
    %v1888 = vmax.f32 %v1868, %v1880
    %v1889 = vmax.f32 %v1870, %v1882
    %v1890 = vmax.f32 %v1872, %v1884
    %v1897 = vrot.slane %v1885, 4
    %v1898 = vrot.slane %v1886, 4
    %v1899 = vsel %vm602, %v1897, %v1898
    %v1900 = vrot.slane %v1887, 4
    %v1901 = vsel %vm602, %v1898, %v1900
    %v1902 = vrot.slane %v1888, 4
    %v1903 = vsel %vm602, %v1900, %v1902
    %v1904 = vrot.slane %v1889, 4
    %v1905 = vsel %vm602, %v1902, %v1904
    %v1906 = vrot.slane %v1890, 4
    %v1907 = vsel %vm602, %v1904, %v1906
    %1914 = vst.msk [vmem:[#allocation2 + $0x50] sm:$0xf0] %vm638, %v1897
    %1915 = vst.msk [vmem:[#allocation2 + $0x60] sm:$0xff] %vm46, %v1899
    %1916 = vst.msk [vmem:[#allocation2 + $0x70] sm:$0xff] %vm46, %v1901
    %1917 = vst.msk [vmem:[#allocation2 + $0x80] sm:$0xff] %vm46, %v1903
    %1918 = vst.msk [vmem:[#allocation2 + $0x90] sm:$0xff] %vm46, %v1905
    %1919 = vst.msk [vmem:[#allocation2 + $0xa0] sm:$0xff] %vm46, %v1907
    %s1920 = scalar_lea.vmem [#allocation3], 94
    %v1921 = vld [vmem:[%s1920] ss:$2 sm:$0xff]
    %s1922 = scalar_lea.vmem [#allocation3], 110
    %v1923 = vld [vmem:[%s1922] ss:$2 sm:$0xff]
    %s1924 = scalar_lea.vmem [#allocation3], 126
    %v1925 = vld [vmem:[%s1924] ss:$2 sm:$0xff]
    %s1926 = scalar_lea.vmem [#allocation3], 142
    %v1927 = vld [vmem:[%s1926] ss:$2 sm:$0xff]
    %s1928 = scalar_lea.vmem [#allocation3], 158
    %v1929 = vld [vmem:[%s1928] ss:$2 sm:$0xff]
    %s1930 = scalar_lea.vmem [#allocation3], 174
    %v1931 = vld [vmem:[%s1930] ss:$2 sm:$0xf]
    %s1932 = scalar_lea.vmem [#allocation3], 95
    %v1933 = vld [vmem:[%s1932] ss:$2 sm:$0xff]
    %s1934 = scalar_lea.vmem [#allocation3], 111
    %v1935 = vld [vmem:[%s1934] ss:$2 sm:$0xff]
    %s1936 = scalar_lea.vmem [#allocation3], 127
    %v1937 = vld [vmem:[%s1936] ss:$2 sm:$0xff]
    %s1938 = scalar_lea.vmem [#allocation3], 143
    %v1939 = vld [vmem:[%s1938] ss:$2 sm:$0xff]
    %s1940 = scalar_lea.vmem [#allocation3], 159
    %v1941 = vld [vmem:[%s1940] ss:$2 sm:$0xff]
    %s1942 = scalar_lea.vmem [#allocation3], 175
    %v1943 = vld [vmem:[%s1942] ss:$2 sm:$0xf]
    %v1944 = vmax.f32 %v1921, %v1933
    %v1945 = vmax.f32 %v1923, %v1935
    %v1946 = vmax.f32 %v1925, %v1937
    %v1947 = vmax.f32 %v1927, %v1939
    %v1948 = vmax.f32 %v1929, %v1941
    %v1949 = vmax.f32 %v1931, %v1943
    %v1956 = vrot.slane %v1944, 4
    %v1957 = vrot.slane %v1945, 4
    %v1958 = vsel %vm602, %v1956, %v1957
    %v1959 = vrot.slane %v1946, 4
    %v1960 = vsel %vm602, %v1957, %v1959
    %v1961 = vrot.slane %v1947, 4
    %v1962 = vsel %vm602, %v1959, %v1961
    %v1963 = vrot.slane %v1948, 4
    %v1964 = vsel %vm602, %v1961, %v1963
    %v1965 = vrot.slane %v1949, 4
    %v1966 = vsel %vm602, %v1963, %v1965
    %1967 = vrot.lane.b32.xlu0 %v1956, 16
    %v1968 = vpop.permute.xlu0 %1967
    %1969 = vrot.lane.b32.xlu0 %v1958, 16
    %v1970 = vpop.permute.xlu0 %1969
    %1971 = vrot.lane.b32.xlu0 %v1960, 16
    %v1972 = vpop.permute.xlu0 %1971
    %1973 = vrot.lane.b32.xlu0 %v1962, 16
    %v1974 = vpop.permute.xlu0 %1973
    %1975 = vrot.lane.b32.xlu0 %v1964, 16
    %v1976 = vpop.permute.xlu0 %1975
    %1977 = vrot.lane.b32.xlu0 %v1966, 16
    %v1978 = vpop.permute.xlu0 %1977
    %1985 = vst.msk [vmem:[#allocation2 + $0x50] sm:$0xf0] %vm734, %v1968
    %1986 = vst.msk [vmem:[#allocation2 + $0x60] sm:$0xff] %vm120, %v1970
    %1987 = vst.msk [vmem:[#allocation2 + $0x70] sm:$0xff] %vm120, %v1972
    %1988 = vst.msk [vmem:[#allocation2 + $0x80] sm:$0xff] %vm120, %v1974
    %1989 = vst.msk [vmem:[#allocation2 + $0x90] sm:$0xff] %vm120, %v1976
    %1990 = vst.msk [vmem:[#allocation2 + $0xa0] sm:$0xff] %vm120, %v1978
    %s1991 = scalar_lea.vmem [#allocation3], 96
    %v1992 = vld [vmem:[%s1991] ss:$2 sm:$0xff]
    %s1993 = scalar_lea.vmem [#allocation3], 112
    %v1994 = vld [vmem:[%s1993] ss:$2 sm:$0xff]
    %s1995 = scalar_lea.vmem [#allocation3], 128
    %v1996 = vld [vmem:[%s1995] ss:$2 sm:$0xff]
    %s1997 = scalar_lea.vmem [#allocation3], 144
    %v1998 = vld [vmem:[%s1997] ss:$2 sm:$0xff]
    %s1999 = scalar_lea.vmem [#allocation3], 160
    %v2000 = vld [vmem:[%s1999] ss:$2 sm:$0xff]
    %s2001 = scalar_lea.vmem [#allocation3], 176
    %v2002 = vld [vmem:[%s2001] ss:$2 sm:$0xf]
    %s2003 = scalar_lea.vmem [#allocation3], 97
    %v2004 = vld [vmem:[%s2003] ss:$2 sm:$0xff]
    %s2005 = scalar_lea.vmem [#allocation3], 113
    %v2006 = vld [vmem:[%s2005] ss:$2 sm:$0xff]
    %s2007 = scalar_lea.vmem [#allocation3], 129
    %v2008 = vld [vmem:[%s2007] ss:$2 sm:$0xff]
    %s2009 = scalar_lea.vmem [#allocation3], 145
    %v2010 = vld [vmem:[%s2009] ss:$2 sm:$0xff]
    %s2011 = scalar_lea.vmem [#allocation3], 161
    %v2012 = vld [vmem:[%s2011] ss:$2 sm:$0xff]
    %s2013 = scalar_lea.vmem [#allocation3], 177
    %v2014 = vld [vmem:[%s2013] ss:$2 sm:$0xf]
    %v2015 = vmax.f32 %v1992, %v2004
    %v2016 = vmax.f32 %v1994, %v2006
    %v2017 = vmax.f32 %v1996, %v2008
    %v2018 = vmax.f32 %v1998, %v2010
    %v2019 = vmax.f32 %v2000, %v2012
    %v2020 = vmax.f32 %v2002, %v2014
    %v2027 = vrot.slane %v2015, 4
    %v2028 = vrot.slane %v2016, 4
    %v2029 = vsel %vm602, %v2027, %v2028
    %v2030 = vrot.slane %v2017, 4
    %v2031 = vsel %vm602, %v2028, %v2030
    %v2032 = vrot.slane %v2018, 4
    %v2033 = vsel %vm602, %v2030, %v2032
    %v2034 = vrot.slane %v2019, 4
    %v2035 = vsel %vm602, %v2032, %v2034
    %v2036 = vrot.slane %v2020, 4
    %v2037 = vsel %vm602, %v2034, %v2036
    %2038 = vrot.lane.b32.xlu0 %v2027, 32
    %v2039 = vpop.permute.xlu0 %2038
    %2040 = vrot.lane.b32.xlu0 %v2029, 32
    %v2041 = vpop.permute.xlu0 %2040
    %2042 = vrot.lane.b32.xlu0 %v2031, 32
    %v2043 = vpop.permute.xlu0 %2042
    %2044 = vrot.lane.b32.xlu0 %v2033, 32
    %v2045 = vpop.permute.xlu0 %2044
    %2046 = vrot.lane.b32.xlu0 %v2035, 32
    %v2047 = vpop.permute.xlu0 %2046
    %2048 = vrot.lane.b32.xlu0 %v2037, 32
    %v2049 = vpop.permute.xlu0 %2048
    %2056 = vst.msk [vmem:[#allocation2 + $0x50] sm:$0xf0] %vm830, %v2039
    %2057 = vst.msk [vmem:[#allocation2 + $0x60] sm:$0xff] %vm194, %v2041
    %2058 = vst.msk [vmem:[#allocation2 + $0x70] sm:$0xff] %vm194, %v2043
    %2059 = vst.msk [vmem:[#allocation2 + $0x80] sm:$0xff] %vm194, %v2045
    %2060 = vst.msk [vmem:[#allocation2 + $0x90] sm:$0xff] %vm194, %v2047
    %2061 = vst.msk [vmem:[#allocation2 + $0xa0] sm:$0xff] %vm194, %v2049
    %v2062 = vld [vmem:[#allocation2] sm:$0xff]
    %v2063 = vld [vmem:[#allocation2 + $0x10] sm:$0xff]
    %v2064 = vld [vmem:[#allocation2 + $0x20] sm:$0xff]
    %v2065 = vld [vmem:[#allocation2 + $0x30] sm:$0xff]
    %v2066 = vld [vmem:[#allocation2 + $0x40] sm:$0xff]
    %v2067 = vld [vmem:[#allocation2 + $0x50] sm:$0xff]
    %v2068 = vld [vmem:[#allocation2 + $0x60] sm:$0xff]
    %v2069 = vld [vmem:[#allocation2 + $0x70] sm:$0xff]
    %v2070 = vld [vmem:[#allocation2 + $0x80] sm:$0xff]
    %v2071 = vld [vmem:[#allocation2 + $0x90] sm:$0xff]
    %v2072 = vld [vmem:[#allocation2 + $0xa0] sm:$0xff]
    %v2073 = vld [vmem:[#allocation4 + $0x80] sm:$0xff]
    %v2074 = vld [vmem:[#allocation4 + $0x88] sm:$0xff]
    %v2075 = vld [vmem:[#allocation4 + $0x90] sm:$0xff]
    %v2076 = vld [vmem:[#allocation4 + $0x98] sm:$0xff]
    %v2077 = vld [vmem:[#allocation4 + $0xa0] sm:$0xff]
    %v2078 = vld [vmem:[#allocation4 + $0xa8] sm:$0xff]
    %vm2079 = vcmask 392192
    %v2081 = vsel %vm2079, %v2062, 0
    %v2084 = vsel %vm2079, %v2063, 0
    %v2087 = vsel %vm2079, %v2064, 0
    %v2090 = vsel %vm2079, %v2065, 0
    %v2093 = vsel %vm2079, %v2066, 0
    %v2096 = vsel %vm2079, %v2067, 0
    %v2099 = vsel %vm2079, %v2068, 0
    %v2102 = vsel %vm2079, %v2069, 0
    %v2105 = vsel %vm2079, %v2070, 0
    %v2108 = vsel %vm2079, %v2071, 0
    %v2111 = vsel %vm2079, %v2072, 0
    %2113 = vmatpush.msra.mxu0 0.0
    %2114 = vmatpush.msra.mxu0 0.0
    %2115 = vmatpush.msra.mxu0 0.0
    %2116 = vmatpush.msra.mxu0 0.0
    %2117 = vmatpush.msra.mxu0 0.0
    %2118 = vmatpush.msra.mxu0 0.0
    %2119 = vmatpush.msra.mxu0 0.0
    %2120 = vmatpush.msra.mxu0 0.0
    %2121 = vmatpush.msra.mxu0 0.0
    %2122 = vmatpush.msra.mxu0 0.0
    %2123 = vmatpush.msra.mxu0 %v2078
    %2124 = vmatpush.msra.mxu0 %v2077
    %2125 = vmatpush.msra.mxu0 %v2076
    %2126 = vmatpush.msra.mxu0 %v2075
    %2127 = vmatpush.msra.mxu0 %v2074
    %2128 = vmatpush.msra.mxu0 %v2073
    %2129 = vmatmul.f32.gmra.mxu0 %v2081
    %v2130 = vpop.f32.mrf.mxu0
    %v2131 = vadd.f32 0.0, %v2130
    %2132 = vmatmul.f32.gmra.mxu0 %v2084
    %v2133 = vpop.f32.mrf.mxu0
    %v2134 = vadd.f32 0.0, %v2133
    %2135 = vmatmul.f32.gmra.mxu0 %v2087
    %v2136 = vpop.f32.mrf.mxu0
    %v2137 = vadd.f32 0.0, %v2136
    %2138 = vmatmul.f32.gmra.mxu0 %v2090
    %v2139 = vpop.f32.mrf.mxu0
    %v2140 = vadd.f32 0.0, %v2139
    %2141 = vmatmul.f32.gmra.mxu0 %v2093
    %v2142 = vpop.f32.mrf.mxu0
    %v2143 = vadd.f32 0.0, %v2142
    %2144 = vmatmul.f32.gmra.mxu0 %v2096
    %v2145 = vpop.f32.mrf.mxu0
    %v2146 = vadd.f32 0.0, %v2145
    %2147 = vmatmul.f32.gmra.mxu0 %v2099
    %v2148 = vpop.f32.mrf.mxu0
    %v2149 = vadd.f32 0.0, %v2148
    %2150 = vmatmul.f32.gmra.mxu0 %v2102
    %v2151 = vpop.f32.mrf.mxu0
    %v2152 = vadd.f32 0.0, %v2151
    %2153 = vmatmul.f32.gmra.mxu0 %v2105
    %v2154 = vpop.f32.mrf.mxu0
    %v2155 = vadd.f32 0.0, %v2154
    %2156 = vmatmul.f32.gmra.mxu0 %v2108
    %v2157 = vpop.f32.mrf.mxu0
    %v2158 = vadd.f32 0.0, %v2157
    %2159 = vmatmul.f32.gmra.mxu0 %v2111
    %v2160 = vpop.f32.mrf.mxu0
    %v2161 = vadd.f32 0.0, %v2160
    %2162 = vdwg.mxu0
    %vm2163 = vcmask 261120
    %v2164 = vsel %vm2163, %v2131, 0.0
    %v2165 = vsel %vm2163, %v2134, 0.0
    %v2166 = vadd.f32 %v2164, %v2165
    %v2167 = vsel %vm2163, %v2137, 0.0
    %v2168 = vadd.f32 %v2166, %v2167
    %v2169 = vsel %vm2163, %v2140, 0.0
    %v2170 = vadd.f32 %v2168, %v2169
    %v2171 = vsel %vm2163, %v2143, 0.0
    %v2172 = vadd.f32 %v2170, %v2171
    %v2173 = vsel %vm2163, %v2146, 0.0
    %v2174 = vadd.f32 %v2172, %v2173
    %v2175 = vsel %vm2163, %v2149, 0.0
    %v2176 = vadd.f32 %v2174, %v2175
    %v2177 = vsel %vm2163, %v2152, 0.0
    %v2178 = vadd.f32 %v2176, %v2177
    %v2179 = vsel %vm2163, %v2155, 0.0
    %v2180 = vadd.f32 %v2178, %v2179
    %v2181 = vsel %vm2163, %v2158, 0.0
    %v2182 = vadd.f32 %v2180, %v2181
    %v2183 = vsel %vm2163, %v2161, 0.0
    %v2184 = vadd.f32 %v2182, %v2183
    %v2185 = vrot.slane %v2184, 4
    %v2186 = vadd.f32 %v2184, %v2185
    %v2187 = vrot.slane %v2186, 2
    %v2188 = vadd.f32 %v2186, %v2187
    %v2189 = vrot.slane %v2188, 1
    %v2190 = vadd.f32 %v2188, %v2189
    %v2191 = vmul.f32 %v2190, 0.011363637
    %v2192 = vsub.f32 %v2131, %v2191
    %v2193 = vsub.f32 %v2134, %v2191
    %v2194 = vsub.f32 %v2137, %v2191
    %v2195 = vsub.f32 %v2140, %v2191
    %v2196 = vsub.f32 %v2143, %v2191
    %v2197 = vsub.f32 %v2146, %v2191
    %v2198 = vsub.f32 %v2149, %v2191
    %v2199 = vsub.f32 %v2152, %v2191
    %v2200 = vsub.f32 %v2155, %v2191
    %v2201 = vsub.f32 %v2158, %v2191
    %v2202 = vsub.f32 %v2161, %v2191
    %v2203 = vmul.f32 %v2192, %v2192
    %v2204 = vmul.f32 %v2193, %v2193
    %v2205 = vmul.f32 %v2194, %v2194
    %v2206 = vmul.f32 %v2195, %v2195
    %v2207 = vmul.f32 %v2196, %v2196
    %v2208 = vmul.f32 %v2197, %v2197
    %v2209 = vmul.f32 %v2198, %v2198
    %v2210 = vmul.f32 %v2199, %v2199
    %v2211 = vmul.f32 %v2200, %v2200
    %v2212 = vmul.f32 %v2201, %v2201
    %v2213 = vmul.f32 %v2202, %v2202
    %v2214 = vsel %vm2163, %v2203, 0.0
    %v2215 = vsel %vm2163, %v2204, 0.0
    %v2216 = vadd.f32 %v2214, %v2215
    %v2217 = vsel %vm2163, %v2205, 0.0
    %v2218 = vadd.f32 %v2216, %v2217
    %v2219 = vsel %vm2163, %v2206, 0.0
    %v2220 = vadd.f32 %v2218, %v2219
    %v2221 = vsel %vm2163, %v2207, 0.0
    %v2222 = vadd.f32 %v2220, %v2221
    %v2223 = vsel %vm2163, %v2208, 0.0
    %v2224 = vadd.f32 %v2222, %v2223
    %v2225 = vsel %vm2163, %v2209, 0.0
    %v2226 = vadd.f32 %v2224, %v2225
    %v2227 = vsel %vm2163, %v2210, 0.0
    %v2228 = vadd.f32 %v2226, %v2227
    %v2229 = vsel %vm2163, %v2211, 0.0
    %v2230 = vadd.f32 %v2228, %v2229
    %v2231 = vsel %vm2163, %v2212, 0.0
    %v2232 = vadd.f32 %v2230, %v2231
    %v2233 = vsel %vm2163, %v2213, 0.0
    %v2234 = vadd.f32 %v2232, %v2233
    %v2235 = vrot.slane %v2234, 4
    %v2236 = vadd.f32 %v2234, %v2235
    %v2237 = vrot.slane %v2236, 2
    %v2238 = vadd.f32 %v2236, %v2237
    %v2239 = vrot.slane %v2238, 1
    %v2240 = vadd.f32 %v2238, %v2239
    %v2241 = vmul.f32 %v2240, 0.011363637
    %v2242 = vld [vmem:[%s2 + $0x2] sm:$0x1]
    %v2243 = vld [vmem:[%s2 + $0x3] sm:$0x1]
    %v2244 = vadd.f32 %v2241, 1e-05
    %v2245 = vrsqrt.pop %v2244
    %v2246 = vmul.f32 %v2245, %v2244
    %v2247 = vmul.f32 %v2246, %v2245
    %v2248 = vmul.f32 0.5, %v2247
    %v2249 = vsub.f32 1.5, %v2248
    %v2250 = vmul.f32 %v2245, %v2249
    %vm2251 = vweird.f32 %v2244
    %vm2252 = vweird.f32 %v2245
    %vm2253 = vmor %vm2251, %vm2252
    %v2254 = vsel %vm2253, %v2245, %v2250
    %v2255 = vmul.f32 %v2254, %v2242
    %v2256 = vperm.slane %v2255, 0
    %v2257 = vmul.f32 %v2192, %v2256
    %v2258 = vmul.f32 %v2193, %v2256
    %v2259 = vmul.f32 %v2194, %v2256
    %v2260 = vmul.f32 %v2195, %v2256
    %v2261 = vmul.f32 %v2196, %v2256
    %v2262 = vmul.f32 %v2197, %v2256
    %v2263 = vmul.f32 %v2198, %v2256
    %v2264 = vmul.f32 %v2199, %v2256
    %v2265 = vmul.f32 %v2200, %v2256
    %v2266 = vmul.f32 %v2201, %v2256
    %v2267 = vmul.f32 %v2202, %v2256
    %v2268 = vperm.slane %v2243, 0
    %v2269 = vadd.f32 %v2257, %v2268
    %v2270 = vadd.f32 %v2258, %v2268
    %v2271 = vadd.f32 %v2259, %v2268
    %v2272 = vadd.f32 %v2260, %v2268
    %v2273 = vadd.f32 %v2261, %v2268
    %v2274 = vadd.f32 %v2262, %v2268
    %v2275 = vadd.f32 %v2263, %v2268
    %v2276 = vadd.f32 %v2264, %v2268
    %v2277 = vadd.f32 %v2265, %v2268
    %v2278 = vadd.f32 %v2266, %v2268
    %v2279 = vadd.f32 %v2267, %v2268
    %v2280 = vmax.f32 %v2269, 0.0
    %v2281 = vmax.f32 %v2270, 0.0
    %v2282 = vmax.f32 %v2271, 0.0
    %v2283 = vmax.f32 %v2272, 0.0
    %v2284 = vmax.f32 %v2273, 0.0
    %v2285 = vmax.f32 %v2274, 0.0
    %v2286 = vmax.f32 %v2275, 0.0
    %v2287 = vmax.f32 %v2276, 0.0
    %v2288 = vmax.f32 %v2277, 0.0
    %v2289 = vmax.f32 %v2278, 0.0
    %v2290 = vmax.f32 %v2279, 0.0
    %2291 = vst.msk [vmem:[#allocation3] sm:$0xff] %vm2163, %v2280
    %2292 = vst.msk [vmem:[#allocation3 + $0x8] sm:$0xff] %vm2163, %v2281
    %2293 = vst.msk [vmem:[#allocation3 + $0x10] sm:$0xff] %vm2163, %v2282
    %2294 = vst.msk [vmem:[#allocation3 + $0x18] sm:$0xff] %vm2163, %v2283
    %2295 = vst.msk [vmem:[#allocation3 + $0x20] sm:$0xff] %vm2163, %v2284
    %2296 = vst.msk [vmem:[#allocation3 + $0x28] sm:$0xff] %vm2163, %v2285
    %2297 = vst.msk [vmem:[#allocation3 + $0x30] sm:$0xff] %vm2163, %v2286
    %2298 = vst.msk [vmem:[#allocation3 + $0x38] sm:$0xff] %vm2163, %v2287
    %2299 = vst.msk [vmem:[#allocation3 + $0x40] sm:$0xff] %vm2163, %v2288
    %2300 = vst.msk [vmem:[#allocation3 + $0x48] sm:$0xff] %vm2163, %v2289
    %2301 = vst.msk [vmem:[#allocation3 + $0x50] sm:$0xff] %vm2163, %v2290
    %v2302 = vld [vmem:[#allocation3] ss:$2 sm:$0xff]
    %v2303 = vld [vmem:[%s1707] ss:$2 sm:$0xff]
    %v2304 = vld [vmem:[%s1709] ss:$2 sm:$0xf]
    %v2305 = vld [vmem:[%s1717] ss:$2 sm:$0xff]
    %v2306 = vld [vmem:[%s1719] ss:$2 sm:$0xff]
    %v2307 = vld [vmem:[%s1721] ss:$2 sm:$0xf]
    %v2308 = vmax.f32 %v2302, %v2305
    %v2309 = vmax.f32 %v2303, %v2306
    %v2310 = vmax.f32 %v2304, %v2307
    %2311 = vst.msk [vmem:[#allocation2] sm:$0xff] %vm2163, %v2308
    %2312 = vst.msk [vmem:[#allocation2 + $0x10] sm:$0xff] %vm2163, %v2309
    %vm2313 = vcmask 257024
    %2314 = vst.msk [vmem:[#allocation2 + $0x20] sm:$0xf] %vm2313, %v2310
    %v2315 = vld [vmem:[%s1741] ss:$2 sm:$0xff]
    %v2316 = vld [vmem:[%s1743] ss:$2 sm:$0xff]
    %v2317 = vld [vmem:[%s1745] ss:$2 sm:$0xf]
    %v2318 = vld [vmem:[%s1753] ss:$2 sm:$0xff]
    %v2319 = vld [vmem:[%s1755] ss:$2 sm:$0xff]
    %v2320 = vld [vmem:[%s1757] ss:$2 sm:$0xf]
    %v2321 = vmax.f32 %v2315, %v2318
    %v2322 = vmax.f32 %v2316, %v2319
    %v2323 = vmax.f32 %v2317, %v2320
    %2327 = vrot.lane.b32.xlu0 %v2321, 32
    %v2328 = vpop.permute.xlu0 %2327
    %2329 = vrot.lane.b32.xlu0 %v2322, 32
    %v2330 = vpop.permute.xlu0 %2329
    %2331 = vrot.lane.b32.xlu0 %v2323, 32
    %v2332 = vpop.permute.xlu0 %2331
    %vm2336 = vcmask 523520
    %2337 = vst.msk [vmem:[#allocation2] sm:$0xff] %vm2336, %v2328
    %2338 = vst.msk [vmem:[#allocation2 + $0x10] sm:$0xff] %vm2336, %v2330
    %vm2339 = vcmask 519424
    %2340 = vst.msk [vmem:[#allocation2 + $0x20] sm:$0xf] %vm2339, %v2332
    %v2341 = vld [vmem:[%s1801] ss:$2 sm:$0xff]
    %v2342 = vld [vmem:[%s1803] ss:$2 sm:$0xff]
    %v2343 = vld [vmem:[%s1805] ss:$2 sm:$0xf]
    %v2344 = vld [vmem:[%s1813] ss:$2 sm:$0xff]
    %v2345 = vld [vmem:[%s1815] ss:$2 sm:$0xff]
    %v2346 = vld [vmem:[%s1817] ss:$2 sm:$0xf]
    %v2347 = vmax.f32 %v2341, %v2344
    %v2348 = vmax.f32 %v2342, %v2345
    %v2349 = vmax.f32 %v2343, %v2346
    %2353 = vrot.lane.b32.xlu0 %v2347, 64
    %v2354 = vpop.permute.xlu0 %2353
    %2355 = vrot.lane.b32.xlu0 %v2348, 64
    %v2356 = vpop.permute.xlu0 %2355
    %2357 = vrot.lane.b32.xlu0 %v2349, 64
    %v2358 = vpop.permute.xlu0 %2357
    %vm2362 = vcmask 785920
    %2363 = vst.msk [vmem:[#allocation2] sm:$0xff] %vm2362, %v2354
    %2364 = vst.msk [vmem:[#allocation2 + $0x10] sm:$0xff] %vm2362, %v2356
    %vm2365 = vcmask 781824
    %2366 = vst.msk [vmem:[#allocation2 + $0x20] sm:$0xf] %vm2365, %v2358
    %s2367 = scalar_lea.vmem [#allocation3], 44
    %v2368 = vld [vmem:[%s2367] ss:$2 sm:$0xff]
    %s2369 = scalar_lea.vmem [#allocation3], 60
    %v2370 = vld [vmem:[%s2369] ss:$2 sm:$0xff]
    %s2371 = scalar_lea.vmem [#allocation3], 76
    %v2372 = vld [vmem:[%s2371] ss:$2 sm:$0xf]
    %s2373 = scalar_lea.vmem [#allocation3], 45
    %v2374 = vld [vmem:[%s2373] ss:$2 sm:$0xff]
    %s2375 = scalar_lea.vmem [#allocation3], 61
    %v2376 = vld [vmem:[%s2375] ss:$2 sm:$0xff]
    %s2377 = scalar_lea.vmem [#allocation3], 77
    %v2378 = vld [vmem:[%s2377] ss:$2 sm:$0xf]
    %v2379 = vmax.f32 %v2368, %v2374
    %v2380 = vmax.f32 %v2370, %v2376
    %v2381 = vmax.f32 %v2372, %v2378
    %v2385 = vrot.slane %v2379, 4
    %v2386 = vrot.slane %v2380, 4
    %v2387 = vsel %vm602, %v2385, %v2386
    %v2388 = vrot.slane %v2381, 4
    %v2389 = vsel %vm602, %v2386, %v2388
    %vm2393 = vcmask 261124
    %2394 = vst.msk [vmem:[#allocation2 + $0x20] sm:$0xf0] %vm2393, %v2385
    %2395 = vst.msk [vmem:[#allocation2 + $0x30] sm:$0xff] %vm2163, %v2387
    %2396 = vst.msk [vmem:[#allocation2 + $0x40] sm:$0xff] %vm2163, %v2389
    %s2397 = scalar_lea.vmem [#allocation3], 46
    %v2398 = vld [vmem:[%s2397] ss:$2 sm:$0xff]
    %s2399 = scalar_lea.vmem [#allocation3], 62
    %v2400 = vld [vmem:[%s2399] ss:$2 sm:$0xff]
    %s2401 = scalar_lea.vmem [#allocation3], 78
    %v2402 = vld [vmem:[%s2401] ss:$2 sm:$0xf]
    %s2403 = scalar_lea.vmem [#allocation3], 47
    %v2404 = vld [vmem:[%s2403] ss:$2 sm:$0xff]
    %s2405 = scalar_lea.vmem [#allocation3], 63
    %v2406 = vld [vmem:[%s2405] ss:$2 sm:$0xff]
    %s2407 = scalar_lea.vmem [#allocation3], 79
    %v2408 = vld [vmem:[%s2407] ss:$2 sm:$0xf]
    %v2409 = vmax.f32 %v2398, %v2404
    %v2410 = vmax.f32 %v2400, %v2406
    %v2411 = vmax.f32 %v2402, %v2408
    %v2415 = vrot.slane %v2409, 4
    %v2416 = vrot.slane %v2410, 4
    %v2417 = vsel %vm602, %v2415, %v2416
    %v2418 = vrot.slane %v2411, 4
    %v2419 = vsel %vm602, %v2416, %v2418
    %2420 = vrot.lane.b32.xlu0 %v2415, 32
    %v2421 = vpop.permute.xlu0 %2420
    %2422 = vrot.lane.b32.xlu0 %v2417, 32
    %v2423 = vpop.permute.xlu0 %2422
    %2424 = vrot.lane.b32.xlu0 %v2419, 32
    %v2425 = vpop.permute.xlu0 %2424
    %vm2429 = vcmask 523524
    %2430 = vst.msk [vmem:[#allocation2 + $0x20] sm:$0xf0] %vm2429, %v2421
    %2431 = vst.msk [vmem:[#allocation2 + $0x30] sm:$0xff] %vm2336, %v2423
    %2432 = vst.msk [vmem:[#allocation2 + $0x40] sm:$0xff] %vm2336, %v2425
    %v2433 = vld [vmem:[%s1711] ss:$2 sm:$0xff]
    %v2434 = vld [vmem:[%s1713] ss:$2 sm:$0xff]
    %v2435 = vld [vmem:[%s1715] ss:$2 sm:$0xf]
    %v2436 = vld [vmem:[%s1723] ss:$2 sm:$0xff]
    %v2437 = vld [vmem:[%s1725] ss:$2 sm:$0xff]
    %v2438 = vld [vmem:[%s1727] ss:$2 sm:$0xf]
    %v2439 = vmax.f32 %v2433, %v2436
    %v2440 = vmax.f32 %v2434, %v2437
    %v2441 = vmax.f32 %v2435, %v2438
    %v2445 = vrot.slane %v2439, 4
    %v2446 = vrot.slane %v2440, 4
    %v2447 = vsel %vm602, %v2445, %v2446
    %v2448 = vrot.slane %v2441, 4
    %v2449 = vsel %vm602, %v2446, %v2448
    %2450 = vrot.lane.b32.xlu0 %v2445, 64
    %v2451 = vpop.permute.xlu0 %2450
    %2452 = vrot.lane.b32.xlu0 %v2447, 64
    %v2453 = vpop.permute.xlu0 %2452
    %2454 = vrot.lane.b32.xlu0 %v2449, 64
    %v2455 = vpop.permute.xlu0 %2454
    %vm2459 = vcmask 785924
    %2460 = vst.msk [vmem:[#allocation2 + $0x20] sm:$0xf0] %vm2459, %v2451
    %2461 = vst.msk [vmem:[#allocation2 + $0x30] sm:$0xff] %vm2362, %v2453
    %2462 = vst.msk [vmem:[#allocation2 + $0x40] sm:$0xff] %vm2362, %v2455
    %v2463 = vld [vmem:[#allocation2] sm:$0xff]
    %v2464 = vld [vmem:[#allocation2 + $0x10] sm:$0xff]
    %v2465 = vld [vmem:[#allocation2 + $0x20] sm:$0xff]
    %v2466 = vld [vmem:[#allocation2 + $0x30] sm:$0xff]
    %v2467 = vld [vmem:[#allocation2 + $0x40] sm:$0xff]
    %v2468 = vld [vmem:[#allocation4 + $0xb0] sm:$0xff]
    %v2469 = vld [vmem:[#allocation4 + $0xb8] sm:$0xff]
    %v2470 = vld [vmem:[#allocation4 + $0xc0] sm:$0xff]
    %v2471 = vld [vmem:[#allocation4 + $0xc8] sm:$0xff]
    %v2472 = vld [vmem:[#allocation4 + $0xd0] sm:$0xff]
    %v2473 = vld [vmem:[#allocation4 + $0xd8] sm:$0xff]
    %v2474 = vld [vmem:[#allocation4 + $0xe0] sm:$0xff]
    %v2475 = vld [vmem:[#allocation4 + $0xe8] sm:$0xff]
    %v2476 = vld [vmem:[#allocation4 + $0xf0] sm:$0xff]
    %v2477 = vld [vmem:[#allocation4 + $0xf8] sm:$0xff]
    %v2478 = vld [vmem:[#allocation4 + $0x100] sm:$0xff]
    %v2479 = vld [vmem:[#allocation4 + $0x108] sm:$0xff]
    %vm2480 = vcmask 785408
    %v2482 = vsel %vm2480, %v2463, 0
    %v2485 = vsel %vm2480, %v2464, 0
    %v2488 = vsel %vm2480, %v2465, 0
    %v2491 = vsel %vm2480, %v2466, 0
    %v2494 = vsel %vm2480, %v2467, 0
    %2496 = vmatpush.msra.mxu0 0.0
    %2497 = vmatpush.msra.mxu0 0.0
    %2498 = vmatpush.msra.mxu0 0.0
    %2499 = vmatpush.msra.mxu0 0.0
    %2500 = vmatpush.msra.mxu0 %v2479
    %2501 = vmatpush.msra.mxu0 %v2478
    %2502 = vmatpush.msra.mxu0 %v2477
    %2503 = vmatpush.msra.mxu0 %v2476
    %2504 = vmatpush.msra.mxu0 %v2475
    %2505 = vmatpush.msra.mxu0 %v2474
    %2506 = vmatpush.msra.mxu0 %v2473
    %2507 = vmatpush.msra.mxu0 %v2472
    %2508 = vmatpush.msra.mxu0 %v2471
    %2509 = vmatpush.msra.mxu0 %v2470
    %2510 = vmatpush.msra.mxu0 %v2469
    %2511 = vmatpush.msra.mxu0 %v2468
    %2512 = vmatmul.f32.gmra.mxu0 %v2482
    %v2513 = vpop.f32.mrf.mxu0
    %v2514 = vadd.f32 0.0, %v2513
    %2515 = vmatmul.f32.gmra.mxu0 %v2485
    %v2516 = vpop.f32.mrf.mxu0
    %v2517 = vadd.f32 0.0, %v2516
    %2518 = vmatmul.f32.gmra.mxu0 %v2488
    %v2519 = vpop.f32.mrf.mxu0
    %v2520 = vadd.f32 0.0, %v2519
    %2521 = vmatmul.f32.gmra.mxu0 %v2491
    %v2522 = vpop.f32.mrf.mxu0
    %v2523 = vadd.f32 0.0, %v2522
    %2524 = vmatmul.f32.gmra.mxu0 %v2494
    %v2525 = vpop.f32.mrf.mxu0
    %v2526 = vadd.f32 0.0, %v2525
    %2527 = vdwg.mxu0
    %vm2528 = vcmask 523264
    %v2529 = vsel %vm2528, %v2514, 0.0
    %v2530 = vsel %vm2528, %v2517, 0.0
    %v2531 = vadd.f32 %v2529, %v2530
    %v2532 = vsel %vm2528, %v2520, 0.0
    %v2533 = vadd.f32 %v2531, %v2532
    %v2534 = vsel %vm2528, %v2523, 0.0
    %v2535 = vadd.f32 %v2533, %v2534
    %v2536 = vsel %vm2528, %v2526, 0.0
    %v2537 = vadd.f32 %v2535, %v2536
    %v2538 = vrot.slane %v2537, 4
    %v2539 = vadd.f32 %v2537, %v2538
    %v2540 = vrot.slane %v2539, 2
    %v2541 = vadd.f32 %v2539, %v2540
    %v2542 = vrot.slane %v2541, 1
    %v2543 = vadd.f32 %v2541, %v2542
    %v2544 = vmul.f32 %v2543, 0.025
    %v2545 = vsub.f32 %v2514, %v2544
    %v2546 = vsub.f32 %v2517, %v2544
    %v2547 = vsub.f32 %v2520, %v2544
    %v2548 = vsub.f32 %v2523, %v2544
    %v2549 = vsub.f32 %v2526, %v2544
    %v2550 = vmul.f32 %v2545, %v2545
    %v2551 = vmul.f32 %v2546, %v2546
    %v2552 = vmul.f32 %v2547, %v2547
    %v2553 = vmul.f32 %v2548, %v2548
    %v2554 = vmul.f32 %v2549, %v2549
    %v2555 = vsel %vm2528, %v2550, 0.0
    %v2556 = vsel %vm2528, %v2551, 0.0
    %v2557 = vadd.f32 %v2555, %v2556
    %v2558 = vsel %vm2528, %v2552, 0.0
    %v2559 = vadd.f32 %v2557, %v2558
    %v2560 = vsel %vm2528, %v2553, 0.0
    %v2561 = vadd.f32 %v2559, %v2560
    %v2562 = vsel %vm2528, %v2554, 0.0
    %v2563 = vadd.f32 %v2561, %v2562
    %v2564 = vrot.slane %v2563, 4
    %v2565 = vadd.f32 %v2563, %v2564
    %v2566 = vrot.slane %v2565, 2
    %v2567 = vadd.f32 %v2565, %v2566
    %v2568 = vrot.slane %v2567, 1
    %v2569 = vadd.f32 %v2567, %v2568
    %v2570 = vmul.f32 %v2569, 0.025
    %v2571 = vld [vmem:[%s2 + $0x4] sm:$0x1]
    %v2572 = vld [vmem:[%s2 + $0x5] sm:$0x1]
    %v2573 = vadd.f32 %v2570, 1e-05
    %v2574 = vrsqrt.pop %v2573
    %v2575 = vmul.f32 %v2574, %v2573
    %v2576 = vmul.f32 %v2575, %v2574
    %v2577 = vmul.f32 0.5, %v2576
    %v2578 = vsub.f32 1.5, %v2577
    %v2579 = vmul.f32 %v2574, %v2578
    %vm2580 = vweird.f32 %v2573
    %vm2581 = vweird.f32 %v2574
    %vm2582 = vmor %vm2580, %vm2581
    %v2583 = vsel %vm2582, %v2574, %v2579
    %v2584 = vmul.f32 %v2583, %v2571
    %v2585 = vperm.slane %v2584, 0
    %v2586 = vmul.f32 %v2545, %v2585
    %v2587 = vmul.f32 %v2546, %v2585
    %v2588 = vmul.f32 %v2547, %v2585
    %v2589 = vmul.f32 %v2548, %v2585
    %v2590 = vmul.f32 %v2549, %v2585
    %v2591 = vperm.slane %v2572, 0
    %v2592 = vadd.f32 %v2586, %v2591
    %v2593 = vadd.f32 %v2587, %v2591
    %v2594 = vadd.f32 %v2588, %v2591
    %v2595 = vadd.f32 %v2589, %v2591
    %v2596 = vadd.f32 %v2590, %v2591
    %v2597 = vmax.f32 %v2592, 0.0
    %v2598 = vmax.f32 %v2593, 0.0
    %v2599 = vmax.f32 %v2594, 0.0
    %v2600 = vmax.f32 %v2595, 0.0
    %v2601 = vmax.f32 %v2596, 0.0
    %2602 = vst.msk [vmem:[#allocation3] sm:$0xff] %vm2528, %v2597
    %2603 = vst.msk [vmem:[#allocation3 + $0x8] sm:$0xff] %vm2528, %v2598
    %2604 = vst.msk [vmem:[#allocation3 + $0x10] sm:$0xff] %vm2528, %v2599
    %2605 = vst.msk [vmem:[#allocation3 + $0x18] sm:$0xff] %vm2528, %v2600
    %2606 = vst.msk [vmem:[#allocation3 + $0x20] sm:$0xff] %vm2528, %v2601
    %v2607 = vld [vmem:[#allocation3] ss:$2 sm:$0xff]
    %v2608 = vld [vmem:[%s1717] ss:$2 sm:$0xff]
    %v2609 = vmax.f32 %v2607, %v2608
    %2610 = vst.msk [vmem:[#allocation2] sm:$0xff] %vm2528, %v2609
    %v2611 = vld [vmem:[%s1741] ss:$2 sm:$0xff]
    %v2612 = vld [vmem:[%s1753] ss:$2 sm:$0xff]
    %v2613 = vmax.f32 %v2611, %v2612
    %2615 = vrot.lane.b32.xlu0 %v2613, 64
    %v2616 = vpop.permute.xlu0 %2615
    %vm2618 = vcmask 1048064
    %2619 = vst.msk [vmem:[#allocation2] sm:$0xff] %vm2618, %v2616
    %v2620 = vld [vmem:[%s1801] ss:$2 sm:$0xff]
    %v2621 = vld [vmem:[%s1813] ss:$2 sm:$0xff]
    %v2622 = vmax.f32 %v2620, %v2621
    %2623 = vst.msk [vmem:[#allocation2 + $0x8] sm:$0xff] %vm2528, %v2622
    %v2624 = vld [vmem:[%s1803] ss:$2 sm:$0xff]
    %v2625 = vld [vmem:[%s1815] ss:$2 sm:$0xff]
    %v2626 = vmax.f32 %v2624, %v2625
    %2627 = vst.msk [vmem:[#allocation2 + $0x10] sm:$0xff] %vm2528, %v2626
    %s2628 = scalar_lea.vmem [#allocation3], 22
    %v2629 = vld [vmem:[%s2628] ss:$2 sm:$0xff]
    %s2630 = scalar_lea.vmem [#allocation3], 23
    %v2631 = vld [vmem:[%s2630] ss:$2 sm:$0xff]
    %v2632 = vmax.f32 %v2629, %v2631
    %2634 = vrot.lane.b32.xlu0 %v2632, 64
    %v2635 = vpop.permute.xlu0 %2634
    %2637 = vst.msk [vmem:[#allocation2 + $0x10] sm:$0xff] %vm2618, %v2635
    %s2638 = scalar_lea.vmem [#allocation3], 24
    %v2639 = vld [vmem:[%s2638] ss:$2 sm:$0xff]
    %s2640 = scalar_lea.vmem [#allocation3], 25
    %v2641 = vld [vmem:[%s2640] ss:$2 sm:$0xff]
    %v2642 = vmax.f32 %v2639, %v2641
    %2643 = vst.msk [vmem:[#allocation2 + $0x18] sm:$0xff] %vm2528, %v2642
    %v2644 = vld [vmem:[#allocation2] sm:$0xff]
    %v2645 = vld [vmem:[#allocation2 + $0x8] sm:$0xff]
    %v2646 = vld [vmem:[#allocation2 + $0x10] sm:$0xff]
    %v2647 = vld [vmem:[#allocation2 + $0x18] sm:$0xff]
    %v2648 = vld [vmem:[#allocation4 + $0x110] sm:$0xff]
    %v2649 = vld [vmem:[#allocation4 + $0x118] sm:$0xff]
    %v2650 = vld [vmem:[#allocation4 + $0x120] sm:$0xff]
    %v2651 = vld [vmem:[#allocation4 + $0x128] sm:$0xff]
    %v2652 = vld [vmem:[#allocation4 + $0x130] sm:$0xff]
    %v2653 = vld [vmem:[#allocation4 + $0x138] sm:$0xff]
    %v2654 = vld [vmem:[#allocation4 + $0x140] sm:$0xff]
    %v2655 = vld [vmem:[#allocation4 + $0x148] sm:$0xff]
    %v2656 = vld [vmem:[#allocation4 + $0x150] sm:$0xff]
    %v2657 = vld [vmem:[#allocation4 + $0x158] sm:$0xff]
    %v2658 = vld [vmem:[#allocation4 + $0x160] sm:$0xff]
    %v2659 = vld [vmem:[#allocation4 + $0x168] sm:$0xff]
    %v2660 = vld [vmem:[#allocation4 + $0x170] sm:$0xff]
    %v2661 = vld [vmem:[#allocation4 + $0x178] sm:$0xff]
    %v2662 = vld [vmem:[#allocation4 + $0x180] sm:$0xff]
    %v2663 = vld [vmem:[#allocation4 + $0x188] sm:$0xff]
    %v2664 = vld [vmem:[#allocation4 + $0x190] sm:$0xff]
    %v2665 = vld [vmem:[#allocation4 + $0x198] sm:$0xff]
    %v2666 = vld [vmem:[#allocation4 + $0x1a0] sm:$0xff]
    %v2667 = vld [vmem:[#allocation4 + $0x1a8] sm:$0xff]
    %v2668 = vld [vmem:[#allocation4 + $0x1b0] sm:$0xff]
    %v2669 = vld [vmem:[#allocation4 + $0x1b8] sm:$0xff]
    %v2670 = vld [vmem:[#allocation4 + $0x1c0] sm:$0xff]
    %v2671 = vld [vmem:[#allocation4 + $0x1c8] sm:$0xff]
    %v2673 = vsel %vm2528, %v2645, 0
    %v2676 = vsel %vm2528, %v2647, 0
    %2678 = vmatpush.msra.mxu0 %v2663
    %2679 = vmatpush.msra.mxu0 %v2662
    %2680 = vmatpush.msra.mxu0 %v2661
    %2681 = vmatpush.msra.mxu0 %v2660
    %2682 = vmatpush.msra.mxu0 %v2659
    %2683 = vmatpush.msra.mxu0 %v2658
    %2684 = vmatpush.msra.mxu0 %v2657
    %2685 = vmatpush.msra.mxu0 %v2656
    %2686 = vmatpush.msra.mxu0 %v2655
    %2687 = vmatpush.msra.mxu0 %v2654
    %2688 = vmatpush.msra.mxu0 %v2653
    %2689 = vmatpush.msra.mxu0 %v2652
    %2690 = vmatpush.msra.mxu0 %v2651
    %2691 = vmatpush.msra.mxu0 %v2650
    %2692 = vmatpush.msra.mxu0 %v2649
    %2693 = vmatpush.msra.mxu0 %v2648
    %2694 = vmatmul.f32.gmra.mxu0 %v2644
    %v2695 = vpop.f32.mrf.mxu0
    %v2696 = vadd.f32 0.0, %v2695
    %2697 = vmatmul.f32.gmra.mxu0 %v2646
    %v2698 = vpop.f32.mrf.mxu0
    %v2699 = vadd.f32 0.0, %v2698
    %2700 = vdwg.mxu0
    %2701 = vmatpush.msra.mxu0 0.0
    %2702 = vmatpush.msra.mxu0 0.0
    %2703 = vmatpush.msra.mxu0 0.0
    %2704 = vmatpush.msra.mxu0 0.0
    %2705 = vmatpush.msra.mxu0 0.0
    %2706 = vmatpush.msra.mxu0 0.0
    %2707 = vmatpush.msra.mxu0 0.0
    %2708 = vmatpush.msra.mxu0 0.0
    %2709 = vmatpush.msra.mxu0 %v2671
    %2710 = vmatpush.msra.mxu0 %v2670
    %2711 = vmatpush.msra.mxu0 %v2669
    %2712 = vmatpush.msra.mxu0 %v2668
    %2713 = vmatpush.msra.mxu0 %v2667
    %2714 = vmatpush.msra.mxu0 %v2666
    %2715 = vmatpush.msra.mxu0 %v2665
    %2716 = vmatpush.msra.mxu0 %v2664
    %2717 = vmatmul.f32.gmra.mxu0 %v2673
    %v2718 = vpop.f32.mrf.mxu0
    %v2719 = vadd.f32 %v2696, %v2718
    %2720 = vmatmul.f32.gmra.mxu0 %v2676
    %v2721 = vpop.f32.mrf.mxu0
    %v2722 = vadd.f32 %v2699, %v2721
    %2723 = vdwg.mxu0
    %v2724 = vsel %vm2528, %v2719, 0.0
    %v2725 = vsel %vm2528, %v2722, 0.0
    %v2726 = vadd.f32 %v2724, %v2725
    %v2727 = vrot.slane %v2726, 4
    %v2728 = vadd.f32 %v2726, %v2727
    %v2729 = vrot.slane %v2728, 2
    %v2730 = vadd.f32 %v2728, %v2729
    %v2731 = vrot.slane %v2730, 1
    %v2732 = vadd.f32 %v2730, %v2731
    %v2733 = vmul.f32 %v2732, 0.0625
    %v2734 = vsub.f32 %v2719, %v2733
    %v2735 = vsub.f32 %v2722, %v2733
    %v2736 = vmul.f32 %v2734, %v2734
    %v2737 = vmul.f32 %v2735, %v2735
    %v2738 = vsel %vm2528, %v2736, 0.0
    %v2739 = vsel %vm2528, %v2737, 0.0
    %v2740 = vadd.f32 %v2738, %v2739
    %v2741 = vrot.slane %v2740, 4
    %v2742 = vadd.f32 %v2740, %v2741
    %v2743 = vrot.slane %v2742, 2
    %v2744 = vadd.f32 %v2742, %v2743
    %v2745 = vrot.slane %v2744, 1
    %v2746 = vadd.f32 %v2744, %v2745
    %v2747 = vmul.f32 %v2746, 0.0625
    %v2748 = vld [vmem:[%s2 + $0x6] sm:$0x1]
    %v2749 = vld [vmem:[%s2 + $0x7] sm:$0x1]
    %v2750 = vadd.f32 %v2747, 1e-05
    %v2751 = vrsqrt.pop %v2750
    %v2752 = vmul.f32 %v2751, %v2750
    %v2753 = vmul.f32 %v2752, %v2751
    %v2754 = vmul.f32 0.5, %v2753
    %v2755 = vsub.f32 1.5, %v2754
    %v2756 = vmul.f32 %v2751, %v2755
    %vm2757 = vweird.f32 %v2750
    %vm2758 = vweird.f32 %v2751
    %vm2759 = vmor %vm2757, %vm2758
    %v2760 = vsel %vm2759, %v2751, %v2756
    %v2761 = vmul.f32 %v2760, %v2748
    %v2762 = vperm.slane %v2761, 0
    %v2763 = vmul.f32 %v2734, %v2762
    %v2764 = vmul.f32 %v2735, %v2762
    %v2765 = vperm.slane %v2749, 0
    %v2766 = vadd.f32 %v2763, %v2765
    %v2767 = vadd.f32 %v2764, %v2765
    %v2768 = vmax.f32 %v2766, 0.0
    %v2769 = vmax.f32 %v2767, 0.0
    %2770 = vst.msk [vmem:[#allocation3] sm:$0xff] %vm2528, %v2768
    %2771 = vst.msk [vmem:[#allocation3 + $0x8] sm:$0xff] %vm2528, %v2769
    %v2772 = vld [vmem:[#allocation3] ss:$2 sm:$0x3]
    %v2773 = vld [vmem:[%s1717] ss:$2 sm:$0x3]
    %v2774 = vmax.f32 %v2772, %v2773
    %vm2775 = vcmask 517120
    %2776 = vst.msk [vmem:[#allocation2] sm:$0x3] %vm2775, %v2774
    %v2777 = vld [vmem:[%s1741] ss:$2 sm:$0x3]
    %v2778 = vld [vmem:[%s1753] ss:$2 sm:$0x3]
    %v2779 = vmax.f32 %v2777, %v2778
    %2781 = vrot.lane.b32.xlu0 %v2779, 64
    %v2782 = vpop.permute.xlu0 %2781
    %vm2784 = vcmask 1041920
    %2785 = vst.msk [vmem:[#allocation2] sm:$0x3] %vm2784, %v2782
    %v2786 = vld [vmem:[%s1801] ss:$2 sm:$0x3]
    %v2787 = vld [vmem:[%s1813] ss:$2 sm:$0x3]
    %v2788 = vmax.f32 %v2786, %v2787
    %2789 = vst.msk [vmem:[#allocation2 + $0x8] sm:$0x3] %vm2775, %v2788
    %s2790 = scalar_lea.vmem [#allocation3], 8
    %v2791 = vld [vmem:[%s2790] ss:$2 sm:$0x3]
    %s2792 = scalar_lea.vmem [#allocation3], 9
    %v2793 = vld [vmem:[%s2792] ss:$2 sm:$0x3]
    %v2794 = vmax.f32 %v2791, %v2793
    %v2796 = vrot.slane %v2794, 6
    %vm2798 = vcmask 519170
    %2799 = vst.msk [vmem:[#allocation2] sm:$0xc] %vm2798, %v2796
    %s2800 = scalar_lea.vmem [#allocation3], 10
    %v2801 = vld [vmem:[%s2800] ss:$2 sm:$0x3]
    %s2802 = scalar_lea.vmem [#allocation3], 11
    %v2803 = vld [vmem:[%s2802] ss:$2 sm:$0x3]
    %v2804 = vmax.f32 %v2801, %v2803
    %v2806 = vrot.slane %v2804, 6
    %2807 = vrot.lane.b32.xlu0 %v2806, 64
    %v2808 = vpop.permute.xlu0 %2807
    %vm2810 = vcmask 1043970
    %2811 = vst.msk [vmem:[#allocation2] sm:$0xc] %vm2810, %v2808
    %s2812 = scalar_lea.vmem [#allocation3], 12
    %v2813 = vld [vmem:[%s2812] ss:$2 sm:$0x3]
    %s2814 = scalar_lea.vmem [#allocation3], 13
    %v2815 = vld [vmem:[%s2814] ss:$2 sm:$0x3]
    %v2816 = vmax.f32 %v2813, %v2815
    %v2818 = vrot.slane %v2816, 6
    %2820 = vst.msk [vmem:[#allocation2 + $0x8] sm:$0xc] %vm2798, %v2818
    %v2821 = vld [vmem:[#allocation2] sm:$0xf]
    %v2822 = vld [vmem:[#allocation2 + $0x8] sm:$0xf]
    %v2823 = vld [vmem:[#allocation4 + $0x1d0] sm:$0xff]
    %v2824 = vld [vmem:[#allocation4 + $0x1d8] sm:$0xff]
    %v2825 = vld [vmem:[#allocation4 + $0x1e0] sm:$0xff]
    %v2826 = vld [vmem:[#allocation4 + $0x1e8] sm:$0xff]
    %v2827 = vld [vmem:[#allocation4 + $0x1f0] sm:$0xff]
    %v2828 = vld [vmem:[#allocation4 + $0x1f8] sm:$0xff]
    %v2829 = vld [vmem:[#allocation4 + $0x200] sm:$0xff]
    %v2830 = vld [vmem:[#allocation4 + $0x208] sm:$0xff]
    %v2831 = vld [vmem:[#allocation4 + $0x210] sm:$0xff]
    %v2832 = vld [vmem:[#allocation4 + $0x218] sm:$0xff]
    %v2833 = vld [vmem:[#allocation4 + $0x220] sm:$0xff]
    %v2834 = vld [vmem:[#allocation4 + $0x228] sm:$0xff]
    %v2835 = vld [vmem:[#allocation4 + $0x230] sm:$0xff]
    %v2836 = vld [vmem:[#allocation4 + $0x238] sm:$0xff]
    %v2837 = vld [vmem:[#allocation4 + $0x240] sm:$0xff]
    %v2838 = vld [vmem:[#allocation4 + $0x248] sm:$0xff]
    %v2839 = vld [vmem:[#allocation4 + $0x250] sm:$0xff]
    %v2840 = vld [vmem:[#allocation4 + $0x258] sm:$0xff]
    %v2841 = vld [vmem:[#allocation4 + $0x260] sm:$0xff]
    %v2842 = vld [vmem:[#allocation4 + $0x268] sm:$0xff]
    %v2843 = vld [vmem:[#allocation4 + $0x270] sm:$0xff]
    %v2844 = vld [vmem:[#allocation4 + $0x278] sm:$0xff]
    %v2845 = vld [vmem:[#allocation4 + $0x280] sm:$0xff]
    %v2846 = vld [vmem:[#allocation4 + $0x288] sm:$0xff]
    %v2848 = vsel %vm2528, %v2822, 0
    %2850 = vmatpush.msra.mxu0 %v2838
    %2851 = vmatpush.msra.mxu0 %v2837
    %2852 = vmatpush.msra.mxu0 %v2836
    %2853 = vmatpush.msra.mxu0 %v2835
    %2854 = vmatpush.msra.mxu0 %v2834
    %2855 = vmatpush.msra.mxu0 %v2833
    %2856 = vmatpush.msra.mxu0 %v2832
    %2857 = vmatpush.msra.mxu0 %v2831
    %2858 = vmatpush.msra.mxu0 %v2830
    %2859 = vmatpush.msra.mxu0 %v2829
    %2860 = vmatpush.msra.mxu0 %v2828
    %2861 = vmatpush.msra.mxu0 %v2827
    %2862 = vmatpush.msra.mxu0 %v2826
    %2863 = vmatpush.msra.mxu0 %v2825
    %2864 = vmatpush.msra.mxu0 %v2824
    %2865 = vmatpush.msra.mxu0 %v2823
    %2866 = vmatmul.f32.gmra.mxu0 %v2821
    %v2867 = vpop.f32.mrf.mxu0
    %v2868 = vadd.f32 0.0, %v2867
    %2869 = vdwg.mxu0
    %2870 = vmatpush.msra.mxu0 0.0
    %2871 = vmatpush.msra.mxu0 0.0
    %2872 = vmatpush.msra.mxu0 0.0
    %2873 = vmatpush.msra.mxu0 0.0
    %2874 = vmatpush.msra.mxu0 0.0
    %2875 = vmatpush.msra.mxu0 0.0
    %2876 = vmatpush.msra.mxu0 0.0
    %2877 = vmatpush.msra.mxu0 0.0
    %2878 = vmatpush.msra.mxu0 %v2846
    %2879 = vmatpush.msra.mxu0 %v2845
    %2880 = vmatpush.msra.mxu0 %v2844
    %2881 = vmatpush.msra.mxu0 %v2843
    %2882 = vmatpush.msra.mxu0 %v2842
    %2883 = vmatpush.msra.mxu0 %v2841
    %2884 = vmatpush.msra.mxu0 %v2840
    %2885 = vmatpush.msra.mxu0 %v2839
    %2886 = vmatmul.f32.gmra.mxu0 %v2848
    %v2887 = vpop.f32.mrf.mxu0
    %v2888 = vadd.f32 %v2868, %v2887
    %2889 = vdwg.mxu0
    %vm2890 = vcmask 519168
    %v2891 = vsel %vm2890, %v2888, 0.0
    %v2892 = vrot.slane %v2891, 4
    %v2893 = vadd.f32 %v2891, %v2892
    %v2894 = vrot.slane %v2893, 2
    %v2895 = vadd.f32 %v2893, %v2894
    %v2896 = vrot.slane %v2895, 1
    %v2897 = vadd.f32 %v2895, %v2896
    %v2898 = vmul.f32 %v2897, 0.25
    %v2899 = vsub.f32 %v2888, %v2898
    %v2900 = vmul.f32 %v2899, %v2899
    %v2901 = vsel %vm2890, %v2900, 0.0
    %v2902 = vrot.slane %v2901, 4
    %v2903 = vadd.f32 %v2901, %v2902
    %v2904 = vrot.slane %v2903, 2
    %v2905 = vadd.f32 %v2903, %v2904
    %v2906 = vrot.slane %v2905, 1
    %v2907 = vadd.f32 %v2905, %v2906
    %v2908 = vmul.f32 %v2907, 0.25
    %v2909 = vld [vmem:[%s2 + $0x8] sm:$0x1]
    %v2910 = vld [vmem:[%s2 + $0x9] sm:$0x1]
    %v2911 = vadd.f32 %v2908, 1e-05
    %v2912 = vrsqrt.pop %v2911
    %v2913 = vmul.f32 %v2912, %v2911
    %v2914 = vmul.f32 %v2913, %v2912
    %v2915 = vmul.f32 0.5, %v2914
    %v2916 = vsub.f32 1.5, %v2915
    %v2917 = vmul.f32 %v2912, %v2916
    %vm2918 = vweird.f32 %v2911
    %vm2919 = vweird.f32 %v2912
    %vm2920 = vmor %vm2918, %vm2919
    %v2921 = vsel %vm2920, %v2912, %v2917
    %v2922 = vmul.f32 %v2921, %v2909
    %v2923 = vperm.slane %v2922, 0
    %v2924 = vmul.f32 %v2899, %v2923
    %v2925 = vperm.slane %v2910, 0
    %v2926 = vadd.f32 %v2924, %v2925
    %v2927 = vmax.f32 %v2926, 0.0
    %2928 = vst.msk [vmem:[#allocation3] sm:$0xf] %vm2890, %v2927
    %v2929 = vld [vmem:[#allocation3] ss:$2 sm:$0x3]
    %v2930 = vld [vmem:[%s1717] ss:$2 sm:$0x3]
    %v2931 = vmax.f32 %v2929, %v2930
    %v2932 = vld [vmem:[#allocation4 + $0x290] sm:$0xff]
    %v2933 = vld [vmem:[#allocation4 + $0x298] sm:$0xff]
    %v2934 = vld [vmem:[#allocation4 + $0x2a0] sm:$0xff]
    %v2935 = vld [vmem:[#allocation4 + $0x2a8] sm:$0xff]
    %v2936 = vld [vmem:[#allocation4 + $0x2b0] sm:$0xff]
    %v2937 = vld [vmem:[#allocation4 + $0x2b8] sm:$0xff]
    %v2938 = vld [vmem:[#allocation4 + $0x2c0] sm:$0xff]
    %v2939 = vld [vmem:[#allocation4 + $0x2c8] sm:$0xff]
    %v2940 = vld [vmem:[%s2 + $0xa] sm:$0x1]
    %v2941 = vperm.slane %v2940, 0
    %v2943 = vsel %vm2528, %v2931, 0
    %2945 = vmatpush.msra.mxu0 0.0
    %2946 = vmatpush.msra.mxu0 0.0
    %2947 = vmatpush.msra.mxu0 0.0
    %2948 = vmatpush.msra.mxu0 0.0
    %2949 = vmatpush.msra.mxu0 0.0
    %2950 = vmatpush.msra.mxu0 0.0
    %2951 = vmatpush.msra.mxu0 0.0
    %2952 = vmatpush.msra.mxu0 0.0
    %2953 = vmatpush.msra.mxu0 %v2939
    %2954 = vmatpush.msra.mxu0 %v2938
    %2955 = vmatpush.msra.mxu0 %v2937
    %2956 = vmatpush.msra.mxu0 %v2936
    %2957 = vmatpush.msra.mxu0 %v2935
    %2958 = vmatpush.msra.mxu0 %v2934
    %2959 = vmatpush.msra.mxu0 %v2933
    %2960 = vmatpush.msra.mxu0 %v2932
    %2961 = vmatmul.f32.gmra.mxu0 %v2943
    %v2962 = vpop.f32.mrf.mxu0
    %v2963 = vadd.f32 %v2941, %v2962
    %2964 = vdwg.mxu0
    %v2965 = vmax.f32 %v2963, 0.0
    %vm2966 = vcmask 812032
    %2967 = vst.msk [vmem:[#allocation8] sm:$0x3] %vm2966, %v2965
    %v2968 = vld [vmem:[#allocation4 + $0x2d0] sm:$0xff]
    %v2969 = vld [vmem:[#allocation4 + $0x2d8] sm:$0xff]
    %v2970 = vld [vmem:[#allocation4 + $0x2e0] sm:$0xff]
    %v2971 = vld [vmem:[#allocation4 + $0x2e8] sm:$0xff]
    %v2972 = vld [vmem:[#allocation4 + $0x2f0] sm:$0xff]
    %v2973 = vld [vmem:[#allocation4 + $0x2f8] sm:$0xff]
    %v2974 = vld [vmem:[#allocation4 + $0x300] sm:$0xff]
    %v2975 = vld [vmem:[#allocation4 + $0x308] sm:$0xff]
    %v2976 = vld [vmem:[#allocation4 + $0x310] sm:$0xff]
    %v2977 = vld [vmem:[#allocation4 + $0x318] sm:$0xff]
    %v2978 = vld [vmem:[#allocation4 + $0x320] sm:$0xff]
    %v2979 = vld [vmem:[#allocation4 + $0x328] sm:$0xff]
    %v2980 = vld [vmem:[#allocation4 + $0x330] sm:$0xf]
    %v2981 = vld [vmem:[%s2 + $0xb] sm:$0x1]
    %v2982 = vperm.slane %v2981, 0
    %vm2983 = vcmask 818176
    %v2985 = vsel %vm2983, %v2965, 0
    %v2988 = vsel %vm602, %v2980, 0
    %2990 = vmatpush.msra.mxu0 0.0
    %2991 = vmatpush.msra.mxu0 0.0
    %2992 = vmatpush.msra.mxu0 0.0
    %2993 = vmatpush.msra.mxu0 %v2988
    %2994 = vmatpush.msra.mxu0 %v2979
    %2995 = vmatpush.msra.mxu0 %v2978
    %2996 = vmatpush.msra.mxu0 %v2977
    %2997 = vmatpush.msra.mxu0 %v2976
    %2998 = vmatpush.msra.mxu0 %v2975
    %2999 = vmatpush.msra.mxu0 %v2974
    %3000 = vmatpush.msra.mxu0 %v2973
    %3001 = vmatpush.msra.mxu0 %v2972
    %3002 = vmatpush.msra.mxu0 %v2971
    %3003 = vmatpush.msra.mxu0 %v2970
    %3004 = vmatpush.msra.mxu0 %v2969
    %3005 = vmatpush.msra.mxu0 %v2968
    %3006 = vmatmul.f32.gmra.mxu0 %v2985
    %v3007 = vpop.f32.mrf.mxu0
    %v3008 = vadd.f32 %v2982, %v3007
    %3009 = vdwg.mxu0
    %vm3010 = vcmask 25600
    %3011 = vst.msk [vmem:[#allocation7] sm:$0x3] %vm3010, %v3008
    // Predicated region
    $region18: #{my_cnn1d_forward.1} parent=1 // pred_check
      _
    $region19: #{my_cnn1d_forward.1} parent=1 // pred_check_branch
      %3013 = sbr.rel (0) target = $region21
    $region20: #{my_cnn1d_forward.1} parent=1 // pred_region
      %3015 = vsyncadd [#allocation6], 0
      %s3017 = sshll.u32 [#allocation7], 4
      %s3018 = int_to_ptr.vmem [resolvable:$true] %s3017
      %s3019 = sshll.u32 %s3, 4
      %s3020 = int_to_ptr.hbm [resolvable:$true] %s3019
      %3022 = dma.vmem_to_hbm [thread:$0]  %s3018, 32, %s3020, [#allocation6]
    $region21: #{my_cnn1d_forward.1} parent=1 // pred_fallthru
      _
    // Predicated region
    $region22: #{my_cnn1d_forward.1} parent=1 // pred_check
      _
    $region23: #{my_cnn1d_forward.1} parent=1 // pred_check_branch
      %3024 = sbr.rel (0) target = $region25
    $region24: #{my_cnn1d_forward.1} parent=1 // pred_region
      %3026 = vsyncadd [#allocation9], 0
      %s3028 = sshll.u32 [#allocation8], 4
      %s3029 = int_to_ptr.vmem [resolvable:$true] %s3028
      %s3030 = sshll.u32 %s4, 4
      %s3031 = int_to_ptr.hbm [resolvable:$true] %s3030
      %3033 = dma.vmem_to_hbm [thread:$0]  %s3029, 32, %s3031, [#allocation9]
    $region25: #{my_cnn1d_forward.1} parent=1 // pred_fallthru
      _
    // Predicated region
    $region26: #{my_cnn1d_forward.1} parent=1 // pred_check
      _
    $region27: #{my_cnn1d_forward.1} parent=1 // pred_check_branch
      %3035 = sbr.rel (0) target = $region29
    $region28: #{my_cnn1d_forward.1} parent=1 // pred_region
      %3037 = dma.done [#allocation6], 32
    $region29: #{my_cnn1d_forward.1} parent=1 // pred_fallthru
      _
    // Predicated region
    $region30: #{my_cnn1d_forward.1} parent=1 // pred_check
      _
    $region31: #{my_cnn1d_forward.1} parent=1 // pred_check_branch
      %3039 = sbr.rel (0) target = $region33
    $region32: #{my_cnn1d_forward.1} parent=1 // pred_region
      %3041 = dma.done [#allocation9], 32
    $region33: #{my_cnn1d_forward.1} parent=1 // pred_fallthru
      _
    %3042 = vsyncpa [#allocation5], 1
    %3043 = vsyncpa [#allocation6], 1
    %3044 = vsyncpa [#allocation9], 1

</llo_original>
